<compile_context>
chip_gen: v6e
topology: v6e:2x2x1
jax: 0.10.0
libtpu: 0.0.40
codegen_flags: <defaults>
</compile_context>

<pallas_src>
import functools

import jax
import jax.numpy as jnp
from jax.experimental import pallas as pl
from jax.experimental.pallas import tpu as pltpu

_K = 7     # conv kernel size
_PAD = 3   # "same" padding


def _spatial_attention_kernel(x_ref, w_sum_ref, w_max_ref, b_ref, o_ref,
                              pad_sum, pad_max, sh_sum, sh_max, attn_ref,
                              *, H, W, CB):
    # x_ref:     (Bn, C, H*W)      VMEM  lane-dense input block
    # w_sum_ref: (49,)             SMEM  avg-branch weights, pre-scaled by 1/C
    # w_max_ref: (49,)             SMEM  max-branch weights
    # b_ref:     (1,)              SMEM  conv bias
    # o_ref:     (Bn, C, H*W)      VMEM  lane-dense output block
    # pad_sum:   (Bn, H+6, W+6)    VMEM  zero-padded channel-sum maps
    # pad_max:   (Bn, H+6, W+6)    VMEM  zero-padded channel-max maps
    # sh_sum:    (7, Bn, H+6, W)   VMEM  lane-shifted copies of pad_sum
    # sh_max:    (7, Bn, H+6, W)   VMEM  lane-shifted copies of pad_max
    # attn_ref:  (Bn, 1, H*W)      VMEM  attention map in flat (lane-dense) layout
    Bn, C, HW = x_ref.shape
    assert HW == H * W
    HP, WP = H + 2 * _PAD, W + 2 * _PAD
    n_chunks = C // CB

    # ---- channel reduction (sum + max), f32 accumulation.  The 1/C of the
    # mean is folded into w_sum_ref in the wrapper.  Chunked over C so the
    # full (Bn, C, HW) f32 block is never live as a value (vreg file 256 KiB).
    if n_chunks == 1:
        x32 = x_ref[...].astype(jnp.float32)
        sum_flat = jnp.sum(x32, axis=1, keepdims=True)        # (Bn, 1, HW)
        max_flat = jnp.max(x32, axis=1, keepdims=True)        # (Bn, 1, HW)
    else:
        def _reduce(ci, carry):
            s, m = carry
            c0 = pl.multiple_of(ci * CB, CB)
            xc = x_ref[:, pl.ds(c0, CB), :].astype(jnp.float32)
            return (s + jnp.sum(xc, axis=1, keepdims=True),
                    jnp.maximum(m, jnp.max(xc, axis=1, keepdims=True)))
        sum_flat, max_flat = jax.lax.fori_loop(
            0, n_chunks, _reduce,
            (jnp.zeros((Bn, 1, HW), jnp.float32),
             jnp.full((Bn, 1, HW), -jnp.inf, jnp.float32)))

    # ---- zero only the 3-wide border of the padded maps (interior is fully
    # overwritten below).  Done every step so correctness does not depend on
    # how the "parallel" batch axis is sharded across TensorCores.
    for pref in (pad_sum, pad_max):
        pref[:, 0:_PAD, :] = jnp.zeros((Bn, _PAD, WP), jnp.float32)
        pref[:, _PAD + H:HP, :] = jnp.zeros((Bn, _PAD, WP), jnp.float32)
        pref[:, _PAD:_PAD + H, 0:_PAD] = jnp.zeros((Bn, H, _PAD), jnp.float32)
        pref[:, _PAD:_PAD + H, _PAD + W:WP] = jnp.zeros((Bn, H, _PAD), jnp.float32)

    # ---- manual relayout: flat (Bn, 1, H*W) rows -> (H, W) interiors of the
    # padded maps.  Masked row stores; avoids an in-kernel lane-dim-changing
    # reshape (which Mosaic may reject).
    for y in range(H):
        sl = slice(y * W, (y + 1) * W)
        pad_sum[:, _PAD + y:_PAD + y + 1, _PAD:_PAD + W] = sum_flat[:, :, sl]
        pad_max[:, _PAD + y:_PAD + y + 1, _PAD:_PAD + W] = max_flat[:, :, sl]

    # ---- 7 lane-shifted copies per map: window (kh, kw) becomes
    # sh_*[kw, :, kh:kh+H, :] (lane offset 0, only the sublane offset varies).
    # 14 shifted copies instead of 98 lane-misaligned window reads.
    for kw in range(_K):
        sh_sum[kw] = pad_sum[:, :, kw:kw + W]
        sh_max[kw] = pad_max[:, :, kw:kw + W]

    # ---- Conv2d(2 -> 1, k=7, pad=3): 98 shift-and-scale terms over 4
    # independent accumulators (VALU ILP).  Kept on the VPU: a single output
    # channel would use 1/256 of the MXU columns.
    accs = [jnp.zeros((Bn, H, W), jnp.float32) for _ in range(4)]
    t = 0
    for kh in range(_K):
        base = kh * _K
        for kw in range(_K):
            accs[t] = accs[t] + sh_sum[kw, :, kh:kh + H, :] * w_sum_ref[base + kw]
            accs[t + 1] = accs[t + 1] + sh_max[kw, :, kh:kh + H, :] * w_max_ref[base + kw]
            t = (t + 2) % 4
    acc = (accs[0] + accs[1]) + (accs[2] + accs[3]) + b_ref[0]
    attn = jax.nn.sigmoid(acc)                                 # (Bn, H, W)

    # ---- relayout back: (Bn, H, W) -> (Bn, 1, H*W) so the big multiply and
    # its store below stay lane-dense (unmasked vst on the output path).
    for y in range(H):
        attn_ref[:, :, y * W:(y + 1) * W] = attn[:, y:y + 1, :]

    attn_b = attn_ref[...]                                     # (Bn, 1, HW) f32

    # ---- out = x * attn, re-reading x_ref (chunked) instead of keeping the
    # whole block live across the conv.
    if n_chunks == 1:
        xv = x_ref[...].astype(jnp.float32)
        o_ref[...] = (xv * attn_b).astype(o_ref.dtype)
    else:
        @pl.loop(0, n_chunks)
        def _mul(ci):
            c0 = pl.multiple_of(ci * CB, CB)
            xc = x_ref[:, pl.ds(c0, CB), :].astype(jnp.float32)
            o_ref[:, pl.ds(c0, CB), :] = (xc * attn_b).astype(o_ref.dtype)


def _largest_divisor_leq(n, cap):
    cap = max(1, min(n, cap))
    best = 1
    for d in range(1, cap + 1):
        if n % d == 0:
            best = d
    return best


def _padded_vmem_bytes(shape, itemsize):
    """(sublane, lane)-tile-padded VMEM footprint of one buffer."""
    *lead, s, l = shape
    sub = 8 * max(1, 4 // itemsize)          # 8 sublanes (f32) / 16 (bf16)
    s_p = -(-s // sub) * sub
    l_p = -(-l // 128) * 128
    n = 1
    for d in lead:
        n *= d
    return n * s_p * l_p * itemsize


def _vmem_capacity_bytes():
    try:
        cap = getattr(pltpu.get_tpu_info(), "vmem_capacity_bytes", None)
        if cap:
            return int(cap)
    except Exception:
        pass
    return 64 << 20    # conservative fallback (v7x physical VMEM per core)


def spatial_attention(x, conv_w, conv_b, *, io_dtype=None):
    """x: (N, C, H, W); conv_w: (1, 2, 7, 7); conv_b: (1,).

    io_dtype: optional storage dtype for the x / out HBM traffic (e.g.
    jnp.bfloat16).  The kernel is HBM-bandwidth bound, so bf16 I/O ~halves
    wall clock on v6e/v7x; accumulation stays f32 in-kernel.  Default keeps
    x.dtype (PyTorch module semantics).
    """
    N, C, H, W = x.shape
    HW = H * W
    HP, WP = H + 2 * _PAD, W + 2 * _PAD

    if io_dtype is not None:
        x = x.astype(io_dtype)
    x_flat = x.reshape(N, C, HW)              # free in XLA: row-major bitcast
    dt = x_flat.dtype
    itemsize = dt.itemsize

    # Fold the 1/C of the channel mean into the avg-branch weights (channel 0
    # of the PyTorch conv weight is the avg branch, channel 1 the max branch).
    w = conv_w.reshape(2, _K * _K).astype(jnp.float32)
    w_sum = w[0] * (1.0 / C)                  # (49,)
    w_max = w[1]                              # (49,)
    b = conv_b.reshape(1).astype(jnp.float32)

    # C-chunk size for the in-kernel reduce / multiply loops (bounds live
    # ranges to ~512 KiB of f32 so big blocks don't spill the vreg file).
    CB = _largest_divisor_leq(C, max(1, (512 * 1024) // (HW * 4)))

    # Images per grid step: target ~2 MiB of input per step, but keep >= 2
    # grid steps when possible so both v7x TensorCores get work.
    per_image = C * HW * itemsize
    Bn = _largest_divisor_leq(N, max(1, (2 << 20) // per_image))
    if N // Bn < 2 and Bn > 1:
        Bn = _largest_divisor_leq(N, Bn - 1)

    def vmem_need(bn):
        blk = _padded_vmem_bytes((bn, C, HW), itemsize)
        scratch = (2 * _padded_vmem_bytes((bn, HP, WP), 4)
                   + 2 * _padded_vmem_bytes((_K, bn, HP, W), 4)
                   + _padded_vmem_bytes((bn, 1, HW), 4))
        return 2 * 2 * blk + scratch + (1 << 20)   # double-buffered in + out

    budget = (_vmem_capacity_bytes() * 3) // 4     # headroom for compiler scratch
    while vmem_need(Bn) > budget and Bn > 1:
        Bn = _largest_divisor_leq(N, Bn - 1)
    # TODO(synk): if C*HW is so large that even Bn=1 exceeds the VMEM budget
    # (v7x: 64 MiB/core), this needs a C-tiled two-phase reduce-then-multiply
    # grid; not required at the sizes this module is used with.
    vmem_limit = int(min(max(vmem_need(Bn), 8 << 20), budget))

    cost = pl.CostEstimate(
        flops=int(N * HW * (3 * C + 4 * _K * _K + 2)),
        transcendentals=int(N * HW),
        bytes_accessed=int(2 * N * per_image + (2 * _K * _K + 1) * 4),
    )

    out_flat = pl.pallas_call(
        functools.partial(_spatial_attention_kernel, H=H, W=W, CB=CB),
        out_shape=jax.ShapeDtypeStruct((N, C, HW), dt),
        grid_spec=pltpu.PrefetchScalarGridSpec(
            num_scalar_prefetch=0,
            grid=(N // Bn,),
            in_specs=[
                pl.BlockSpec((Bn, C, HW), lambda n: (n, 0, 0)),
                pl.BlockSpec(memory_space=pltpu.MemorySpace.SMEM),
                pl.BlockSpec(memory_space=pltpu.MemorySpace.SMEM),
                pl.BlockSpec(memory_space=pltpu.MemorySpace.SMEM),
            ],
            out_specs=pl.BlockSpec((Bn, C, HW), lambda n: (n, 0, 0)),
            scratch_shapes=[
                pltpu.VMEM((Bn, HP, WP), jnp.float32),      # padded sum maps
                pltpu.VMEM((Bn, HP, WP), jnp.float32),      # padded max maps
                pltpu.VMEM((_K, Bn, HP, W), jnp.float32),   # lane-shifted sum
                pltpu.VMEM((_K, Bn, HP, W), jnp.float32),   # lane-shifted max
                pltpu.VMEM((Bn, 1, HW), jnp.float32),       # flat attention map
            ],
        ),
        compiler_params=pltpu.CompilerParams(
            dimension_semantics=("parallel",),
            vmem_limit_bytes=vmem_limit),
        cost_estimate=cost,
    )(x_flat, w_sum, w_max, b)

    return out_flat.reshape(N, C, H, W)


def spatial_attention_ref(x, conv_w, conv_b):
    """Pure-JAX reference (matches the PyTorch forward)."""
    avg = jnp.mean(x, axis=1, keepdims=True)
    mx = jnp.max(x, axis=1, keepdims=True)
    out = jnp.concatenate([avg, mx], axis=1)              # (N, 2, H, W)
    conv = jax.lax.conv_general_dilated(
        out, conv_w, window_strides=(1, 1), padding=[(3, 3), (3, 3)],
        dimension_numbers=("NCHW", "OIHW", "NCHW"))
    conv = conv + conv_b.reshape(1, 1, 1, 1)
    return jax.nn.sigmoid(conv) * x


if __name__ == "__main__":
    key = jax.random.PRNGKey(0)
    kx, kwt, kb = jax.random.split(key, 3)

    N, C, H, W = 2, 4, 16, 16
    x = jax.random.normal(kx, (N, C, H, W), dtype=jnp.float32)

    # Deterministic "synthetic" Conv2d(2, 1, 7, padding=3) parameters.
    fan_in = 2 * 7 * 7
    bound = 1.0 / (fan_in ** 0.5)
    conv_w = jax.random.uniform(kwt, (1, 2, 7, 7), jnp.float32, -bound, bound)
    conv_b = jax.random.uniform(kb, (1,), jnp.float32, -bound, bound)

    ref = spatial_attention_ref(x, conv_w, conv_b)

    # f32 path: exact module semantics.
    out = jax.block_until_ready(spatial_attention(x, conv_w, conv_b))
    assert out.shape == (N, C, H, W) and out.dtype == x.dtype
    assert jnp.allclose(out, ref, atol=1e-5, rtol=1e-5), "f32 mismatch vs reference"

    # bf16 I/O path: halves HBM traffic (the dominant cost); f32 accumulation
    # inside the kernel.  Loose tolerance accounts for bf16 storage rounding.
    out_bf16 = jax.block_until_ready(
        spatial_attention(x, conv_w, conv_b, io_dtype=jnp.bfloat16))
    assert out_bf16.dtype == jnp.bfloat16
    assert jnp.allclose(out_bf16.astype(jnp.float32), ref, atol=5e-2, rtol=5e-2), \
        "bf16 mismatch vs reference"

    print("KERNEL_OK")
</pallas_src>

<mosaic_0001>
module attributes {stable_mosaic.version = 11 : i64} {
  func.func @_spatial_attention_kernel(%arg0: i32, %arg1: memref<1x4x256xf32, #tpu.memory_space<vmem>>, %arg2: memref<49xf32, #tpu.memory_space<smem>>, %arg3: memref<49xf32, #tpu.memory_space<smem>>, %arg4: memref<1xf32, #tpu.memory_space<smem>>, %arg5: memref<1x4x256xf32, #tpu.memory_space<vmem>>, %arg6: memref<1x22x22xf32, #tpu.memory_space<vmem>>, %arg7: memref<1x22x22xf32, #tpu.memory_space<vmem>>, %arg8: memref<7x1x22x16xf32, #tpu.memory_space<vmem>>, %arg9: memref<7x1x22x16xf32, #tpu.memory_space<vmem>>, %arg10: memref<1x1x256xf32, #tpu.memory_space<vmem>>) attributes {dimension_semantics = [#tpu.dimension_semantics<parallel>], iteration_bounds = array<i64: 2>, scalar_prefetch = 0 : i64, scratch_operands = 5 : i64, tpu.core_type = #tpu.core_type<tc>, window_params = [{transform_indices = @transform_0, window_bounds = array<i64: 1, 4, 256>}, {transform_indices = @transform_1, window_bounds = array<i64: 49>}, {transform_indices = @transform_2, window_bounds = array<i64: 49>}, {transform_indices = @transform_3, window_bounds = array<i64: 1>}, {transform_indices = @transform_4, window_bounds = array<i64: 1, 4, 256>}]} {
    %c0 = arith.constant 0 : index
    %c0_0 = arith.constant 0 : index
    %c0_1 = arith.constant 0 : index
    %0 = vector.load %arg1[%c0, %c0_0, %c0_1] : memref<1x4x256xf32, #tpu.memory_space<vmem>>, vector<1x4x256xf32>
    %cst = arith.constant dense<0.000000e+00> : vector<1x256xf32>
    %1 = vector.multi_reduction <add>, %0, %cst [1] : vector<1x4x256xf32> to vector<1x256xf32>
    %2 = vector.shape_cast %1 : vector<1x256xf32> to vector<1x1x256xf32>
    %cst_2 = arith.constant dense<0xFF800000> : vector<1x256xf32>
    %3 = vector.multi_reduction <maximumf>, %0, %cst_2 [1] : vector<1x4x256xf32> to vector<1x256xf32>
    %4 = vector.shape_cast %3 : vector<1x256xf32> to vector<1x1x256xf32>
    %cst_3 = arith.constant 0.000000e+00 : f32
    %5 = vector.broadcast %cst_3 : f32 to vector<1x3x22xf32>
    %c0_4 = arith.constant 0 : index
    %c0_5 = arith.constant 0 : index
    %c0_6 = arith.constant 0 : index
    %6 = vector.load %arg6[%c0_4, %c0_5, %c0_6] : memref<1x22x22xf32, #tpu.memory_space<vmem>>, vector<1x3x22xf32>
    tpu.vector_store %arg6[%c0_4, %c0_5, %c0_6], %5 {strides = array<i32>} : memref<1x22x22xf32, #tpu.memory_space<vmem>>, vector<1x3x22xf32>,
    %cst_7 = arith.constant 0.000000e+00 : f32
    %7 = vector.broadcast %cst_7 : f32 to vector<1x3x22xf32>
    %c0_8 = arith.constant 0 : index
    %c19 = arith.constant 19 : index
    %c0_9 = arith.constant 0 : index
    %8 = vector.load %arg6[%c0_8, %c19, %c0_9] : memref<1x22x22xf32, #tpu.memory_space<vmem>>, vector<1x3x22xf32>
    tpu.vector_store %arg6[%c0_8, %c19, %c0_9], %7 {strides = array<i32>} : memref<1x22x22xf32, #tpu.memory_space<vmem>>, vector<1x3x22xf32>,
    %cst_10 = arith.constant 0.000000e+00 : f32
    %9 = vector.broadcast %cst_10 : f32 to vector<1x16x3xf32>
    %c0_11 = arith.constant 0 : index
    %c3 = arith.constant 3 : index
    %c0_12 = arith.constant 0 : index
    %10 = vector.load %arg6[%c0_11, %c3, %c0_12] : memref<1x22x22xf32, #tpu.memory_space<vmem>>, vector<1x16x3xf32>
    tpu.vector_store %arg6[%c0_11, %c3, %c0_12], %9 {strides = array<i32>} : memref<1x22x22xf32, #tpu.memory_space<vmem>>, vector<1x16x3xf32>,
    %cst_13 = arith.constant 0.000000e+00 : f32
    %11 = vector.broadcast %cst_13 : f32 to vector<1x16x3xf32>
    %c0_14 = arith.constant 0 : index
    %c3_15 = arith.constant 3 : index
    %c19_16 = arith.constant 19 : index
    %12 = vector.load %arg6[%c0_14, %c3_15, %c19_16] : memref<1x22x22xf32, #tpu.memory_space<vmem>>, vector<1x16x3xf32>
    tpu.vector_store %arg6[%c0_14, %c3_15, %c19_16], %11 {strides = array<i32>} : memref<1x22x22xf32, #tpu.memory_space<vmem>>, vector<1x16x3xf32>,
    %cst_17 = arith.constant 0.000000e+00 : f32
    %13 = vector.broadcast %cst_17 : f32 to vector<1x3x22xf32>
    %c0_18 = arith.constant 0 : index
    %c0_19 = arith.constant 0 : index
    %c0_20 = arith.constant 0 : index
    %14 = vector.load %arg7[%c0_18, %c0_19, %c0_20] : memref<1x22x22xf32, #tpu.memory_space<vmem>>, vector<1x3x22xf32>
    tpu.vector_store %arg7[%c0_18, %c0_19, %c0_20], %13 {strides = array<i32>} : memref<1x22x22xf32, #tpu.memory_space<vmem>>, vector<1x3x22xf32>,
    %cst_21 = arith.constant 0.000000e+00 : f32
    %15 = vector.broadcast %cst_21 : f32 to vector<1x3x22xf32>
    %c0_22 = arith.constant 0 : index
    %c19_23 = arith.constant 19 : index
    %c0_24 = arith.constant 0 : index
    %16 = vector.load %arg7[%c0_22, %c19_23, %c0_24] : memref<1x22x22xf32, #tpu.memory_space<vmem>>, vector<1x3x22xf32>
    tpu.vector_store %arg7[%c0_22, %c19_23, %c0_24], %15 {strides = array<i32>} : memref<1x22x22xf32, #tpu.memory_space<vmem>>, vector<1x3x22xf32>,
    %cst_25 = arith.constant 0.000000e+00 : f32
    %17 = vector.broadcast %cst_25 : f32 to vector<1x16x3xf32>
    %c0_26 = arith.constant 0 : index
    %c3_27 = arith.constant 3 : index
    %c0_28 = arith.constant 0 : index
    %18 = vector.load %arg7[%c0_26, %c3_27, %c0_28] : memref<1x22x22xf32, #tpu.memory_space<vmem>>, vector<1x16x3xf32>
    tpu.vector_store %arg7[%c0_26, %c3_27, %c0_28], %17 {strides = array<i32>} : memref<1x22x22xf32, #tpu.memory_space<vmem>>, vector<1x16x3xf32>,
    %cst_29 = arith.constant 0.000000e+00 : f32
    %19 = vector.broadcast %cst_29 : f32 to vector<1x16x3xf32>
    %c0_30 = arith.constant 0 : index
    %c3_31 = arith.constant 3 : index
    %c19_32 = arith.constant 19 : index
    %20 = vector.load %arg7[%c0_30, %c3_31, %c19_32] : memref<1x22x22xf32, #tpu.memory_space<vmem>>, vector<1x16x3xf32>
    tpu.vector_store %arg7[%c0_30, %c3_31, %c19_32], %19 {strides = array<i32>} : memref<1x22x22xf32, #tpu.memory_space<vmem>>, vector<1x16x3xf32>,
    %21 = vector.extract_strided_slice %2 {offsets = [0, 0, 0], sizes = [1, 1, 16], strides = [1, 1, 1]} : vector<1x1x256xf32> to vector<1x1x16xf32>
    %c0_33 = arith.constant 0 : index
    %c3_34 = arith.constant 3 : index
    %c3_35 = arith.constant 3 : index
    %22 = vector.load %arg6[%c0_33, %c3_34, %c3_35] : memref<1x22x22xf32, #tpu.memory_space<vmem>>, vector<1x1x16xf32>
    tpu.vector_store %arg6[%c0_33, %c3_34, %c3_35], %21 {strides = array<i32>} : memref<1x22x22xf32, #tpu.memory_space<vmem>>, vector<1x1x16xf32>,
    %23 = vector.extract_strided_slice %4 {offsets = [0, 0, 0], sizes = [1, 1, 16], strides = [1, 1, 1]} : vector<1x1x256xf32> to vector<1x1x16xf32>
    %c0_36 = arith.constant 0 : index
    %c3_37 = arith.constant 3 : index
    %c3_38 = arith.constant 3 : index
    %24 = vector.load %arg7[%c0_36, %c3_37, %c3_38] : memref<1x22x22xf32, #tpu.memory_space<vmem>>, vector<1x1x16xf32>
    tpu.vector_store %arg7[%c0_36, %c3_37, %c3_38], %23 {strides = array<i32>} : memref<1x22x22xf32, #tpu.memory_space<vmem>>, vector<1x1x16xf32>,
    %25 = vector.extract_strided_slice %2 {offsets = [0, 0, 16], sizes = [1, 1, 16], strides = [1, 1, 1]} : vector<1x1x256xf32> to vector<1x1x16xf32>
    %c0_39 = arith.constant 0 : index
    %c4 = arith.constant 4 : index
    %c3_40 = arith.constant 3 : index
    %26 = vector.load %arg6[%c0_39, %c4, %c3_40] : memref<1x22x22xf32, #tpu.memory_space<vmem>>, vector<1x1x16xf32>
    tpu.vector_store %arg6[%c0_39, %c4, %c3_40], %25 {strides = array<i32>} : memref<1x22x22xf32, #tpu.memory_space<vmem>>, vector<1x1x16xf32>,
    %27 = vector.extract_strided_slice %4 {offsets = [0, 0, 16], sizes = [1, 1, 16], strides = [1, 1, 1]} : vector<1x1x256xf32> to vector<1x1x16xf32>
    %c0_41 = arith.constant 0 : index
    %c4_42 = arith.constant 4 : index
    %c3_43 = arith.constant 3 : index
    %28 = vector.load %arg7[%c0_41, %c4_42, %c3_43] : memref<1x22x22xf32, #tpu.memory_space<vmem>>, vector<1x1x16xf32>
    tpu.vector_store %arg7[%c0_41, %c4_42, %c3_43], %27 {strides = array<i32>} : memref<1x22x22xf32, #tpu.memory_space<vmem>>, vector<1x1x16xf32>,
    %29 = vector.extract_strided_slice %2 {offsets = [0, 0, 32], sizes = [1, 1, 16], strides = [1, 1, 1]} : vector<1x1x256xf32> to vector<1x1x16xf32>
    %c0_44 = arith.constant 0 : index
    %c5 = arith.constant 5 : index
    %c3_45 = arith.constant 3 : index
    %30 = vector.load %arg6[%c0_44, %c5, %c3_45] : memref<1x22x22xf32, #tpu.memory_space<vmem>>, vector<1x1x16xf32>
    tpu.vector_store %arg6[%c0_44, %c5, %c3_45], %29 {strides = array<i32>} : memref<1x22x22xf32, #tpu.memory_space<vmem>>, vector<1x1x16xf32>,
    %31 = vector.extract_strided_slice %4 {offsets = [0, 0, 32], sizes = [1, 1, 16], strides = [1, 1, 1]} : vector<1x1x256xf32> to vector<1x1x16xf32>
    %c0_46 = arith.constant 0 : index
    %c5_47 = arith.constant 5 : index
    %c3_48 = arith.constant 3 : index
    %32 = vector.load %arg7[%c0_46, %c5_47, %c3_48] : memref<1x22x22xf32, #tpu.memory_space<vmem>>, vector<1x1x16xf32>
    tpu.vector_store %arg7[%c0_46, %c5_47, %c3_48], %31 {strides = array<i32>} : memref<1x22x22xf32, #tpu.memory_space<vmem>>, vector<1x1x16xf32>,
    %33 = vector.extract_strided_slice %2 {offsets = [0, 0, 48], sizes = [1, 1, 16], strides = [1, 1, 1]} : vector<1x1x256xf32> to vector<1x1x16xf32>
    %c0_49 = arith.constant 0 : index
    %c6 = arith.constant 6 : index
    %c3_50 = arith.constant 3 : index
    %34 = vector.load %arg6[%c0_49, %c6, %c3_50] : memref<1x22x22xf32, #tpu.memory_space<vmem>>, vector<1x1x16xf32>
    tpu.vector_store %arg6[%c0_49, %c6, %c3_50], %33 {strides = array<i32>} : memref<1x22x22xf32, #tpu.memory_space<vmem>>, vector<1x1x16xf32>,
    %35 = vector.extract_strided_slice %4 {offsets = [0, 0, 48], sizes = [1, 1, 16], strides = [1, 1, 1]} : vector<1x1x256xf32> to vector<1x1x16xf32>
    %c0_51 = arith.constant 0 : index
    %c6_52 = arith.constant 6 : index
    %c3_53 = arith.constant 3 : index
    %36 = vector.load %arg7[%c0_51, %c6_52, %c3_53] : memref<1x22x22xf32, #tpu.memory_space<vmem>>, vector<1x1x16xf32>
    tpu.vector_store %arg7[%c0_51, %c6_52, %c3_53], %35 {strides = array<i32>} : memref<1x22x22xf32, #tpu.memory_space<vmem>>, vector<1x1x16xf32>,
    %37 = vector.extract_strided_slice %2 {offsets = [0, 0, 64], sizes = [1, 1, 16], strides = [1, 1, 1]} : vector<1x1x256xf32> to vector<1x1x16xf32>
    %c0_54 = arith.constant 0 : index
    %c7 = arith.constant 7 : index
    %c3_55 = arith.constant 3 : index
    %38 = vector.load %arg6[%c0_54, %c7, %c3_55] : memref<1x22x22xf32, #tpu.memory_space<vmem>>, vector<1x1x16xf32>
    tpu.vector_store %arg6[%c0_54, %c7, %c3_55], %37 {strides = array<i32>} : memref<1x22x22xf32, #tpu.memory_space<vmem>>, vector<1x1x16xf32>,
    %39 = vector.extract_strided_slice %4 {offsets = [0, 0, 64], sizes = [1, 1, 16], strides = [1, 1, 1]} : vector<1x1x256xf32> to vector<1x1x16xf32>
    %c0_56 = arith.constant 0 : index
    %c7_57 = arith.constant 7 : index
    %c3_58 = arith.constant 3 : index
    %40 = vector.load %arg7[%c0_56, %c7_57, %c3_58] : memref<1x22x22xf32, #tpu.memory_space<vmem>>, vector<1x1x16xf32>
    tpu.vector_store %arg7[%c0_56, %c7_57, %c3_58], %39 {strides = array<i32>} : memref<1x22x22xf32, #tpu.memory_space<vmem>>, vector<1x1x16xf32>,
    %41 = vector.extract_strided_slice %2 {offsets = [0, 0, 80], sizes = [1, 1, 16], strides = [1, 1, 1]} : vector<1x1x256xf32> to vector<1x1x16xf32>
    %c0_59 = arith.constant 0 : index
    %c8 = arith.constant 8 : index
    %c3_60 = arith.constant 3 : index
    %42 = vector.load %arg6[%c0_59, %c8, %c3_60] : memref<1x22x22xf32, #tpu.memory_space<vmem>>, vector<1x1x16xf32>
    tpu.vector_store %arg6[%c0_59, %c8, %c3_60], %41 {strides = array<i32>} : memref<1x22x22xf32, #tpu.memory_space<vmem>>, vector<1x1x16xf32>,
    %43 = vector.extract_strided_slice %4 {offsets = [0, 0, 80], sizes = [1, 1, 16], strides = [1, 1, 1]} : vector<1x1x256xf32> to vector<1x1x16xf32>
    %c0_61 = arith.constant 0 : index
    %c8_62 = arith.constant 8 : index
    %c3_63 = arith.constant 3 : index
    %44 = vector.load %arg7[%c0_61, %c8_62, %c3_63] : memref<1x22x22xf32, #tpu.memory_space<vmem>>, vector<1x1x16xf32>
    tpu.vector_store %arg7[%c0_61, %c8_62, %c3_63], %43 {strides = array<i32>} : memref<1x22x22xf32, #tpu.memory_space<vmem>>, vector<1x1x16xf32>,
    %45 = vector.extract_strided_slice %2 {offsets = [0, 0, 96], sizes = [1, 1, 16], strides = [1, 1, 1]} : vector<1x1x256xf32> to vector<1x1x16xf32>
    %c0_64 = arith.constant 0 : index
    %c9 = arith.constant 9 : index
    %c3_65 = arith.constant 3 : index
    %46 = vector.load %arg6[%c0_64, %c9, %c3_65] : memref<1x22x22xf32, #tpu.memory_space<vmem>>, vector<1x1x16xf32>
    tpu.vector_store %arg6[%c0_64, %c9, %c3_65], %45 {strides = array<i32>} : memref<1x22x22xf32, #tpu.memory_space<vmem>>, vector<1x1x16xf32>,
    %47 = vector.extract_strided_slice %4 {offsets = [0, 0, 96], sizes = [1, 1, 16], strides = [1, 1, 1]} : vector<1x1x256xf32> to vector<1x1x16xf32>
    %c0_66 = arith.constant 0 : index
    %c9_67 = arith.constant 9 : index
    %c3_68 = arith.constant 3 : index
    %48 = vector.load %arg7[%c0_66, %c9_67, %c3_68] : memref<1x22x22xf32, #tpu.memory_space<vmem>>, vector<1x1x16xf32>
    tpu.vector_store %arg7[%c0_66, %c9_67, %c3_68], %47 {strides = array<i32>} : memref<1x22x22xf32, #tpu.memory_space<vmem>>, vector<1x1x16xf32>,
    %49 = vector.extract_strided_slice %2 {offsets = [0, 0, 112], sizes = [1, 1, 16], strides = [1, 1, 1]} : vector<1x1x256xf32> to vector<1x1x16xf32>
    %c0_69 = arith.constant 0 : index
    %c10 = arith.constant 10 : index
    %c3_70 = arith.constant 3 : index
    %50 = vector.load %arg6[%c0_69, %c10, %c3_70] : memref<1x22x22xf32, #tpu.memory_space<vmem>>, vector<1x1x16xf32>
    tpu.vector_store %arg6[%c0_69, %c10, %c3_70], %49 {strides = array<i32>} : memref<1x22x22xf32, #tpu.memory_space<vmem>>, vector<1x1x16xf32>,
    %51 = vector.extract_strided_slice %4 {offsets = [0, 0, 112], sizes = [1, 1, 16], strides = [1, 1, 1]} : vector<1x1x256xf32> to vector<1x1x16xf32>
    %c0_71 = arith.constant 0 : index
    %c10_72 = arith.constant 10 : index
    %c3_73 = arith.constant 3 : index
    %52 = vector.load %arg7[%c0_71, %c10_72, %c3_73] : memref<1x22x22xf32, #tpu.memory_space<vmem>>, vector<1x1x16xf32>
    tpu.vector_store %arg7[%c0_71, %c10_72, %c3_73], %51 {strides = array<i32>} : memref<1x22x22xf32, #tpu.memory_space<vmem>>, vector<1x1x16xf32>,
    %53 = vector.extract_strided_slice %2 {offsets = [0, 0, 128], sizes = [1, 1, 16], strides = [1, 1, 1]} : vector<1x1x256xf32> to vector<1x1x16xf32>
    %c0_74 = arith.constant 0 : index
    %c11 = arith.constant 11 : index
    %c3_75 = arith.constant 3 : index
    %54 = vector.load %arg6[%c0_74, %c11, %c3_75] : memref<1x22x22xf32, #tpu.memory_space<vmem>>, vector<1x1x16xf32>
    tpu.vector_store %arg6[%c0_74, %c11, %c3_75], %53 {strides = array<i32>} : memref<1x22x22xf32, #tpu.memory_space<vmem>>, vector<1x1x16xf32>,
    %55 = vector.extract_strided_slice %4 {offsets = [0, 0, 128], sizes = [1, 1, 16], strides = [1, 1, 1]} : vector<1x1x256xf32> to vector<1x1x16xf32>
    %c0_76 = arith.constant 0 : index
    %c11_77 = arith.constant 11 : index
    %c3_78 = arith.constant 3 : index
    %56 = vector.load %arg7[%c0_76, %c11_77, %c3_78] : memref<1x22x22xf32, #tpu.memory_space<vmem>>, vector<1x1x16xf32>
    tpu.vector_store %arg7[%c0_76, %c11_77, %c3_78], %55 {strides = array<i32>} : memref<1x22x22xf32, #tpu.memory_space<vmem>>, vector<1x1x16xf32>,
    %57 = vector.extract_strided_slice %2 {offsets = [0, 0, 144], sizes = [1, 1, 16], strides = [1, 1, 1]} : vector<1x1x256xf32> to vector<1x1x16xf32>
    %c0_79 = arith.constant 0 : index
    %c12 = arith.constant 12 : index
    %c3_80 = arith.constant 3 : index
    %58 = vector.load %arg6[%c0_79, %c12, %c3_80] : memref<1x22x22xf32, #tpu.memory_space<vmem>>, vector<1x1x16xf32>
    tpu.vector_store %arg6[%c0_79, %c12, %c3_80], %57 {strides = array<i32>} : memref<1x22x22xf32, #tpu.memory_space<vmem>>, vector<1x1x16xf32>,
    %59 = vector.extract_strided_slice %4 {offsets = [0, 0, 144], sizes = [1, 1, 16], strides = [1, 1, 1]} : vector<1x1x256xf32> to vector<1x1x16xf32>
    %c0_81 = arith.constant 0 : index
    %c12_82 = arith.constant 12 : index
    %c3_83 = arith.constant 3 : index
    %60 = vector.load %arg7[%c0_81, %c12_82, %c3_83] : memref<1x22x22xf32, #tpu.memory_space<vmem>>, vector<1x1x16xf32>
    tpu.vector_store %arg7[%c0_81, %c12_82, %c3_83], %59 {strides = array<i32>} : memref<1x22x22xf32, #tpu.memory_space<vmem>>, vector<1x1x16xf32>,
    %61 = vector.extract_strided_slice %2 {offsets = [0, 0, 160], sizes = [1, 1, 16], strides = [1, 1, 1]} : vector<1x1x256xf32> to vector<1x1x16xf32>
    %c0_84 = arith.constant 0 : index
    %c13 = arith.constant 13 : index
    %c3_85 = arith.constant 3 : index
    %62 = vector.load %arg6[%c0_84, %c13, %c3_85] : memref<1x22x22xf32, #tpu.memory_space<vmem>>, vector<1x1x16xf32>
    tpu.vector_store %arg6[%c0_84, %c13, %c3_85], %61 {strides = array<i32>} : memref<1x22x22xf32, #tpu.memory_space<vmem>>, vector<1x1x16xf32>,
    %63 = vector.extract_strided_slice %4 {offsets = [0, 0, 160], sizes = [1, 1, 16], strides = [1, 1, 1]} : vector<1x1x256xf32> to vector<1x1x16xf32>
    %c0_86 = arith.constant 0 : index
    %c13_87 = arith.constant 13 : index
    %c3_88 = arith.constant 3 : index
    %64 = vector.load %arg7[%c0_86, %c13_87, %c3_88] : memref<1x22x22xf32, #tpu.memory_space<vmem>>, vector<1x1x16xf32>
    tpu.vector_store %arg7[%c0_86, %c13_87, %c3_88], %63 {strides = array<i32>} : memref<1x22x22xf32, #tpu.memory_space<vmem>>, vector<1x1x16xf32>,
    %65 = vector.extract_strided_slice %2 {offsets = [0, 0, 176], sizes = [1, 1, 16], strides = [1, 1, 1]} : vector<1x1x256xf32> to vector<1x1x16xf32>
    %c0_89 = arith.constant 0 : index
    %c14 = arith.constant 14 : index
    %c3_90 = arith.constant 3 : index
    %66 = vector.load %arg6[%c0_89, %c14, %c3_90] : memref<1x22x22xf32, #tpu.memory_space<vmem>>, vector<1x1x16xf32>
    tpu.vector_store %arg6[%c0_89, %c14, %c3_90], %65 {strides = array<i32>} : memref<1x22x22xf32, #tpu.memory_space<vmem>>, vector<1x1x16xf32>,
    %67 = vector.extract_strided_slice %4 {offsets = [0, 0, 176], sizes = [1, 1, 16], strides = [1, 1, 1]} : vector<1x1x256xf32> to vector<1x1x16xf32>
    %c0_91 = arith.constant 0 : index
    %c14_92 = arith.constant 14 : index
    %c3_93 = arith.constant 3 : index
    %68 = vector.load %arg7[%c0_91, %c14_92, %c3_93] : memref<1x22x22xf32, #tpu.memory_space<vmem>>, vector<1x1x16xf32>
    tpu.vector_store %arg7[%c0_91, %c14_92, %c3_93], %67 {strides = array<i32>} : memref<1x22x22xf32, #tpu.memory_space<vmem>>, vector<1x1x16xf32>,
    %69 = vector.extract_strided_slice %2 {offsets = [0, 0, 192], sizes = [1, 1, 16], strides = [1, 1, 1]} : vector<1x1x256xf32> to vector<1x1x16xf32>
    %c0_94 = arith.constant 0 : index
    %c15 = arith.constant 15 : index
    %c3_95 = arith.constant 3 : index
    %70 = vector.load %arg6[%c0_94, %c15, %c3_95] : memref<1x22x22xf32, #tpu.memory_space<vmem>>, vector<1x1x16xf32>
    tpu.vector_store %arg6[%c0_94, %c15, %c3_95], %69 {strides = array<i32>} : memref<1x22x22xf32, #tpu.memory_space<vmem>>, vector<1x1x16xf32>,
    %71 = vector.extract_strided_slice %4 {offsets = [0, 0, 192], sizes = [1, 1, 16], strides = [1, 1, 1]} : vector<1x1x256xf32> to vector<1x1x16xf32>
    %c0_96 = arith.constant 0 : index
    %c15_97 = arith.constant 15 : index
    %c3_98 = arith.constant 3 : index
    %72 = vector.load %arg7[%c0_96, %c15_97, %c3_98] : memref<1x22x22xf32, #tpu.memory_space<vmem>>, vector<1x1x16xf32>
    tpu.vector_store %arg7[%c0_96, %c15_97, %c3_98], %71 {strides = array<i32>} : memref<1x22x22xf32, #tpu.memory_space<vmem>>, vector<1x1x16xf32>,
    %73 = vector.extract_strided_slice %2 {offsets = [0, 0, 208], sizes = [1, 1, 16], strides = [1, 1, 1]} : vector<1x1x256xf32> to vector<1x1x16xf32>
    %c0_99 = arith.constant 0 : index
    %c16 = arith.constant 16 : index
    %c3_100 = arith.constant 3 : index
    %74 = vector.load %arg6[%c0_99, %c16, %c3_100] : memref<1x22x22xf32, #tpu.memory_space<vmem>>, vector<1x1x16xf32>
    tpu.vector_store %arg6[%c0_99, %c16, %c3_100], %73 {strides = array<i32>} : memref<1x22x22xf32, #tpu.memory_space<vmem>>, vector<1x1x16xf32>,
    %75 = vector.extract_strided_slice %4 {offsets = [0, 0, 208], sizes = [1, 1, 16], strides = [1, 1, 1]} : vector<1x1x256xf32> to vector<1x1x16xf32>
    %c0_101 = arith.constant 0 : index
    %c16_102 = arith.constant 16 : index
    %c3_103 = arith.constant 3 : index
    %76 = vector.load %arg7[%c0_101, %c16_102, %c3_103] : memref<1x22x22xf32, #tpu.memory_space<vmem>>, vector<1x1x16xf32>
    tpu.vector_store %arg7[%c0_101, %c16_102, %c3_103], %75 {strides = array<i32>} : memref<1x22x22xf32, #tpu.memory_space<vmem>>, vector<1x1x16xf32>,
    %77 = vector.extract_strided_slice %2 {offsets = [0, 0, 224], sizes = [1, 1, 16], strides = [1, 1, 1]} : vector<1x1x256xf32> to vector<1x1x16xf32>
    %c0_104 = arith.constant 0 : index
    %c17 = arith.constant 17 : index
    %c3_105 = arith.constant 3 : index
    %78 = vector.load %arg6[%c0_104, %c17, %c3_105] : memref<1x22x22xf32, #tpu.memory_space<vmem>>, vector<1x1x16xf32>
    tpu.vector_store %arg6[%c0_104, %c17, %c3_105], %77 {strides = array<i32>} : memref<1x22x22xf32, #tpu.memory_space<vmem>>, vector<1x1x16xf32>,
    %79 = vector.extract_strided_slice %4 {offsets = [0, 0, 224], sizes = [1, 1, 16], strides = [1, 1, 1]} : vector<1x1x256xf32> to vector<1x1x16xf32>
    %c0_106 = arith.constant 0 : index
    %c17_107 = arith.constant 17 : index
    %c3_108 = arith.constant 3 : index
    %80 = vector.load %arg7[%c0_106, %c17_107, %c3_108] : memref<1x22x22xf32, #tpu.memory_space<vmem>>, vector<1x1x16xf32>
    tpu.vector_store %arg7[%c0_106, %c17_107, %c3_108], %79 {strides = array<i32>} : memref<1x22x22xf32, #tpu.memory_space<vmem>>, vector<1x1x16xf32>,
    %81 = vector.extract_strided_slice %2 {offsets = [0, 0, 240], sizes = [1, 1, 16], strides = [1, 1, 1]} : vector<1x1x256xf32> to vector<1x1x16xf32>
    %c0_109 = arith.constant 0 : index
    %c18 = arith.constant 18 : index
    %c3_110 = arith.constant 3 : index
    %82 = vector.load %arg6[%c0_109, %c18, %c3_110] : memref<1x22x22xf32, #tpu.memory_space<vmem>>, vector<1x1x16xf32>
    tpu.vector_store %arg6[%c0_109, %c18, %c3_110], %81 {strides = array<i32>} : memref<1x22x22xf32, #tpu.memory_space<vmem>>, vector<1x1x16xf32>,
    %83 = vector.extract_strided_slice %4 {offsets = [0, 0, 240], sizes = [1, 1, 16], strides = [1, 1, 1]} : vector<1x1x256xf32> to vector<1x1x16xf32>
    %c0_111 = arith.constant 0 : index
    %c18_112 = arith.constant 18 : index
    %c3_113 = arith.constant 3 : index
    %84 = vector.load %arg7[%c0_111, %c18_112, %c3_113] : memref<1x22x22xf32, #tpu.memory_space<vmem>>, vector<1x1x16xf32>
    tpu.vector_store %arg7[%c0_111, %c18_112, %c3_113], %83 {strides = array<i32>} : memref<1x22x22xf32, #tpu.memory_space<vmem>>, vector<1x1x16xf32>,
    %c0_114 = arith.constant 0 : index
    %c0_115 = arith.constant 0 : index
    %c0_116 = arith.constant 0 : index
    %85 = vector.load %arg6[%c0_114, %c0_115, %c0_116] : memref<1x22x22xf32, #tpu.memory_space<vmem>>, vector<1x22x16xf32>
    %c0_117 = arith.constant 0 : index
    %c0_118 = arith.constant 0 : index
    %c0_119 = arith.constant 0 : index
    %c0_120 = arith.constant 0 : index
    %86 = vector.load %arg8[%c0_117, %c0_118, %c0_119, %c0_120] : memref<7x1x22x16xf32, #tpu.memory_space<vmem>>, vector<1x1x22x16xf32>
    %87 = vector.shape_cast %86 : vector<1x1x22x16xf32> to vector<1x22x16xf32>
    %88 = vector.shape_cast %85 : vector<1x22x16xf32> to vector<1x1x22x16xf32>
    tpu.vector_store %arg8[%c0_117, %c0_118, %c0_119, %c0_120], %88 {strides = array<i32>} : memref<7x1x22x16xf32, #tpu.memory_space<vmem>>, vector<1x1x22x16xf32>,
    %c0_121 = arith.constant 0 : index
    %c0_122 = arith.constant 0 : index
    %c0_123 = arith.constant 0 : index
    %89 = vector.load %arg7[%c0_121, %c0_122, %c0_123] : memref<1x22x22xf32, #tpu.memory_space<vmem>>, vector<1x22x16xf32>
    %c0_124 = arith.constant 0 : index
    %c0_125 = arith.constant 0 : index
    %c0_126 = arith.constant 0 : index
    %c0_127 = arith.constant 0 : index
    %90 = vector.load %arg9[%c0_124, %c0_125, %c0_126, %c0_127] : memref<7x1x22x16xf32, #tpu.memory_space<vmem>>, vector<1x1x22x16xf32>
    %91 = vector.shape_cast %90 : vector<1x1x22x16xf32> to vector<1x22x16xf32>
    %92 = vector.shape_cast %89 : vector<1x22x16xf32> to vector<1x1x22x16xf32>
    tpu.vector_store %arg9[%c0_124, %c0_125, %c0_126, %c0_127], %92 {strides = array<i32>} : memref<7x1x22x16xf32, #tpu.memory_space<vmem>>, vector<1x1x22x16xf32>,
    %c0_128 = arith.constant 0 : index
    %c0_129 = arith.constant 0 : index
    %c1 = arith.constant 1 : index
    %93 = vector.load %arg6[%c0_128, %c0_129, %c1] : memref<1x22x22xf32, #tpu.memory_space<vmem>>, vector<1x22x16xf32>
    %c1_130 = arith.constant 1 : index
    %c0_131 = arith.constant 0 : index
    %c0_132 = arith.constant 0 : index
    %c0_133 = arith.constant 0 : index
    %94 = vector.load %arg8[%c1_130, %c0_131, %c0_132, %c0_133] : memref<7x1x22x16xf32, #tpu.memory_space<vmem>>, vector<1x1x22x16xf32>
    %95 = vector.shape_cast %94 : vector<1x1x22x16xf32> to vector<1x22x16xf32>
    %96 = vector.shape_cast %93 : vector<1x22x16xf32> to vector<1x1x22x16xf32>
    tpu.vector_store %arg8[%c1_130, %c0_131, %c0_132, %c0_133], %96 {strides = array<i32>} : memref<7x1x22x16xf32, #tpu.memory_space<vmem>>, vector<1x1x22x16xf32>,
    %c0_134 = arith.constant 0 : index
    %c0_135 = arith.constant 0 : index
    %c1_136 = arith.constant 1 : index
    %97 = vector.load %arg7[%c0_134, %c0_135, %c1_136] : memref<1x22x22xf32, #tpu.memory_space<vmem>>, vector<1x22x16xf32>
    %c1_137 = arith.constant 1 : index
    %c0_138 = arith.constant 0 : index
    %c0_139 = arith.constant 0 : index
    %c0_140 = arith.constant 0 : index
    %98 = vector.load %arg9[%c1_137, %c0_138, %c0_139, %c0_140] : memref<7x1x22x16xf32, #tpu.memory_space<vmem>>, vector<1x1x22x16xf32>
    %99 = vector.shape_cast %98 : vector<1x1x22x16xf32> to vector<1x22x16xf32>
    %100 = vector.shape_cast %97 : vector<1x22x16xf32> to vector<1x1x22x16xf32>
    tpu.vector_store %arg9[%c1_137, %c0_138, %c0_139, %c0_140], %100 {strides = array<i32>} : memref<7x1x22x16xf32, #tpu.memory_space<vmem>>, vector<1x1x22x16xf32>,
    %c0_141 = arith.constant 0 : index
    %c0_142 = arith.constant 0 : index
    %c2 = arith.constant 2 : index
    %101 = vector.load %arg6[%c0_141, %c0_142, %c2] : memref<1x22x22xf32, #tpu.memory_space<vmem>>, vector<1x22x16xf32>
    %c2_143 = arith.constant 2 : index
    %c0_144 = arith.constant 0 : index
    %c0_145 = arith.constant 0 : index
    %c0_146 = arith.constant 0 : index
    %102 = vector.load %arg8[%c2_143, %c0_144, %c0_145, %c0_146] : memref<7x1x22x16xf32, #tpu.memory_space<vmem>>, vector<1x1x22x16xf32>
    %103 = vector.shape_cast %102 : vector<1x1x22x16xf32> to vector<1x22x16xf32>
    %104 = vector.shape_cast %101 : vector<1x22x16xf32> to vector<1x1x22x16xf32>
    tpu.vector_store %arg8[%c2_143, %c0_144, %c0_145, %c0_146], %104 {strides = array<i32>} : memref<7x1x22x16xf32, #tpu.memory_space<vmem>>, vector<1x1x22x16xf32>,
    %c0_147 = arith.constant 0 : index
    %c0_148 = arith.constant 0 : index
    %c2_149 = arith.constant 2 : index
    %105 = vector.load %arg7[%c0_147, %c0_148, %c2_149] : memref<1x22x22xf32, #tpu.memory_space<vmem>>, vector<1x22x16xf32>
    %c2_150 = arith.constant 2 : index
    %c0_151 = arith.constant 0 : index
    %c0_152 = arith.constant 0 : index
    %c0_153 = arith.constant 0 : index
    %106 = vector.load %arg9[%c2_150, %c0_151, %c0_152, %c0_153] : memref<7x1x22x16xf32, #tpu.memory_space<vmem>>, vector<1x1x22x16xf32>
    %107 = vector.shape_cast %106 : vector<1x1x22x16xf32> to vector<1x22x16xf32>
    %108 = vector.shape_cast %105 : vector<1x22x16xf32> to vector<1x1x22x16xf32>
    tpu.vector_store %arg9[%c2_150, %c0_151, %c0_152, %c0_153], %108 {strides = array<i32>} : memref<7x1x22x16xf32, #tpu.memory_space<vmem>>, vector<1x1x22x16xf32>,
    %c0_154 = arith.constant 0 : index
    %c0_155 = arith.constant 0 : index
    %c3_156 = arith.constant 3 : index
    %109 = vector.load %arg6[%c0_154, %c0_155, %c3_156] : memref<1x22x22xf32, #tpu.memory_space<vmem>>, vector<1x22x16xf32>
    %c3_157 = arith.constant 3 : index
    %c0_158 = arith.constant 0 : index
    %c0_159 = arith.constant 0 : index
    %c0_160 = arith.constant 0 : index
    %110 = vector.load %arg8[%c3_157, %c0_158, %c0_159, %c0_160] : memref<7x1x22x16xf32, #tpu.memory_space<vmem>>, vector<1x1x22x16xf32>
    %111 = vector.shape_cast %110 : vector<1x1x22x16xf32> to vector<1x22x16xf32>
    %112 = vector.shape_cast %109 : vector<1x22x16xf32> to vector<1x1x22x16xf32>
    tpu.vector_store %arg8[%c3_157, %c0_158, %c0_159, %c0_160], %112 {strides = array<i32>} : memref<7x1x22x16xf32, #tpu.memory_space<vmem>>, vector<1x1x22x16xf32>,
    %c0_161 = arith.constant 0 : index
    %c0_162 = arith.constant 0 : index
    %c3_163 = arith.constant 3 : index
    %113 = vector.load %arg7[%c0_161, %c0_162, %c3_163] : memref<1x22x22xf32, #tpu.memory_space<vmem>>, vector<1x22x16xf32>
    %c3_164 = arith.constant 3 : index
    %c0_165 = arith.constant 0 : index
    %c0_166 = arith.constant 0 : index
    %c0_167 = arith.constant 0 : index
    %114 = vector.load %arg9[%c3_164, %c0_165, %c0_166, %c0_167] : memref<7x1x22x16xf32, #tpu.memory_space<vmem>>, vector<1x1x22x16xf32>
    %115 = vector.shape_cast %114 : vector<1x1x22x16xf32> to vector<1x22x16xf32>
    %116 = vector.shape_cast %113 : vector<1x22x16xf32> to vector<1x1x22x16xf32>
    tpu.vector_store %arg9[%c3_164, %c0_165, %c0_166, %c0_167], %116 {strides = array<i32>} : memref<7x1x22x16xf32, #tpu.memory_space<vmem>>, vector<1x1x22x16xf32>,
    %c0_168 = arith.constant 0 : index
    %c0_169 = arith.constant 0 : index
    %c4_170 = arith.constant 4 : index
    %117 = vector.load %arg6[%c0_168, %c0_169, %c4_170] : memref<1x22x22xf32, #tpu.memory_space<vmem>>, vector<1x22x16xf32>
    %c4_171 = arith.constant 4 : index
    %c0_172 = arith.constant 0 : index
    %c0_173 = arith.constant 0 : index
    %c0_174 = arith.constant 0 : index
    %118 = vector.load %arg8[%c4_171, %c0_172, %c0_173, %c0_174] : memref<7x1x22x16xf32, #tpu.memory_space<vmem>>, vector<1x1x22x16xf32>
    %119 = vector.shape_cast %118 : vector<1x1x22x16xf32> to vector<1x22x16xf32>
    %120 = vector.shape_cast %117 : vector<1x22x16xf32> to vector<1x1x22x16xf32>
    tpu.vector_store %arg8[%c4_171, %c0_172, %c0_173, %c0_174], %120 {strides = array<i32>} : memref<7x1x22x16xf32, #tpu.memory_space<vmem>>, vector<1x1x22x16xf32>,
    %c0_175 = arith.constant 0 : index
    %c0_176 = arith.constant 0 : index
    %c4_177 = arith.constant 4 : index
    %121 = vector.load %arg7[%c0_175, %c0_176, %c4_177] : memref<1x22x22xf32, #tpu.memory_space<vmem>>, vector<1x22x16xf32>
    %c4_178 = arith.constant 4 : index
    %c0_179 = arith.constant 0 : index
    %c0_180 = arith.constant 0 : index
    %c0_181 = arith.constant 0 : index
    %122 = vector.load %arg9[%c4_178, %c0_179, %c0_180, %c0_181] : memref<7x1x22x16xf32, #tpu.memory_space<vmem>>, vector<1x1x22x16xf32>
    %123 = vector.shape_cast %122 : vector<1x1x22x16xf32> to vector<1x22x16xf32>
    %124 = vector.shape_cast %121 : vector<1x22x16xf32> to vector<1x1x22x16xf32>
    tpu.vector_store %arg9[%c4_178, %c0_179, %c0_180, %c0_181], %124 {strides = array<i32>} : memref<7x1x22x16xf32, #tpu.memory_space<vmem>>, vector<1x1x22x16xf32>,
    %c0_182 = arith.constant 0 : index
    %c0_183 = arith.constant 0 : index
    %c5_184 = arith.constant 5 : index
    %125 = vector.load %arg6[%c0_182, %c0_183, %c5_184] : memref<1x22x22xf32, #tpu.memory_space<vmem>>, vector<1x22x16xf32>
    %c5_185 = arith.constant 5 : index
    %c0_186 = arith.constant 0 : index
    %c0_187 = arith.constant 0 : index
    %c0_188 = arith.constant 0 : index
    %126 = vector.load %arg8[%c5_185, %c0_186, %c0_187, %c0_188] : memref<7x1x22x16xf32, #tpu.memory_space<vmem>>, vector<1x1x22x16xf32>
    %127 = vector.shape_cast %126 : vector<1x1x22x16xf32> to vector<1x22x16xf32>
    %128 = vector.shape_cast %125 : vector<1x22x16xf32> to vector<1x1x22x16xf32>
    tpu.vector_store %arg8[%c5_185, %c0_186, %c0_187, %c0_188], %128 {strides = array<i32>} : memref<7x1x22x16xf32, #tpu.memory_space<vmem>>, vector<1x1x22x16xf32>,
    %c0_189 = arith.constant 0 : index
    %c0_190 = arith.constant 0 : index
    %c5_191 = arith.constant 5 : index
    %129 = vector.load %arg7[%c0_189, %c0_190, %c5_191] : memref<1x22x22xf32, #tpu.memory_space<vmem>>, vector<1x22x16xf32>
    %c5_192 = arith.constant 5 : index
    %c0_193 = arith.constant 0 : index
    %c0_194 = arith.constant 0 : index
    %c0_195 = arith.constant 0 : index
    %130 = vector.load %arg9[%c5_192, %c0_193, %c0_194, %c0_195] : memref<7x1x22x16xf32, #tpu.memory_space<vmem>>, vector<1x1x22x16xf32>
    %131 = vector.shape_cast %130 : vector<1x1x22x16xf32> to vector<1x22x16xf32>
    %132 = vector.shape_cast %129 : vector<1x22x16xf32> to vector<1x1x22x16xf32>
    tpu.vector_store %arg9[%c5_192, %c0_193, %c0_194, %c0_195], %132 {strides = array<i32>} : memref<7x1x22x16xf32, #tpu.memory_space<vmem>>, vector<1x1x22x16xf32>,
    %c0_196 = arith.constant 0 : index
    %c0_197 = arith.constant 0 : index
    %c6_198 = arith.constant 6 : index
    %133 = vector.load %arg6[%c0_196, %c0_197, %c6_198] : memref<1x22x22xf32, #tpu.memory_space<vmem>>, vector<1x22x16xf32>
    %c6_199 = arith.constant 6 : index
    %c0_200 = arith.constant 0 : index
    %c0_201 = arith.constant 0 : index
    %c0_202 = arith.constant 0 : index
    %134 = vector.load %arg8[%c6_199, %c0_200, %c0_201, %c0_202] : memref<7x1x22x16xf32, #tpu.memory_space<vmem>>, vector<1x1x22x16xf32>
    %135 = vector.shape_cast %134 : vector<1x1x22x16xf32> to vector<1x22x16xf32>
    %136 = vector.shape_cast %133 : vector<1x22x16xf32> to vector<1x1x22x16xf32>
    tpu.vector_store %arg8[%c6_199, %c0_200, %c0_201, %c0_202], %136 {strides = array<i32>} : memref<7x1x22x16xf32, #tpu.memory_space<vmem>>, vector<1x1x22x16xf32>,
    %c0_203 = arith.constant 0 : index
    %c0_204 = arith.constant 0 : index
    %c6_205 = arith.constant 6 : index
    %137 = vector.load %arg7[%c0_203, %c0_204, %c6_205] : memref<1x22x22xf32, #tpu.memory_space<vmem>>, vector<1x22x16xf32>
    %c6_206 = arith.constant 6 : index
    %c0_207 = arith.constant 0 : index
    %c0_208 = arith.constant 0 : index
    %c0_209 = arith.constant 0 : index
    %138 = vector.load %arg9[%c6_206, %c0_207, %c0_208, %c0_209] : memref<7x1x22x16xf32, #tpu.memory_space<vmem>>, vector<1x1x22x16xf32>
    %139 = vector.shape_cast %138 : vector<1x1x22x16xf32> to vector<1x22x16xf32>
    %140 = vector.shape_cast %137 : vector<1x22x16xf32> to vector<1x1x22x16xf32>
    tpu.vector_store %arg9[%c6_206, %c0_207, %c0_208, %c0_209], %140 {strides = array<i32>} : memref<7x1x22x16xf32, #tpu.memory_space<vmem>>, vector<1x1x22x16xf32>,
    %cst_210 = arith.constant 0.000000e+00 : f32
    %141 = vector.broadcast %cst_210 : f32 to vector<1x16x16xf32>
    %cst_211 = arith.constant 0.000000e+00 : f32
    %142 = vector.broadcast %cst_211 : f32 to vector<1x16x16xf32>
    %cst_212 = arith.constant 0.000000e+00 : f32
    %143 = vector.broadcast %cst_212 : f32 to vector<1x16x16xf32>
    %cst_213 = arith.constant 0.000000e+00 : f32
    %144 = vector.broadcast %cst_213 : f32 to vector<1x16x16xf32>
    %c0_214 = arith.constant 0 : index
    %c0_215 = arith.constant 0 : index
    %c0_216 = arith.constant 0 : index
    %c0_217 = arith.constant 0 : index
    %145 = vector.load %arg8[%c0_214, %c0_215, %c0_216, %c0_217] : memref<7x1x22x16xf32, #tpu.memory_space<vmem>>, vector<1x1x16x16xf32>
    %146 = vector.shape_cast %145 : vector<1x1x16x16xf32> to vector<1x16x16xf32>
    %c0_218 = arith.constant 0 : index
    %147 = memref.load %arg2[%c0_218] : memref<49xf32, #tpu.memory_space<smem>>
    %148 = vector.broadcast %147 : f32 to vector<1x16x16xf32>
    %149 = arith.mulf %146, %148 : vector<1x16x16xf32>
    %150 = arith.addf %141, %149 : vector<1x16x16xf32>
    %c0_219 = arith.constant 0 : index
    %c0_220 = arith.constant 0 : index
    %c0_221 = arith.constant 0 : index
    %c0_222 = arith.constant 0 : index
    %151 = vector.load %arg9[%c0_219, %c0_220, %c0_221, %c0_222] : memref<7x1x22x16xf32, #tpu.memory_space<vmem>>, vector<1x1x16x16xf32>
    %152 = vector.shape_cast %151 : vector<1x1x16x16xf32> to vector<1x16x16xf32>
    %c0_223 = arith.constant 0 : index
    %153 = memref.load %arg3[%c0_223] : memref<49xf32, #tpu.memory_space<smem>>
    %154 = vector.broadcast %153 : f32 to vector<1x16x16xf32>
    %155 = arith.mulf %152, %154 : vector<1x16x16xf32>
    %156 = arith.addf %142, %155 : vector<1x16x16xf32>
    %c1_224 = arith.constant 1 : index
    %c0_225 = arith.constant 0 : index
    %c0_226 = arith.constant 0 : index
    %c0_227 = arith.constant 0 : index
    %157 = vector.load %arg8[%c1_224, %c0_225, %c0_226, %c0_227] : memref<7x1x22x16xf32, #tpu.memory_space<vmem>>, vector<1x1x16x16xf32>
    %158 = vector.shape_cast %157 : vector<1x1x16x16xf32> to vector<1x16x16xf32>
    %c1_228 = arith.constant 1 : index
    %159 = memref.load %arg2[%c1_228] : memref<49xf32, #tpu.memory_space<smem>>
    %160 = vector.broadcast %159 : f32 to vector<1x16x16xf32>
    %161 = arith.mulf %158, %160 : vector<1x16x16xf32>
    %162 = arith.addf %143, %161 : vector<1x16x16xf32>
    %c1_229 = arith.constant 1 : index
    %c0_230 = arith.constant 0 : index
    %c0_231 = arith.constant 0 : index
    %c0_232 = arith.constant 0 : index
    %163 = vector.load %arg9[%c1_229, %c0_230, %c0_231, %c0_232] : memref<7x1x22x16xf32, #tpu.memory_space<vmem>>, vector<1x1x16x16xf32>
    %164 = vector.shape_cast %163 : vector<1x1x16x16xf32> to vector<1x16x16xf32>
    %c1_233 = arith.constant 1 : index
    %165 = memref.load %arg3[%c1_233] : memref<49xf32, #tpu.memory_space<smem>>
    %166 = vector.broadcast %165 : f32 to vector<1x16x16xf32>
    %167 = arith.mulf %164, %166 : vector<1x16x16xf32>
    %168 = arith.addf %144, %167 : vector<1x16x16xf32>
    %c2_234 = arith.constant 2 : index
    %c0_235 = arith.constant 0 : index
    %c0_236 = arith.constant 0 : index
    %c0_237 = arith.constant 0 : index
    %169 = vector.load %arg8[%c2_234, %c0_235, %c0_236, %c0_237] : memref<7x1x22x16xf32, #tpu.memory_space<vmem>>, vector<1x1x16x16xf32>
    %170 = vector.shape_cast %169 : vector<1x1x16x16xf32> to vector<1x16x16xf32>
    %c2_238 = arith.constant 2 : index
    %171 = memref.load %arg2[%c2_238] : memref<49xf32, #tpu.memory_space<smem>>
    %172 = vector.broadcast %171 : f32 to vector<1x16x16xf32>
    %173 = arith.mulf %170, %172 : vector<1x16x16xf32>
    %174 = arith.addf %150, %173 : vector<1x16x16xf32>
    %c2_239 = arith.constant 2 : index
    %c0_240 = arith.constant 0 : index
    %c0_241 = arith.constant 0 : index
    %c0_242 = arith.constant 0 : index
    %175 = vector.load %arg9[%c2_239, %c0_240, %c0_241, %c0_242] : memref<7x1x22x16xf32, #tpu.memory_space<vmem>>, vector<1x1x16x16xf32>
    %176 = vector.shape_cast %175 : vector<1x1x16x16xf32> to vector<1x16x16xf32>
    %c2_243 = arith.constant 2 : index
    %177 = memref.load %arg3[%c2_243] : memref<49xf32, #tpu.memory_space<smem>>
    %178 = vector.broadcast %177 : f32 to vector<1x16x16xf32>
    %179 = arith.mulf %176, %178 : vector<1x16x16xf32>
    %180 = arith.addf %156, %179 : vector<1x16x16xf32>
    %c3_244 = arith.constant 3 : index
    %c0_245 = arith.constant 0 : index
    %c0_246 = arith.constant 0 : index
    %c0_247 = arith.constant 0 : index
    %181 = vector.load %arg8[%c3_244, %c0_245, %c0_246, %c0_247] : memref<7x1x22x16xf32, #tpu.memory_space<vmem>>, vector<1x1x16x16xf32>
    %182 = vector.shape_cast %181 : vector<1x1x16x16xf32> to vector<1x16x16xf32>
    %c3_248 = arith.constant 3 : index
    %183 = memref.load %arg2[%c3_248] : memref<49xf32, #tpu.memory_space<smem>>
    %184 = vector.broadcast %183 : f32 to vector<1x16x16xf32>
    %185 = arith.mulf %182, %184 : vector<1x16x16xf32>
    %186 = arith.addf %162, %185 : vector<1x16x16xf32>
    %c3_249 = arith.constant 3 : index
    %c0_250 = arith.constant 0 : index
    %c0_251 = arith.constant 0 : index
    %c0_252 = arith.constant 0 : index
    %187 = vector.load %arg9[%c3_249, %c0_250, %c0_251, %c0_252] : memref<7x1x22x16xf32, #tpu.memory_space<vmem>>, vector<1x1x16x16xf32>
    %188 = vector.shape_cast %187 : vector<1x1x16x16xf32> to vector<1x16x16xf32>
    %c3_253 = arith.constant 3 : index
    %189 = memref.load %arg3[%c3_253] : memref<49xf32, #tpu.memory_space<smem>>
    %190 = vector.broadcast %189 : f32 to vector<1x16x16xf32>
    %191 = arith.mulf %188, %190 : vector<1x16x16xf32>
    %192 = arith.addf %168, %191 : vector<1x16x16xf32>
    %c4_254 = arith.constant 4 : index
    %c0_255 = arith.constant 0 : index
    %c0_256 = arith.constant 0 : index
    %c0_257 = arith.constant 0 : index
    %193 = vector.load %arg8[%c4_254, %c0_255, %c0_256, %c0_257] : memref<7x1x22x16xf32, #tpu.memory_space<vmem>>, vector<1x1x16x16xf32>
    %194 = vector.shape_cast %193 : vector<1x1x16x16xf32> to vector<1x16x16xf32>
    %c4_258 = arith.constant 4 : index
    %195 = memref.load %arg2[%c4_258] : memref<49xf32, #tpu.memory_space<smem>>
    %196 = vector.broadcast %195 : f32 to vector<1x16x16xf32>
    %197 = arith.mulf %194, %196 : vector<1x16x16xf32>
    %198 = arith.addf %174, %197 : vector<1x16x16xf32>
    %c4_259 = arith.constant 4 : index
    %c0_260 = arith.constant 0 : index
    %c0_261 = arith.constant 0 : index
    %c0_262 = arith.constant 0 : index
    %199 = vector.load %arg9[%c4_259, %c0_260, %c0_261, %c0_262] : memref<7x1x22x16xf32, #tpu.memory_space<vmem>>, vector<1x1x16x16xf32>
    %200 = vector.shape_cast %199 : vector<1x1x16x16xf32> to vector<1x16x16xf32>
    %c4_263 = arith.constant 4 : index
    %201 = memref.load %arg3[%c4_263] : memref<49xf32, #tpu.memory_space<smem>>
    %202 = vector.broadcast %201 : f32 to vector<1x16x16xf32>
    %203 = arith.mulf %200, %202 : vector<1x16x16xf32>
    %204 = arith.addf %180, %203 : vector<1x16x16xf32>
    %c5_264 = arith.constant 5 : index
    %c0_265 = arith.constant 0 : index
    %c0_266 = arith.constant 0 : index
    %c0_267 = arith.constant 0 : index
    %205 = vector.load %arg8[%c5_264, %c0_265, %c0_266, %c0_267] : memref<7x1x22x16xf32, #tpu.memory_space<vmem>>, vector<1x1x16x16xf32>
    %206 = vector.shape_cast %205 : vector<1x1x16x16xf32> to vector<1x16x16xf32>
    %c5_268 = arith.constant 5 : index
    %207 = memref.load %arg2[%c5_268] : memref<49xf32, #tpu.memory_space<smem>>
    %208 = vector.broadcast %207 : f32 to vector<1x16x16xf32>
    %209 = arith.mulf %206, %208 : vector<1x16x16xf32>
    %210 = arith.addf %186, %209 : vector<1x16x16xf32>
    %c5_269 = arith.constant 5 : index
    %c0_270 = arith.constant 0 : index
    %c0_271 = arith.constant 0 : index
    %c0_272 = arith.constant 0 : index
    %211 = vector.load %arg9[%c5_269, %c0_270, %c0_271, %c0_272] : memref<7x1x22x16xf32, #tpu.memory_space<vmem>>, vector<1x1x16x16xf32>
    %212 = vector.shape_cast %211 : vector<1x1x16x16xf32> to vector<1x16x16xf32>
    %c5_273 = arith.constant 5 : index
    %213 = memref.load %arg3[%c5_273] : memref<49xf32, #tpu.memory_space<smem>>
    %214 = vector.broadcast %213 : f32 to vector<1x16x16xf32>
    %215 = arith.mulf %212, %214 : vector<1x16x16xf32>
    %216 = arith.addf %192, %215 : vector<1x16x16xf32>
    %c6_274 = arith.constant 6 : index
    %c0_275 = arith.constant 0 : index
    %c0_276 = arith.constant 0 : index
    %c0_277 = arith.constant 0 : index
    %217 = vector.load %arg8[%c6_274, %c0_275, %c0_276, %c0_277] : memref<7x1x22x16xf32, #tpu.memory_space<vmem>>, vector<1x1x16x16xf32>
    %218 = vector.shape_cast %217 : vector<1x1x16x16xf32> to vector<1x16x16xf32>
    %c6_278 = arith.constant 6 : index
    %219 = memref.load %arg2[%c6_278] : memref<49xf32, #tpu.memory_space<smem>>
    %220 = vector.broadcast %219 : f32 to vector<1x16x16xf32>
    %221 = arith.mulf %218, %220 : vector<1x16x16xf32>
    %222 = arith.addf %198, %221 : vector<1x16x16xf32>
    %c6_279 = arith.constant 6 : index
    %c0_280 = arith.constant 0 : index
    %c0_281 = arith.constant 0 : index
    %c0_282 = arith.constant 0 : index
    %223 = vector.load %arg9[%c6_279, %c0_280, %c0_281, %c0_282] : memref<7x1x22x16xf32, #tpu.memory_space<vmem>>, vector<1x1x16x16xf32>
    %224 = vector.shape_cast %223 : vector<1x1x16x16xf32> to vector<1x16x16xf32>
    %c6_283 = arith.constant 6 : index
    %225 = memref.load %arg3[%c6_283] : memref<49xf32, #tpu.memory_space<smem>>
    %226 = vector.broadcast %225 : f32 to vector<1x16x16xf32>
    %227 = arith.mulf %224, %226 : vector<1x16x16xf32>
    %228 = arith.addf %204, %227 : vector<1x16x16xf32>
    %c0_284 = arith.constant 0 : index
    %c0_285 = arith.constant 0 : index
    %c1_286 = arith.constant 1 : index
    %c0_287 = arith.constant 0 : index
    %229 = vector.load %arg8[%c0_284, %c0_285, %c1_286, %c0_287] : memref<7x1x22x16xf32, #tpu.memory_space<vmem>>, vector<1x1x16x16xf32>
    %230 = vector.shape_cast %229 : vector<1x1x16x16xf32> to vector<1x16x16xf32>
    %c7_288 = arith.constant 7 : index
    %231 = memref.load %arg2[%c7_288] : memref<49xf32, #tpu.memory_space<smem>>
    %232 = vector.broadcast %231 : f32 to vector<1x16x16xf32>
    %233 = arith.mulf %230, %232 : vector<1x16x16xf32>
    %234 = arith.addf %210, %233 : vector<1x16x16xf32>
    %c0_289 = arith.constant 0 : index
    %c0_290 = arith.constant 0 : index
    %c1_291 = arith.constant 1 : index
    %c0_292 = arith.constant 0 : index
    %235 = vector.load %arg9[%c0_289, %c0_290, %c1_291, %c0_292] : memref<7x1x22x16xf32, #tpu.memory_space<vmem>>, vector<1x1x16x16xf32>
    %236 = vector.shape_cast %235 : vector<1x1x16x16xf32> to vector<1x16x16xf32>
    %c7_293 = arith.constant 7 : index
    %237 = memref.load %arg3[%c7_293] : memref<49xf32, #tpu.memory_space<smem>>
    %238 = vector.broadcast %237 : f32 to vector<1x16x16xf32>
    %239 = arith.mulf %236, %238 : vector<1x16x16xf32>
    %240 = arith.addf %216, %239 : vector<1x16x16xf32>
    %c1_294 = arith.constant 1 : index
    %c0_295 = arith.constant 0 : index
    %c1_296 = arith.constant 1 : index
    %c0_297 = arith.constant 0 : index
    %241 = vector.load %arg8[%c1_294, %c0_295, %c1_296, %c0_297] : memref<7x1x22x16xf32, #tpu.memory_space<vmem>>, vector<1x1x16x16xf32>
    %242 = vector.shape_cast %241 : vector<1x1x16x16xf32> to vector<1x16x16xf32>
    %c8_298 = arith.constant 8 : index
    %243 = memref.load %arg2[%c8_298] : memref<49xf32, #tpu.memory_space<smem>>
    %244 = vector.broadcast %243 : f32 to vector<1x16x16xf32>
    %245 = arith.mulf %242, %244 : vector<1x16x16xf32>
    %246 = arith.addf %222, %245 : vector<1x16x16xf32>
    %c1_299 = arith.constant 1 : index
    %c0_300 = arith.constant 0 : index
    %c1_301 = arith.constant 1 : index
    %c0_302 = arith.constant 0 : index
    %247 = vector.load %arg9[%c1_299, %c0_300, %c1_301, %c0_302] : memref<7x1x22x16xf32, #tpu.memory_space<vmem>>, vector<1x1x16x16xf32>
    %248 = vector.shape_cast %247 : vector<1x1x16x16xf32> to vector<1x16x16xf32>
    %c8_303 = arith.constant 8 : index
    %249 = memref.load %arg3[%c8_303] : memref<49xf32, #tpu.memory_space<smem>>
    %250 = vector.broadcast %249 : f32 to vector<1x16x16xf32>
    %251 = arith.mulf %248, %250 : vector<1x16x16xf32>
    %252 = arith.addf %228, %251 : vector<1x16x16xf32>
    %c2_304 = arith.constant 2 : index
    %c0_305 = arith.constant 0 : index
    %c1_306 = arith.constant 1 : index
    %c0_307 = arith.constant 0 : index
    %253 = vector.load %arg8[%c2_304, %c0_305, %c1_306, %c0_307] : memref<7x1x22x16xf32, #tpu.memory_space<vmem>>, vector<1x1x16x16xf32>
    %254 = vector.shape_cast %253 : vector<1x1x16x16xf32> to vector<1x16x16xf32>
    %c9_308 = arith.constant 9 : index
    %255 = memref.load %arg2[%c9_308] : memref<49xf32, #tpu.memory_space<smem>>
    %256 = vector.broadcast %255 : f32 to vector<1x16x16xf32>
    %257 = arith.mulf %254, %256 : vector<1x16x16xf32>
    %258 = arith.addf %234, %257 : vector<1x16x16xf32>
    %c2_309 = arith.constant 2 : index
    %c0_310 = arith.constant 0 : index
    %c1_311 = arith.constant 1 : index
    %c0_312 = arith.constant 0 : index
    %259 = vector.load %arg9[%c2_309, %c0_310, %c1_311, %c0_312] : memref<7x1x22x16xf32, #tpu.memory_space<vmem>>, vector<1x1x16x16xf32>
    %260 = vector.shape_cast %259 : vector<1x1x16x16xf32> to vector<1x16x16xf32>
    %c9_313 = arith.constant 9 : index
    %261 = memref.load %arg3[%c9_313] : memref<49xf32, #tpu.memory_space<smem>>
    %262 = vector.broadcast %261 : f32 to vector<1x16x16xf32>
    %263 = arith.mulf %260, %262 : vector<1x16x16xf32>
    %264 = arith.addf %240, %263 : vector<1x16x16xf32>
    %c3_314 = arith.constant 3 : index
    %c0_315 = arith.constant 0 : index
    %c1_316 = arith.constant 1 : index
    %c0_317 = arith.constant 0 : index
    %265 = vector.load %arg8[%c3_314, %c0_315, %c1_316, %c0_317] : memref<7x1x22x16xf32, #tpu.memory_space<vmem>>, vector<1x1x16x16xf32>
    %266 = vector.shape_cast %265 : vector<1x1x16x16xf32> to vector<1x16x16xf32>
    %c10_318 = arith.constant 10 : index
    %267 = memref.load %arg2[%c10_318] : memref<49xf32, #tpu.memory_space<smem>>
    %268 = vector.broadcast %267 : f32 to vector<1x16x16xf32>
    %269 = arith.mulf %266, %268 : vector<1x16x16xf32>
    %270 = arith.addf %246, %269 : vector<1x16x16xf32>
    %c3_319 = arith.constant 3 : index
    %c0_320 = arith.constant 0 : index
    %c1_321 = arith.constant 1 : index
    %c0_322 = arith.constant 0 : index
    %271 = vector.load %arg9[%c3_319, %c0_320, %c1_321, %c0_322] : memref<7x1x22x16xf32, #tpu.memory_space<vmem>>, vector<1x1x16x16xf32>
    %272 = vector.shape_cast %271 : vector<1x1x16x16xf32> to vector<1x16x16xf32>
    %c10_323 = arith.constant 10 : index
    %273 = memref.load %arg3[%c10_323] : memref<49xf32, #tpu.memory_space<smem>>
    %274 = vector.broadcast %273 : f32 to vector<1x16x16xf32>
    %275 = arith.mulf %272, %274 : vector<1x16x16xf32>
    %276 = arith.addf %252, %275 : vector<1x16x16xf32>
    %c4_324 = arith.constant 4 : index
    %c0_325 = arith.constant 0 : index
    %c1_326 = arith.constant 1 : index
    %c0_327 = arith.constant 0 : index
    %277 = vector.load %arg8[%c4_324, %c0_325, %c1_326, %c0_327] : memref<7x1x22x16xf32, #tpu.memory_space<vmem>>, vector<1x1x16x16xf32>
    %278 = vector.shape_cast %277 : vector<1x1x16x16xf32> to vector<1x16x16xf32>
    %c11_328 = arith.constant 11 : index
    %279 = memref.load %arg2[%c11_328] : memref<49xf32, #tpu.memory_space<smem>>
    %280 = vector.broadcast %279 : f32 to vector<1x16x16xf32>
    %281 = arith.mulf %278, %280 : vector<1x16x16xf32>
    %282 = arith.addf %258, %281 : vector<1x16x16xf32>
    %c4_329 = arith.constant 4 : index
    %c0_330 = arith.constant 0 : index
    %c1_331 = arith.constant 1 : index
    %c0_332 = arith.constant 0 : index
    %283 = vector.load %arg9[%c4_329, %c0_330, %c1_331, %c0_332] : memref<7x1x22x16xf32, #tpu.memory_space<vmem>>, vector<1x1x16x16xf32>
    %284 = vector.shape_cast %283 : vector<1x1x16x16xf32> to vector<1x16x16xf32>
    %c11_333 = arith.constant 11 : index
    %285 = memref.load %arg3[%c11_333] : memref<49xf32, #tpu.memory_space<smem>>
    %286 = vector.broadcast %285 : f32 to vector<1x16x16xf32>
    %287 = arith.mulf %284, %286 : vector<1x16x16xf32>
    %288 = arith.addf %264, %287 : vector<1x16x16xf32>
    %c5_334 = arith.constant 5 : index
    %c0_335 = arith.constant 0 : index
    %c1_336 = arith.constant 1 : index
    %c0_337 = arith.constant 0 : index
    %289 = vector.load %arg8[%c5_334, %c0_335, %c1_336, %c0_337] : memref<7x1x22x16xf32, #tpu.memory_space<vmem>>, vector<1x1x16x16xf32>
    %290 = vector.shape_cast %289 : vector<1x1x16x16xf32> to vector<1x16x16xf32>
    %c12_338 = arith.constant 12 : index
    %291 = memref.load %arg2[%c12_338] : memref<49xf32, #tpu.memory_space<smem>>
    %292 = vector.broadcast %291 : f32 to vector<1x16x16xf32>
    %293 = arith.mulf %290, %292 : vector<1x16x16xf32>
    %294 = arith.addf %270, %293 : vector<1x16x16xf32>
    %c5_339 = arith.constant 5 : index
    %c0_340 = arith.constant 0 : index
    %c1_341 = arith.constant 1 : index
    %c0_342 = arith.constant 0 : index
    %295 = vector.load %arg9[%c5_339, %c0_340, %c1_341, %c0_342] : memref<7x1x22x16xf32, #tpu.memory_space<vmem>>, vector<1x1x16x16xf32>
    %296 = vector.shape_cast %295 : vector<1x1x16x16xf32> to vector<1x16x16xf32>
    %c12_343 = arith.constant 12 : index
    %297 = memref.load %arg3[%c12_343] : memref<49xf32, #tpu.memory_space<smem>>
    %298 = vector.broadcast %297 : f32 to vector<1x16x16xf32>
    %299 = arith.mulf %296, %298 : vector<1x16x16xf32>
    %300 = arith.addf %276, %299 : vector<1x16x16xf32>
    %c6_344 = arith.constant 6 : index
    %c0_345 = arith.constant 0 : index
    %c1_346 = arith.constant 1 : index
    %c0_347 = arith.constant 0 : index
    %301 = vector.load %arg8[%c6_344, %c0_345, %c1_346, %c0_347] : memref<7x1x22x16xf32, #tpu.memory_space<vmem>>, vector<1x1x16x16xf32>
    %302 = vector.shape_cast %301 : vector<1x1x16x16xf32> to vector<1x16x16xf32>
    %c13_348 = arith.constant 13 : index
    %303 = memref.load %arg2[%c13_348] : memref<49xf32, #tpu.memory_space<smem>>
    %304 = vector.broadcast %303 : f32 to vector<1x16x16xf32>
    %305 = arith.mulf %302, %304 : vector<1x16x16xf32>
    %306 = arith.addf %282, %305 : vector<1x16x16xf32>
    %c6_349 = arith.constant 6 : index
    %c0_350 = arith.constant 0 : index
    %c1_351 = arith.constant 1 : index
    %c0_352 = arith.constant 0 : index
    %307 = vector.load %arg9[%c6_349, %c0_350, %c1_351, %c0_352] : memref<7x1x22x16xf32, #tpu.memory_space<vmem>>, vector<1x1x16x16xf32>
    %308 = vector.shape_cast %307 : vector<1x1x16x16xf32> to vector<1x16x16xf32>
    %c13_353 = arith.constant 13 : index
    %309 = memref.load %arg3[%c13_353] : memref<49xf32, #tpu.memory_space<smem>>
    %310 = vector.broadcast %309 : f32 to vector<1x16x16xf32>
    %311 = arith.mulf %308, %310 : vector<1x16x16xf32>
    %312 = arith.addf %288, %311 : vector<1x16x16xf32>
    %c0_354 = arith.constant 0 : index
    %c0_355 = arith.constant 0 : index
    %c2_356 = arith.constant 2 : index
    %c0_357 = arith.constant 0 : index
    %313 = vector.load %arg8[%c0_354, %c0_355, %c2_356, %c0_357] : memref<7x1x22x16xf32, #tpu.memory_space<vmem>>, vector<1x1x16x16xf32>
    %314 = vector.shape_cast %313 : vector<1x1x16x16xf32> to vector<1x16x16xf32>
    %c14_358 = arith.constant 14 : index
    %315 = memref.load %arg2[%c14_358] : memref<49xf32, #tpu.memory_space<smem>>
    %316 = vector.broadcast %315 : f32 to vector<1x16x16xf32>
    %317 = arith.mulf %314, %316 : vector<1x16x16xf32>
    %318 = arith.addf %294, %317 : vector<1x16x16xf32>
    %c0_359 = arith.constant 0 : index
    %c0_360 = arith.constant 0 : index
    %c2_361 = arith.constant 2 : index
    %c0_362 = arith.constant 0 : index
    %319 = vector.load %arg9[%c0_359, %c0_360, %c2_361, %c0_362] : memref<7x1x22x16xf32, #tpu.memory_space<vmem>>, vector<1x1x16x16xf32>
    %320 = vector.shape_cast %319 : vector<1x1x16x16xf32> to vector<1x16x16xf32>
    %c14_363 = arith.constant 14 : index
    %321 = memref.load %arg3[%c14_363] : memref<49xf32, #tpu.memory_space<smem>>
    %322 = vector.broadcast %321 : f32 to vector<1x16x16xf32>
    %323 = arith.mulf %320, %322 : vector<1x16x16xf32>
    %324 = arith.addf %300, %323 : vector<1x16x16xf32>
    %c1_364 = arith.constant 1 : index
    %c0_365 = arith.constant 0 : index
    %c2_366 = arith.constant 2 : index
    %c0_367 = arith.constant 0 : index
    %325 = vector.load %arg8[%c1_364, %c0_365, %c2_366, %c0_367] : memref<7x1x22x16xf32, #tpu.memory_space<vmem>>, vector<1x1x16x16xf32>
    %326 = vector.shape_cast %325 : vector<1x1x16x16xf32> to vector<1x16x16xf32>
    %c15_368 = arith.constant 15 : index
    %327 = memref.load %arg2[%c15_368] : memref<49xf32, #tpu.memory_space<smem>>
    %328 = vector.broadcast %327 : f32 to vector<1x16x16xf32>
    %329 = arith.mulf %326, %328 : vector<1x16x16xf32>
    %330 = arith.addf %306, %329 : vector<1x16x16xf32>
    %c1_369 = arith.constant 1 : index
    %c0_370 = arith.constant 0 : index
    %c2_371 = arith.constant 2 : index
    %c0_372 = arith.constant 0 : index
    %331 = vector.load %arg9[%c1_369, %c0_370, %c2_371, %c0_372] : memref<7x1x22x16xf32, #tpu.memory_space<vmem>>, vector<1x1x16x16xf32>
    %332 = vector.shape_cast %331 : vector<1x1x16x16xf32> to vector<1x16x16xf32>
    %c15_373 = arith.constant 15 : index
    %333 = memref.load %arg3[%c15_373] : memref<49xf32, #tpu.memory_space<smem>>
    %334 = vector.broadcast %333 : f32 to vector<1x16x16xf32>
    %335 = arith.mulf %332, %334 : vector<1x16x16xf32>
    %336 = arith.addf %312, %335 : vector<1x16x16xf32>
    %c2_374 = arith.constant 2 : index
    %c0_375 = arith.constant 0 : index
    %c2_376 = arith.constant 2 : index
    %c0_377 = arith.constant 0 : index
    %337 = vector.load %arg8[%c2_374, %c0_375, %c2_376, %c0_377] : memref<7x1x22x16xf32, #tpu.memory_space<vmem>>, vector<1x1x16x16xf32>
    %338 = vector.shape_cast %337 : vector<1x1x16x16xf32> to vector<1x16x16xf32>
    %c16_378 = arith.constant 16 : index
    %339 = memref.load %arg2[%c16_378] : memref<49xf32, #tpu.memory_space<smem>>
    %340 = vector.broadcast %339 : f32 to vector<1x16x16xf32>
    %341 = arith.mulf %338, %340 : vector<1x16x16xf32>
    %342 = arith.addf %318, %341 : vector<1x16x16xf32>
    %c2_379 = arith.constant 2 : index
    %c0_380 = arith.constant 0 : index
    %c2_381 = arith.constant 2 : index
    %c0_382 = arith.constant 0 : index
    %343 = vector.load %arg9[%c2_379, %c0_380, %c2_381, %c0_382] : memref<7x1x22x16xf32, #tpu.memory_space<vmem>>, vector<1x1x16x16xf32>
    %344 = vector.shape_cast %343 : vector<1x1x16x16xf32> to vector<1x16x16xf32>
    %c16_383 = arith.constant 16 : index
    %345 = memref.load %arg3[%c16_383] : memref<49xf32, #tpu.memory_space<smem>>
    %346 = vector.broadcast %345 : f32 to vector<1x16x16xf32>
    %347 = arith.mulf %344, %346 : vector<1x16x16xf32>
    %348 = arith.addf %324, %347 : vector<1x16x16xf32>
    %c3_384 = arith.constant 3 : index
    %c0_385 = arith.constant 0 : index
    %c2_386 = arith.constant 2 : index
    %c0_387 = arith.constant 0 : index
    %349 = vector.load %arg8[%c3_384, %c0_385, %c2_386, %c0_387] : memref<7x1x22x16xf32, #tpu.memory_space<vmem>>, vector<1x1x16x16xf32>
    %350 = vector.shape_cast %349 : vector<1x1x16x16xf32> to vector<1x16x16xf32>
    %c17_388 = arith.constant 17 : index
    %351 = memref.load %arg2[%c17_388] : memref<49xf32, #tpu.memory_space<smem>>
    %352 = vector.broadcast %351 : f32 to vector<1x16x16xf32>
    %353 = arith.mulf %350, %352 : vector<1x16x16xf32>
    %354 = arith.addf %330, %353 : vector<1x16x16xf32>
    %c3_389 = arith.constant 3 : index
    %c0_390 = arith.constant 0 : index
    %c2_391 = arith.constant 2 : index
    %c0_392 = arith.constant 0 : index
    %355 = vector.load %arg9[%c3_389, %c0_390, %c2_391, %c0_392] : memref<7x1x22x16xf32, #tpu.memory_space<vmem>>, vector<1x1x16x16xf32>
    %356 = vector.shape_cast %355 : vector<1x1x16x16xf32> to vector<1x16x16xf32>
    %c17_393 = arith.constant 17 : index
    %357 = memref.load %arg3[%c17_393] : memref<49xf32, #tpu.memory_space<smem>>
    %358 = vector.broadcast %357 : f32 to vector<1x16x16xf32>
    %359 = arith.mulf %356, %358 : vector<1x16x16xf32>
    %360 = arith.addf %336, %359 : vector<1x16x16xf32>
    %c4_394 = arith.constant 4 : index
    %c0_395 = arith.constant 0 : index
    %c2_396 = arith.constant 2 : index
    %c0_397 = arith.constant 0 : index
    %361 = vector.load %arg8[%c4_394, %c0_395, %c2_396, %c0_397] : memref<7x1x22x16xf32, #tpu.memory_space<vmem>>, vector<1x1x16x16xf32>
    %362 = vector.shape_cast %361 : vector<1x1x16x16xf32> to vector<1x16x16xf32>
    %c18_398 = arith.constant 18 : index
    %363 = memref.load %arg2[%c18_398] : memref<49xf32, #tpu.memory_space<smem>>
    %364 = vector.broadcast %363 : f32 to vector<1x16x16xf32>
    %365 = arith.mulf %362, %364 : vector<1x16x16xf32>
    %366 = arith.addf %342, %365 : vector<1x16x16xf32>
    %c4_399 = arith.constant 4 : index
    %c0_400 = arith.constant 0 : index
    %c2_401 = arith.constant 2 : index
    %c0_402 = arith.constant 0 : index
    %367 = vector.load %arg9[%c4_399, %c0_400, %c2_401, %c0_402] : memref<7x1x22x16xf32, #tpu.memory_space<vmem>>, vector<1x1x16x16xf32>
    %368 = vector.shape_cast %367 : vector<1x1x16x16xf32> to vector<1x16x16xf32>
    %c18_403 = arith.constant 18 : index
    %369 = memref.load %arg3[%c18_403] : memref<49xf32, #tpu.memory_space<smem>>
    %370 = vector.broadcast %369 : f32 to vector<1x16x16xf32>
    %371 = arith.mulf %368, %370 : vector<1x16x16xf32>
    %372 = arith.addf %348, %371 : vector<1x16x16xf32>
    %c5_404 = arith.constant 5 : index
    %c0_405 = arith.constant 0 : index
    %c2_406 = arith.constant 2 : index
    %c0_407 = arith.constant 0 : index
    %373 = vector.load %arg8[%c5_404, %c0_405, %c2_406, %c0_407] : memref<7x1x22x16xf32, #tpu.memory_space<vmem>>, vector<1x1x16x16xf32>
    %374 = vector.shape_cast %373 : vector<1x1x16x16xf32> to vector<1x16x16xf32>
    %c19_408 = arith.constant 19 : index
    %375 = memref.load %arg2[%c19_408] : memref<49xf32, #tpu.memory_space<smem>>
    %376 = vector.broadcast %375 : f32 to vector<1x16x16xf32>
    %377 = arith.mulf %374, %376 : vector<1x16x16xf32>
    %378 = arith.addf %354, %377 : vector<1x16x16xf32>
    %c5_409 = arith.constant 5 : index
    %c0_410 = arith.constant 0 : index
    %c2_411 = arith.constant 2 : index
    %c0_412 = arith.constant 0 : index
    %379 = vector.load %arg9[%c5_409, %c0_410, %c2_411, %c0_412] : memref<7x1x22x16xf32, #tpu.memory_space<vmem>>, vector<1x1x16x16xf32>
    %380 = vector.shape_cast %379 : vector<1x1x16x16xf32> to vector<1x16x16xf32>
    %c19_413 = arith.constant 19 : index
    %381 = memref.load %arg3[%c19_413] : memref<49xf32, #tpu.memory_space<smem>>
    %382 = vector.broadcast %381 : f32 to vector<1x16x16xf32>
    %383 = arith.mulf %380, %382 : vector<1x16x16xf32>
    %384 = arith.addf %360, %383 : vector<1x16x16xf32>
    %c6_414 = arith.constant 6 : index
    %c0_415 = arith.constant 0 : index
    %c2_416 = arith.constant 2 : index
    %c0_417 = arith.constant 0 : index
    %385 = vector.load %arg8[%c6_414, %c0_415, %c2_416, %c0_417] : memref<7x1x22x16xf32, #tpu.memory_space<vmem>>, vector<1x1x16x16xf32>
    %386 = vector.shape_cast %385 : vector<1x1x16x16xf32> to vector<1x16x16xf32>
    %c20 = arith.constant 20 : index
    %387 = memref.load %arg2[%c20] : memref<49xf32, #tpu.memory_space<smem>>
    %388 = vector.broadcast %387 : f32 to vector<1x16x16xf32>
    %389 = arith.mulf %386, %388 : vector<1x16x16xf32>
    %390 = arith.addf %366, %389 : vector<1x16x16xf32>
    %c6_418 = arith.constant 6 : index
    %c0_419 = arith.constant 0 : index
    %c2_420 = arith.constant 2 : index
    %c0_421 = arith.constant 0 : index
    %391 = vector.load %arg9[%c6_418, %c0_419, %c2_420, %c0_421] : memref<7x1x22x16xf32, #tpu.memory_space<vmem>>, vector<1x1x16x16xf32>
    %392 = vector.shape_cast %391 : vector<1x1x16x16xf32> to vector<1x16x16xf32>
    %c20_422 = arith.constant 20 : index
    %393 = memref.load %arg3[%c20_422] : memref<49xf32, #tpu.memory_space<smem>>
    %394 = vector.broadcast %393 : f32 to vector<1x16x16xf32>
    %395 = arith.mulf %392, %394 : vector<1x16x16xf32>
    %396 = arith.addf %372, %395 : vector<1x16x16xf32>
    %c0_423 = arith.constant 0 : index
    %c0_424 = arith.constant 0 : index
    %c3_425 = arith.constant 3 : index
    %c0_426 = arith.constant 0 : index
    %397 = vector.load %arg8[%c0_423, %c0_424, %c3_425, %c0_426] : memref<7x1x22x16xf32, #tpu.memory_space<vmem>>, vector<1x1x16x16xf32>
    %398 = vector.shape_cast %397 : vector<1x1x16x16xf32> to vector<1x16x16xf32>
    %c21 = arith.constant 21 : index
    %399 = memref.load %arg2[%c21] : memref<49xf32, #tpu.memory_space<smem>>
    %400 = vector.broadcast %399 : f32 to vector<1x16x16xf32>
    %401 = arith.mulf %398, %400 : vector<1x16x16xf32>
    %402 = arith.addf %378, %401 : vector<1x16x16xf32>
    %c0_427 = arith.constant 0 : index
    %c0_428 = arith.constant 0 : index
    %c3_429 = arith.constant 3 : index
    %c0_430 = arith.constant 0 : index
    %403 = vector.load %arg9[%c0_427, %c0_428, %c3_429, %c0_430] : memref<7x1x22x16xf32, #tpu.memory_space<vmem>>, vector<1x1x16x16xf32>
    %404 = vector.shape_cast %403 : vector<1x1x16x16xf32> to vector<1x16x16xf32>
    %c21_431 = arith.constant 21 : index
    %405 = memref.load %arg3[%c21_431] : memref<49xf32, #tpu.memory_space<smem>>
    %406 = vector.broadcast %405 : f32 to vector<1x16x16xf32>
    %407 = arith.mulf %404, %406 : vector<1x16x16xf32>
    %408 = arith.addf %384, %407 : vector<1x16x16xf32>
    %c1_432 = arith.constant 1 : index
    %c0_433 = arith.constant 0 : index
    %c3_434 = arith.constant 3 : index
    %c0_435 = arith.constant 0 : index
    %409 = vector.load %arg8[%c1_432, %c0_433, %c3_434, %c0_435] : memref<7x1x22x16xf32, #tpu.memory_space<vmem>>, vector<1x1x16x16xf32>
    %410 = vector.shape_cast %409 : vector<1x1x16x16xf32> to vector<1x16x16xf32>
    %c22 = arith.constant 22 : index
    %411 = memref.load %arg2[%c22] : memref<49xf32, #tpu.memory_space<smem>>
    %412 = vector.broadcast %411 : f32 to vector<1x16x16xf32>
    %413 = arith.mulf %410, %412 : vector<1x16x16xf32>
    %414 = arith.addf %390, %413 : vector<1x16x16xf32>
    %c1_436 = arith.constant 1 : index
    %c0_437 = arith.constant 0 : index
    %c3_438 = arith.constant 3 : index
    %c0_439 = arith.constant 0 : index
    %415 = vector.load %arg9[%c1_436, %c0_437, %c3_438, %c0_439] : memref<7x1x22x16xf32, #tpu.memory_space<vmem>>, vector<1x1x16x16xf32>
    %416 = vector.shape_cast %415 : vector<1x1x16x16xf32> to vector<1x16x16xf32>
    %c22_440 = arith.constant 22 : index
    %417 = memref.load %arg3[%c22_440] : memref<49xf32, #tpu.memory_space<smem>>
    %418 = vector.broadcast %417 : f32 to vector<1x16x16xf32>
    %419 = arith.mulf %416, %418 : vector<1x16x16xf32>
    %420 = arith.addf %396, %419 : vector<1x16x16xf32>
    %c2_441 = arith.constant 2 : index
    %c0_442 = arith.constant 0 : index
    %c3_443 = arith.constant 3 : index
    %c0_444 = arith.constant 0 : index
    %421 = vector.load %arg8[%c2_441, %c0_442, %c3_443, %c0_444] : memref<7x1x22x16xf32, #tpu.memory_space<vmem>>, vector<1x1x16x16xf32>
    %422 = vector.shape_cast %421 : vector<1x1x16x16xf32> to vector<1x16x16xf32>
    %c23 = arith.constant 23 : index
    %423 = memref.load %arg2[%c23] : memref<49xf32, #tpu.memory_space<smem>>
    %424 = vector.broadcast %423 : f32 to vector<1x16x16xf32>
    %425 = arith.mulf %422, %424 : vector<1x16x16xf32>
    %426 = arith.addf %402, %425 : vector<1x16x16xf32>
    %c2_445 = arith.constant 2 : index
    %c0_446 = arith.constant 0 : index
    %c3_447 = arith.constant 3 : index
    %c0_448 = arith.constant 0 : index
    %427 = vector.load %arg9[%c2_445, %c0_446, %c3_447, %c0_448] : memref<7x1x22x16xf32, #tpu.memory_space<vmem>>, vector<1x1x16x16xf32>
    %428 = vector.shape_cast %427 : vector<1x1x16x16xf32> to vector<1x16x16xf32>
    %c23_449 = arith.constant 23 : index
    %429 = memref.load %arg3[%c23_449] : memref<49xf32, #tpu.memory_space<smem>>
    %430 = vector.broadcast %429 : f32 to vector<1x16x16xf32>
    %431 = arith.mulf %428, %430 : vector<1x16x16xf32>
    %432 = arith.addf %408, %431 : vector<1x16x16xf32>
    %c3_450 = arith.constant 3 : index
    %c0_451 = arith.constant 0 : index
    %c3_452 = arith.constant 3 : index
    %c0_453 = arith.constant 0 : index
    %433 = vector.load %arg8[%c3_450, %c0_451, %c3_452, %c0_453] : memref<7x1x22x16xf32, #tpu.memory_space<vmem>>, vector<1x1x16x16xf32>
    %434 = vector.shape_cast %433 : vector<1x1x16x16xf32> to vector<1x16x16xf32>
    %c24 = arith.constant 24 : index
    %435 = memref.load %arg2[%c24] : memref<49xf32, #tpu.memory_space<smem>>
    %436 = vector.broadcast %435 : f32 to vector<1x16x16xf32>
    %437 = arith.mulf %434, %436 : vector<1x16x16xf32>
    %438 = arith.addf %414, %437 : vector<1x16x16xf32>
    %c3_454 = arith.constant 3 : index
    %c0_455 = arith.constant 0 : index
    %c3_456 = arith.constant 3 : index
    %c0_457 = arith.constant 0 : index
    %439 = vector.load %arg9[%c3_454, %c0_455, %c3_456, %c0_457] : memref<7x1x22x16xf32, #tpu.memory_space<vmem>>, vector<1x1x16x16xf32>
    %440 = vector.shape_cast %439 : vector<1x1x16x16xf32> to vector<1x16x16xf32>
    %c24_458 = arith.constant 24 : index
    %441 = memref.load %arg3[%c24_458] : memref<49xf32, #tpu.memory_space<smem>>
    %442 = vector.broadcast %441 : f32 to vector<1x16x16xf32>
    %443 = arith.mulf %440, %442 : vector<1x16x16xf32>
    %444 = arith.addf %420, %443 : vector<1x16x16xf32>
    %c4_459 = arith.constant 4 : index
    %c0_460 = arith.constant 0 : index
    %c3_461 = arith.constant 3 : index
    %c0_462 = arith.constant 0 : index
    %445 = vector.load %arg8[%c4_459, %c0_460, %c3_461, %c0_462] : memref<7x1x22x16xf32, #tpu.memory_space<vmem>>, vector<1x1x16x16xf32>
    %446 = vector.shape_cast %445 : vector<1x1x16x16xf32> to vector<1x16x16xf32>
    %c25 = arith.constant 25 : index
    %447 = memref.load %arg2[%c25] : memref<49xf32, #tpu.memory_space<smem>>
    %448 = vector.broadcast %447 : f32 to vector<1x16x16xf32>
    %449 = arith.mulf %446, %448 : vector<1x16x16xf32>
    %450 = arith.addf %426, %449 : vector<1x16x16xf32>
    %c4_463 = arith.constant 4 : index
    %c0_464 = arith.constant 0 : index
    %c3_465 = arith.constant 3 : index
    %c0_466 = arith.constant 0 : index
    %451 = vector.load %arg9[%c4_463, %c0_464, %c3_465, %c0_466] : memref<7x1x22x16xf32, #tpu.memory_space<vmem>>, vector<1x1x16x16xf32>
    %452 = vector.shape_cast %451 : vector<1x1x16x16xf32> to vector<1x16x16xf32>
    %c25_467 = arith.constant 25 : index
    %453 = memref.load %arg3[%c25_467] : memref<49xf32, #tpu.memory_space<smem>>
    %454 = vector.broadcast %453 : f32 to vector<1x16x16xf32>
    %455 = arith.mulf %452, %454 : vector<1x16x16xf32>
    %456 = arith.addf %432, %455 : vector<1x16x16xf32>
    %c5_468 = arith.constant 5 : index
    %c0_469 = arith.constant 0 : index
    %c3_470 = arith.constant 3 : index
    %c0_471 = arith.constant 0 : index
    %457 = vector.load %arg8[%c5_468, %c0_469, %c3_470, %c0_471] : memref<7x1x22x16xf32, #tpu.memory_space<vmem>>, vector<1x1x16x16xf32>
    %458 = vector.shape_cast %457 : vector<1x1x16x16xf32> to vector<1x16x16xf32>
    %c26 = arith.constant 26 : index
    %459 = memref.load %arg2[%c26] : memref<49xf32, #tpu.memory_space<smem>>
    %460 = vector.broadcast %459 : f32 to vector<1x16x16xf32>
    %461 = arith.mulf %458, %460 : vector<1x16x16xf32>
    %462 = arith.addf %438, %461 : vector<1x16x16xf32>
    %c5_472 = arith.constant 5 : index
    %c0_473 = arith.constant 0 : index
    %c3_474 = arith.constant 3 : index
    %c0_475 = arith.constant 0 : index
    %463 = vector.load %arg9[%c5_472, %c0_473, %c3_474, %c0_475] : memref<7x1x22x16xf32, #tpu.memory_space<vmem>>, vector<1x1x16x16xf32>
    %464 = vector.shape_cast %463 : vector<1x1x16x16xf32> to vector<1x16x16xf32>
    %c26_476 = arith.constant 26 : index
    %465 = memref.load %arg3[%c26_476] : memref<49xf32, #tpu.memory_space<smem>>
    %466 = vector.broadcast %465 : f32 to vector<1x16x16xf32>
    %467 = arith.mulf %464, %466 : vector<1x16x16xf32>
    %468 = arith.addf %444, %467 : vector<1x16x16xf32>
    %c6_477 = arith.constant 6 : index
    %c0_478 = arith.constant 0 : index
    %c3_479 = arith.constant 3 : index
    %c0_480 = arith.constant 0 : index
    %469 = vector.load %arg8[%c6_477, %c0_478, %c3_479, %c0_480] : memref<7x1x22x16xf32, #tpu.memory_space<vmem>>, vector<1x1x16x16xf32>
    %470 = vector.shape_cast %469 : vector<1x1x16x16xf32> to vector<1x16x16xf32>
    %c27 = arith.constant 27 : index
    %471 = memref.load %arg2[%c27] : memref<49xf32, #tpu.memory_space<smem>>
    %472 = vector.broadcast %471 : f32 to vector<1x16x16xf32>
    %473 = arith.mulf %470, %472 : vector<1x16x16xf32>
    %474 = arith.addf %450, %473 : vector<1x16x16xf32>
    %c6_481 = arith.constant 6 : index
    %c0_482 = arith.constant 0 : index
    %c3_483 = arith.constant 3 : index
    %c0_484 = arith.constant 0 : index
    %475 = vector.load %arg9[%c6_481, %c0_482, %c3_483, %c0_484] : memref<7x1x22x16xf32, #tpu.memory_space<vmem>>, vector<1x1x16x16xf32>
    %476 = vector.shape_cast %475 : vector<1x1x16x16xf32> to vector<1x16x16xf32>
    %c27_485 = arith.constant 27 : index
    %477 = memref.load %arg3[%c27_485] : memref<49xf32, #tpu.memory_space<smem>>
    %478 = vector.broadcast %477 : f32 to vector<1x16x16xf32>
    %479 = arith.mulf %476, %478 : vector<1x16x16xf32>
    %480 = arith.addf %456, %479 : vector<1x16x16xf32>
    %c0_486 = arith.constant 0 : index
    %c0_487 = arith.constant 0 : index
    %c4_488 = arith.constant 4 : index
    %c0_489 = arith.constant 0 : index
    %481 = vector.load %arg8[%c0_486, %c0_487, %c4_488, %c0_489] : memref<7x1x22x16xf32, #tpu.memory_space<vmem>>, vector<1x1x16x16xf32>
    %482 = vector.shape_cast %481 : vector<1x1x16x16xf32> to vector<1x16x16xf32>
    %c28 = arith.constant 28 : index
    %483 = memref.load %arg2[%c28] : memref<49xf32, #tpu.memory_space<smem>>
    %484 = vector.broadcast %483 : f32 to vector<1x16x16xf32>
    %485 = arith.mulf %482, %484 : vector<1x16x16xf32>
    %486 = arith.addf %462, %485 : vector<1x16x16xf32>
    %c0_490 = arith.constant 0 : index
    %c0_491 = arith.constant 0 : index
    %c4_492 = arith.constant 4 : index
    %c0_493 = arith.constant 0 : index
    %487 = vector.load %arg9[%c0_490, %c0_491, %c4_492, %c0_493] : memref<7x1x22x16xf32, #tpu.memory_space<vmem>>, vector<1x1x16x16xf32>
    %488 = vector.shape_cast %487 : vector<1x1x16x16xf32> to vector<1x16x16xf32>
    %c28_494 = arith.constant 28 : index
    %489 = memref.load %arg3[%c28_494] : memref<49xf32, #tpu.memory_space<smem>>
    %490 = vector.broadcast %489 : f32 to vector<1x16x16xf32>
    %491 = arith.mulf %488, %490 : vector<1x16x16xf32>
    %492 = arith.addf %468, %491 : vector<1x16x16xf32>
    %c1_495 = arith.constant 1 : index
    %c0_496 = arith.constant 0 : index
    %c4_497 = arith.constant 4 : index
    %c0_498 = arith.constant 0 : index
    %493 = vector.load %arg8[%c1_495, %c0_496, %c4_497, %c0_498] : memref<7x1x22x16xf32, #tpu.memory_space<vmem>>, vector<1x1x16x16xf32>
    %494 = vector.shape_cast %493 : vector<1x1x16x16xf32> to vector<1x16x16xf32>
    %c29 = arith.constant 29 : index
    %495 = memref.load %arg2[%c29] : memref<49xf32, #tpu.memory_space<smem>>
    %496 = vector.broadcast %495 : f32 to vector<1x16x16xf32>
    %497 = arith.mulf %494, %496 : vector<1x16x16xf32>
    %498 = arith.addf %474, %497 : vector<1x16x16xf32>
    %c1_499 = arith.constant 1 : index
    %c0_500 = arith.constant 0 : index
    %c4_501 = arith.constant 4 : index
    %c0_502 = arith.constant 0 : index
    %499 = vector.load %arg9[%c1_499, %c0_500, %c4_501, %c0_502] : memref<7x1x22x16xf32, #tpu.memory_space<vmem>>, vector<1x1x16x16xf32>
    %500 = vector.shape_cast %499 : vector<1x1x16x16xf32> to vector<1x16x16xf32>
    %c29_503 = arith.constant 29 : index
    %501 = memref.load %arg3[%c29_503] : memref<49xf32, #tpu.memory_space<smem>>
    %502 = vector.broadcast %501 : f32 to vector<1x16x16xf32>
    %503 = arith.mulf %500, %502 : vector<1x16x16xf32>
    %504 = arith.addf %480, %503 : vector<1x16x16xf32>
    %c2_504 = arith.constant 2 : index
    %c0_505 = arith.constant 0 : index
    %c4_506 = arith.constant 4 : index
    %c0_507 = arith.constant 0 : index
    %505 = vector.load %arg8[%c2_504, %c0_505, %c4_506, %c0_507] : memref<7x1x22x16xf32, #tpu.memory_space<vmem>>, vector<1x1x16x16xf32>
    %506 = vector.shape_cast %505 : vector<1x1x16x16xf32> to vector<1x16x16xf32>
    %c30 = arith.constant 30 : index
    %507 = memref.load %arg2[%c30] : memref<49xf32, #tpu.memory_space<smem>>
    %508 = vector.broadcast %507 : f32 to vector<1x16x16xf32>
    %509 = arith.mulf %506, %508 : vector<1x16x16xf32>
    %510 = arith.addf %486, %509 : vector<1x16x16xf32>
    %c2_508 = arith.constant 2 : index
    %c0_509 = arith.constant 0 : index
    %c4_510 = arith.constant 4 : index
    %c0_511 = arith.constant 0 : index
    %511 = vector.load %arg9[%c2_508, %c0_509, %c4_510, %c0_511] : memref<7x1x22x16xf32, #tpu.memory_space<vmem>>, vector<1x1x16x16xf32>
    %512 = vector.shape_cast %511 : vector<1x1x16x16xf32> to vector<1x16x16xf32>
    %c30_512 = arith.constant 30 : index
    %513 = memref.load %arg3[%c30_512] : memref<49xf32, #tpu.memory_space<smem>>
    %514 = vector.broadcast %513 : f32 to vector<1x16x16xf32>
    %515 = arith.mulf %512, %514 : vector<1x16x16xf32>
    %516 = arith.addf %492, %515 : vector<1x16x16xf32>
    %c3_513 = arith.constant 3 : index
    %c0_514 = arith.constant 0 : index
    %c4_515 = arith.constant 4 : index
    %c0_516 = arith.constant 0 : index
    %517 = vector.load %arg8[%c3_513, %c0_514, %c4_515, %c0_516] : memref<7x1x22x16xf32, #tpu.memory_space<vmem>>, vector<1x1x16x16xf32>
    %518 = vector.shape_cast %517 : vector<1x1x16x16xf32> to vector<1x16x16xf32>
    %c31 = arith.constant 31 : index
    %519 = memref.load %arg2[%c31] : memref<49xf32, #tpu.memory_space<smem>>
    %520 = vector.broadcast %519 : f32 to vector<1x16x16xf32>
    %521 = arith.mulf %518, %520 : vector<1x16x16xf32>
    %522 = arith.addf %498, %521 : vector<1x16x16xf32>
    %c3_517 = arith.constant 3 : index
    %c0_518 = arith.constant 0 : index
    %c4_519 = arith.constant 4 : index
    %c0_520 = arith.constant 0 : index
    %523 = vector.load %arg9[%c3_517, %c0_518, %c4_519, %c0_520] : memref<7x1x22x16xf32, #tpu.memory_space<vmem>>, vector<1x1x16x16xf32>
    %524 = vector.shape_cast %523 : vector<1x1x16x16xf32> to vector<1x16x16xf32>
    %c31_521 = arith.constant 31 : index
    %525 = memref.load %arg3[%c31_521] : memref<49xf32, #tpu.memory_space<smem>>
    %526 = vector.broadcast %525 : f32 to vector<1x16x16xf32>
    %527 = arith.mulf %524, %526 : vector<1x16x16xf32>
    %528 = arith.addf %504, %527 : vector<1x16x16xf32>
    %c4_522 = arith.constant 4 : index
    %c0_523 = arith.constant 0 : index
    %c4_524 = arith.constant 4 : index
    %c0_525 = arith.constant 0 : index
    %529 = vector.load %arg8[%c4_522, %c0_523, %c4_524, %c0_525] : memref<7x1x22x16xf32, #tpu.memory_space<vmem>>, vector<1x1x16x16xf32>
    %530 = vector.shape_cast %529 : vector<1x1x16x16xf32> to vector<1x16x16xf32>
    %c32 = arith.constant 32 : index
    %531 = memref.load %arg2[%c32] : memref<49xf32, #tpu.memory_space<smem>>
    %532 = vector.broadcast %531 : f32 to vector<1x16x16xf32>
    %533 = arith.mulf %530, %532 : vector<1x16x16xf32>
    %534 = arith.addf %510, %533 : vector<1x16x16xf32>
    %c4_526 = arith.constant 4 : index
    %c0_527 = arith.constant 0 : index
    %c4_528 = arith.constant 4 : index
    %c0_529 = arith.constant 0 : index
    %535 = vector.load %arg9[%c4_526, %c0_527, %c4_528, %c0_529] : memref<7x1x22x16xf32, #tpu.memory_space<vmem>>, vector<1x1x16x16xf32>
    %536 = vector.shape_cast %535 : vector<1x1x16x16xf32> to vector<1x16x16xf32>
    %c32_530 = arith.constant 32 : index
    %537 = memref.load %arg3[%c32_530] : memref<49xf32, #tpu.memory_space<smem>>
    %538 = vector.broadcast %537 : f32 to vector<1x16x16xf32>
    %539 = arith.mulf %536, %538 : vector<1x16x16xf32>
    %540 = arith.addf %516, %539 : vector<1x16x16xf32>
    %c5_531 = arith.constant 5 : index
    %c0_532 = arith.constant 0 : index
    %c4_533 = arith.constant 4 : index
    %c0_534 = arith.constant 0 : index
    %541 = vector.load %arg8[%c5_531, %c0_532, %c4_533, %c0_534] : memref<7x1x22x16xf32, #tpu.memory_space<vmem>>, vector<1x1x16x16xf32>
    %542 = vector.shape_cast %541 : vector<1x1x16x16xf32> to vector<1x16x16xf32>
    %c33 = arith.constant 33 : index
    %543 = memref.load %arg2[%c33] : memref<49xf32, #tpu.memory_space<smem>>
    %544 = vector.broadcast %543 : f32 to vector<1x16x16xf32>
    %545 = arith.mulf %542, %544 : vector<1x16x16xf32>
    %546 = arith.addf %522, %545 : vector<1x16x16xf32>
    %c5_535 = arith.constant 5 : index
    %c0_536 = arith.constant 0 : index
    %c4_537 = arith.constant 4 : index
    %c0_538 = arith.constant 0 : index
    %547 = vector.load %arg9[%c5_535, %c0_536, %c4_537, %c0_538] : memref<7x1x22x16xf32, #tpu.memory_space<vmem>>, vector<1x1x16x16xf32>
    %548 = vector.shape_cast %547 : vector<1x1x16x16xf32> to vector<1x16x16xf32>
    %c33_539 = arith.constant 33 : index
    %549 = memref.load %arg3[%c33_539] : memref<49xf32, #tpu.memory_space<smem>>
    %550 = vector.broadcast %549 : f32 to vector<1x16x16xf32>
    %551 = arith.mulf %548, %550 : vector<1x16x16xf32>
    %552 = arith.addf %528, %551 : vector<1x16x16xf32>
    %c6_540 = arith.constant 6 : index
    %c0_541 = arith.constant 0 : index
    %c4_542 = arith.constant 4 : index
    %c0_543 = arith.constant 0 : index
    %553 = vector.load %arg8[%c6_540, %c0_541, %c4_542, %c0_543] : memref<7x1x22x16xf32, #tpu.memory_space<vmem>>, vector<1x1x16x16xf32>
    %554 = vector.shape_cast %553 : vector<1x1x16x16xf32> to vector<1x16x16xf32>
    %c34 = arith.constant 34 : index
    %555 = memref.load %arg2[%c34] : memref<49xf32, #tpu.memory_space<smem>>
    %556 = vector.broadcast %555 : f32 to vector<1x16x16xf32>
    %557 = arith.mulf %554, %556 : vector<1x16x16xf32>
    %558 = arith.addf %534, %557 : vector<1x16x16xf32>
    %c6_544 = arith.constant 6 : index
    %c0_545 = arith.constant 0 : index
    %c4_546 = arith.constant 4 : index
    %c0_547 = arith.constant 0 : index
    %559 = vector.load %arg9[%c6_544, %c0_545, %c4_546, %c0_547] : memref<7x1x22x16xf32, #tpu.memory_space<vmem>>, vector<1x1x16x16xf32>
    %560 = vector.shape_cast %559 : vector<1x1x16x16xf32> to vector<1x16x16xf32>
    %c34_548 = arith.constant 34 : index
    %561 = memref.load %arg3[%c34_548] : memref<49xf32, #tpu.memory_space<smem>>
    %562 = vector.broadcast %561 : f32 to vector<1x16x16xf32>
    %563 = arith.mulf %560, %562 : vector<1x16x16xf32>
    %564 = arith.addf %540, %563 : vector<1x16x16xf32>
    %c0_549 = arith.constant 0 : index
    %c0_550 = arith.constant 0 : index
    %c5_551 = arith.constant 5 : index
    %c0_552 = arith.constant 0 : index
    %565 = vector.load %arg8[%c0_549, %c0_550, %c5_551, %c0_552] : memref<7x1x22x16xf32, #tpu.memory_space<vmem>>, vector<1x1x16x16xf32>
    %566 = vector.shape_cast %565 : vector<1x1x16x16xf32> to vector<1x16x16xf32>
    %c35 = arith.constant 35 : index
    %567 = memref.load %arg2[%c35] : memref<49xf32, #tpu.memory_space<smem>>
    %568 = vector.broadcast %567 : f32 to vector<1x16x16xf32>
    %569 = arith.mulf %566, %568 : vector<1x16x16xf32>
    %570 = arith.addf %546, %569 : vector<1x16x16xf32>
    %c0_553 = arith.constant 0 : index
    %c0_554 = arith.constant 0 : index
    %c5_555 = arith.constant 5 : index
    %c0_556 = arith.constant 0 : index
    %571 = vector.load %arg9[%c0_553, %c0_554, %c5_555, %c0_556] : memref<7x1x22x16xf32, #tpu.memory_space<vmem>>, vector<1x1x16x16xf32>
    %572 = vector.shape_cast %571 : vector<1x1x16x16xf32> to vector<1x16x16xf32>
    %c35_557 = arith.constant 35 : index
    %573 = memref.load %arg3[%c35_557] : memref<49xf32, #tpu.memory_space<smem>>
    %574 = vector.broadcast %573 : f32 to vector<1x16x16xf32>
    %575 = arith.mulf %572, %574 : vector<1x16x16xf32>
    %576 = arith.addf %552, %575 : vector<1x16x16xf32>
    %c1_558 = arith.constant 1 : index
    %c0_559 = arith.constant 0 : index
    %c5_560 = arith.constant 5 : index
    %c0_561 = arith.constant 0 : index
    %577 = vector.load %arg8[%c1_558, %c0_559, %c5_560, %c0_561] : memref<7x1x22x16xf32, #tpu.memory_space<vmem>>, vector<1x1x16x16xf32>
    %578 = vector.shape_cast %577 : vector<1x1x16x16xf32> to vector<1x16x16xf32>
    %c36 = arith.constant 36 : index
    %579 = memref.load %arg2[%c36] : memref<49xf32, #tpu.memory_space<smem>>
    %580 = vector.broadcast %579 : f32 to vector<1x16x16xf32>
    %581 = arith.mulf %578, %580 : vector<1x16x16xf32>
    %582 = arith.addf %558, %581 : vector<1x16x16xf32>
    %c1_562 = arith.constant 1 : index
    %c0_563 = arith.constant 0 : index
    %c5_564 = arith.constant 5 : index
    %c0_565 = arith.constant 0 : index
    %583 = vector.load %arg9[%c1_562, %c0_563, %c5_564, %c0_565] : memref<7x1x22x16xf32, #tpu.memory_space<vmem>>, vector<1x1x16x16xf32>
    %584 = vector.shape_cast %583 : vector<1x1x16x16xf32> to vector<1x16x16xf32>
    %c36_566 = arith.constant 36 : index
    %585 = memref.load %arg3[%c36_566] : memref<49xf32, #tpu.memory_space<smem>>
    %586 = vector.broadcast %585 : f32 to vector<1x16x16xf32>
    %587 = arith.mulf %584, %586 : vector<1x16x16xf32>
    %588 = arith.addf %564, %587 : vector<1x16x16xf32>
    %c2_567 = arith.constant 2 : index
    %c0_568 = arith.constant 0 : index
    %c5_569 = arith.constant 5 : index
    %c0_570 = arith.constant 0 : index
    %589 = vector.load %arg8[%c2_567, %c0_568, %c5_569, %c0_570] : memref<7x1x22x16xf32, #tpu.memory_space<vmem>>, vector<1x1x16x16xf32>
    %590 = vector.shape_cast %589 : vector<1x1x16x16xf32> to vector<1x16x16xf32>
    %c37 = arith.constant 37 : index
    %591 = memref.load %arg2[%c37] : memref<49xf32, #tpu.memory_space<smem>>
    %592 = vector.broadcast %591 : f32 to vector<1x16x16xf32>
    %593 = arith.mulf %590, %592 : vector<1x16x16xf32>
    %594 = arith.addf %570, %593 : vector<1x16x16xf32>
    %c2_571 = arith.constant 2 : index
    %c0_572 = arith.constant 0 : index
    %c5_573 = arith.constant 5 : index
    %c0_574 = arith.constant 0 : index
    %595 = vector.load %arg9[%c2_571, %c0_572, %c5_573, %c0_574] : memref<7x1x22x16xf32, #tpu.memory_space<vmem>>, vector<1x1x16x16xf32>
    %596 = vector.shape_cast %595 : vector<1x1x16x16xf32> to vector<1x16x16xf32>
    %c37_575 = arith.constant 37 : index
    %597 = memref.load %arg3[%c37_575] : memref<49xf32, #tpu.memory_space<smem>>
    %598 = vector.broadcast %597 : f32 to vector<1x16x16xf32>
    %599 = arith.mulf %596, %598 : vector<1x16x16xf32>
    %600 = arith.addf %576, %599 : vector<1x16x16xf32>
    %c3_576 = arith.constant 3 : index
    %c0_577 = arith.constant 0 : index
    %c5_578 = arith.constant 5 : index
    %c0_579 = arith.constant 0 : index
    %601 = vector.load %arg8[%c3_576, %c0_577, %c5_578, %c0_579] : memref<7x1x22x16xf32, #tpu.memory_space<vmem>>, vector<1x1x16x16xf32>
    %602 = vector.shape_cast %601 : vector<1x1x16x16xf32> to vector<1x16x16xf32>
    %c38 = arith.constant 38 : index
    %603 = memref.load %arg2[%c38] : memref<49xf32, #tpu.memory_space<smem>>
    %604 = vector.broadcast %603 : f32 to vector<1x16x16xf32>
    %605 = arith.mulf %602, %604 : vector<1x16x16xf32>
    %606 = arith.addf %582, %605 : vector<1x16x16xf32>
    %c3_580 = arith.constant 3 : index
    %c0_581 = arith.constant 0 : index
    %c5_582 = arith.constant 5 : index
    %c0_583 = arith.constant 0 : index
    %607 = vector.load %arg9[%c3_580, %c0_581, %c5_582, %c0_583] : memref<7x1x22x16xf32, #tpu.memory_space<vmem>>, vector<1x1x16x16xf32>
    %608 = vector.shape_cast %607 : vector<1x1x16x16xf32> to vector<1x16x16xf32>
    %c38_584 = arith.constant 38 : index
    %609 = memref.load %arg3[%c38_584] : memref<49xf32, #tpu.memory_space<smem>>
    %610 = vector.broadcast %609 : f32 to vector<1x16x16xf32>
    %611 = arith.mulf %608, %610 : vector<1x16x16xf32>
    %612 = arith.addf %588, %611 : vector<1x16x16xf32>
    %c4_585 = arith.constant 4 : index
    %c0_586 = arith.constant 0 : index
    %c5_587 = arith.constant 5 : index
    %c0_588 = arith.constant 0 : index
    %613 = vector.load %arg8[%c4_585, %c0_586, %c5_587, %c0_588] : memref<7x1x22x16xf32, #tpu.memory_space<vmem>>, vector<1x1x16x16xf32>
    %614 = vector.shape_cast %613 : vector<1x1x16x16xf32> to vector<1x16x16xf32>
    %c39 = arith.constant 39 : index
    %615 = memref.load %arg2[%c39] : memref<49xf32, #tpu.memory_space<smem>>
    %616 = vector.broadcast %615 : f32 to vector<1x16x16xf32>
    %617 = arith.mulf %614, %616 : vector<1x16x16xf32>
    %618 = arith.addf %594, %617 : vector<1x16x16xf32>
    %c4_589 = arith.constant 4 : index
    %c0_590 = arith.constant 0 : index
    %c5_591 = arith.constant 5 : index
    %c0_592 = arith.constant 0 : index
    %619 = vector.load %arg9[%c4_589, %c0_590, %c5_591, %c0_592] : memref<7x1x22x16xf32, #tpu.memory_space<vmem>>, vector<1x1x16x16xf32>
    %620 = vector.shape_cast %619 : vector<1x1x16x16xf32> to vector<1x16x16xf32>
    %c39_593 = arith.constant 39 : index
    %621 = memref.load %arg3[%c39_593] : memref<49xf32, #tpu.memory_space<smem>>
    %622 = vector.broadcast %621 : f32 to vector<1x16x16xf32>
    %623 = arith.mulf %620, %622 : vector<1x16x16xf32>
    %624 = arith.addf %600, %623 : vector<1x16x16xf32>
    %c5_594 = arith.constant 5 : index
    %c0_595 = arith.constant 0 : index
    %c5_596 = arith.constant 5 : index
    %c0_597 = arith.constant 0 : index
    %625 = vector.load %arg8[%c5_594, %c0_595, %c5_596, %c0_597] : memref<7x1x22x16xf32, #tpu.memory_space<vmem>>, vector<1x1x16x16xf32>
    %626 = vector.shape_cast %625 : vector<1x1x16x16xf32> to vector<1x16x16xf32>
    %c40 = arith.constant 40 : index
    %627 = memref.load %arg2[%c40] : memref<49xf32, #tpu.memory_space<smem>>
    %628 = vector.broadcast %627 : f32 to vector<1x16x16xf32>
    %629 = arith.mulf %626, %628 : vector<1x16x16xf32>
    %630 = arith.addf %606, %629 : vector<1x16x16xf32>
    %c5_598 = arith.constant 5 : index
    %c0_599 = arith.constant 0 : index
    %c5_600 = arith.constant 5 : index
    %c0_601 = arith.constant 0 : index
    %631 = vector.load %arg9[%c5_598, %c0_599, %c5_600, %c0_601] : memref<7x1x22x16xf32, #tpu.memory_space<vmem>>, vector<1x1x16x16xf32>
    %632 = vector.shape_cast %631 : vector<1x1x16x16xf32> to vector<1x16x16xf32>
    %c40_602 = arith.constant 40 : index
    %633 = memref.load %arg3[%c40_602] : memref<49xf32, #tpu.memory_space<smem>>
    %634 = vector.broadcast %633 : f32 to vector<1x16x16xf32>
    %635 = arith.mulf %632, %634 : vector<1x16x16xf32>
    %636 = arith.addf %612, %635 : vector<1x16x16xf32>
    %c6_603 = arith.constant 6 : index
    %c0_604 = arith.constant 0 : index
    %c5_605 = arith.constant 5 : index
    %c0_606 = arith.constant 0 : index
    %637 = vector.load %arg8[%c6_603, %c0_604, %c5_605, %c0_606] : memref<7x1x22x16xf32, #tpu.memory_space<vmem>>, vector<1x1x16x16xf32>
    %638 = vector.shape_cast %637 : vector<1x1x16x16xf32> to vector<1x16x16xf32>
    %c41 = arith.constant 41 : index
    %639 = memref.load %arg2[%c41] : memref<49xf32, #tpu.memory_space<smem>>
    %640 = vector.broadcast %639 : f32 to vector<1x16x16xf32>
    %641 = arith.mulf %638, %640 : vector<1x16x16xf32>
    %642 = arith.addf %618, %641 : vector<1x16x16xf32>
    %c6_607 = arith.constant 6 : index
    %c0_608 = arith.constant 0 : index
    %c5_609 = arith.constant 5 : index
    %c0_610 = arith.constant 0 : index
    %643 = vector.load %arg9[%c6_607, %c0_608, %c5_609, %c0_610] : memref<7x1x22x16xf32, #tpu.memory_space<vmem>>, vector<1x1x16x16xf32>
    %644 = vector.shape_cast %643 : vector<1x1x16x16xf32> to vector<1x16x16xf32>
    %c41_611 = arith.constant 41 : index
    %645 = memref.load %arg3[%c41_611] : memref<49xf32, #tpu.memory_space<smem>>
    %646 = vector.broadcast %645 : f32 to vector<1x16x16xf32>
    %647 = arith.mulf %644, %646 : vector<1x16x16xf32>
    %648 = arith.addf %624, %647 : vector<1x16x16xf32>
    %c0_612 = arith.constant 0 : index
    %c0_613 = arith.constant 0 : index
    %c6_614 = arith.constant 6 : index
    %c0_615 = arith.constant 0 : index
    %649 = vector.load %arg8[%c0_612, %c0_613, %c6_614, %c0_615] : memref<7x1x22x16xf32, #tpu.memory_space<vmem>>, vector<1x1x16x16xf32>
    %650 = vector.shape_cast %649 : vector<1x1x16x16xf32> to vector<1x16x16xf32>
    %c42 = arith.constant 42 : index
    %651 = memref.load %arg2[%c42] : memref<49xf32, #tpu.memory_space<smem>>
    %652 = vector.broadcast %651 : f32 to vector<1x16x16xf32>
    %653 = arith.mulf %650, %652 : vector<1x16x16xf32>
    %654 = arith.addf %630, %653 : vector<1x16x16xf32>
    %c0_616 = arith.constant 0 : index
    %c0_617 = arith.constant 0 : index
    %c6_618 = arith.constant 6 : index
    %c0_619 = arith.constant 0 : index
    %655 = vector.load %arg9[%c0_616, %c0_617, %c6_618, %c0_619] : memref<7x1x22x16xf32, #tpu.memory_space<vmem>>, vector<1x1x16x16xf32>
    %656 = vector.shape_cast %655 : vector<1x1x16x16xf32> to vector<1x16x16xf32>
    %c42_620 = arith.constant 42 : index
    %657 = memref.load %arg3[%c42_620] : memref<49xf32, #tpu.memory_space<smem>>
    %658 = vector.broadcast %657 : f32 to vector<1x16x16xf32>
    %659 = arith.mulf %656, %658 : vector<1x16x16xf32>
    %660 = arith.addf %636, %659 : vector<1x16x16xf32>
    %c1_621 = arith.constant 1 : index
    %c0_622 = arith.constant 0 : index
    %c6_623 = arith.constant 6 : index
    %c0_624 = arith.constant 0 : index
    %661 = vector.load %arg8[%c1_621, %c0_622, %c6_623, %c0_624] : memref<7x1x22x16xf32, #tpu.memory_space<vmem>>, vector<1x1x16x16xf32>
    %662 = vector.shape_cast %661 : vector<1x1x16x16xf32> to vector<1x16x16xf32>
    %c43 = arith.constant 43 : index
    %663 = memref.load %arg2[%c43] : memref<49xf32, #tpu.memory_space<smem>>
    %664 = vector.broadcast %663 : f32 to vector<1x16x16xf32>
    %665 = arith.mulf %662, %664 : vector<1x16x16xf32>
    %666 = arith.addf %642, %665 : vector<1x16x16xf32>
    %c1_625 = arith.constant 1 : index
    %c0_626 = arith.constant 0 : index
    %c6_627 = arith.constant 6 : index
    %c0_628 = arith.constant 0 : index
    %667 = vector.load %arg9[%c1_625, %c0_626, %c6_627, %c0_628] : memref<7x1x22x16xf32, #tpu.memory_space<vmem>>, vector<1x1x16x16xf32>
    %668 = vector.shape_cast %667 : vector<1x1x16x16xf32> to vector<1x16x16xf32>
    %c43_629 = arith.constant 43 : index
    %669 = memref.load %arg3[%c43_629] : memref<49xf32, #tpu.memory_space<smem>>
    %670 = vector.broadcast %669 : f32 to vector<1x16x16xf32>
    %671 = arith.mulf %668, %670 : vector<1x16x16xf32>
    %672 = arith.addf %648, %671 : vector<1x16x16xf32>
    %c2_630 = arith.constant 2 : index
    %c0_631 = arith.constant 0 : index
    %c6_632 = arith.constant 6 : index
    %c0_633 = arith.constant 0 : index
    %673 = vector.load %arg8[%c2_630, %c0_631, %c6_632, %c0_633] : memref<7x1x22x16xf32, #tpu.memory_space<vmem>>, vector<1x1x16x16xf32>
    %674 = vector.shape_cast %673 : vector<1x1x16x16xf32> to vector<1x16x16xf32>
    %c44 = arith.constant 44 : index
    %675 = memref.load %arg2[%c44] : memref<49xf32, #tpu.memory_space<smem>>
    %676 = vector.broadcast %675 : f32 to vector<1x16x16xf32>
    %677 = arith.mulf %674, %676 : vector<1x16x16xf32>
    %678 = arith.addf %654, %677 : vector<1x16x16xf32>
    %c2_634 = arith.constant 2 : index
    %c0_635 = arith.constant 0 : index
    %c6_636 = arith.constant 6 : index
    %c0_637 = arith.constant 0 : index
    %679 = vector.load %arg9[%c2_634, %c0_635, %c6_636, %c0_637] : memref<7x1x22x16xf32, #tpu.memory_space<vmem>>, vector<1x1x16x16xf32>
    %680 = vector.shape_cast %679 : vector<1x1x16x16xf32> to vector<1x16x16xf32>
    %c44_638 = arith.constant 44 : index
    %681 = memref.load %arg3[%c44_638] : memref<49xf32, #tpu.memory_space<smem>>
    %682 = vector.broadcast %681 : f32 to vector<1x16x16xf32>
    %683 = arith.mulf %680, %682 : vector<1x16x16xf32>
    %684 = arith.addf %660, %683 : vector<1x16x16xf32>
    %c3_639 = arith.constant 3 : index
    %c0_640 = arith.constant 0 : index
    %c6_641 = arith.constant 6 : index
    %c0_642 = arith.constant 0 : index
    %685 = vector.load %arg8[%c3_639, %c0_640, %c6_641, %c0_642] : memref<7x1x22x16xf32, #tpu.memory_space<vmem>>, vector<1x1x16x16xf32>
    %686 = vector.shape_cast %685 : vector<1x1x16x16xf32> to vector<1x16x16xf32>
    %c45 = arith.constant 45 : index
    %687 = memref.load %arg2[%c45] : memref<49xf32, #tpu.memory_space<smem>>
    %688 = vector.broadcast %687 : f32 to vector<1x16x16xf32>
    %689 = arith.mulf %686, %688 : vector<1x16x16xf32>
    %690 = arith.addf %666, %689 : vector<1x16x16xf32>
    %c3_643 = arith.constant 3 : index
    %c0_644 = arith.constant 0 : index
    %c6_645 = arith.constant 6 : index
    %c0_646 = arith.constant 0 : index
    %691 = vector.load %arg9[%c3_643, %c0_644, %c6_645, %c0_646] : memref<7x1x22x16xf32, #tpu.memory_space<vmem>>, vector<1x1x16x16xf32>
    %692 = vector.shape_cast %691 : vector<1x1x16x16xf32> to vector<1x16x16xf32>
    %c45_647 = arith.constant 45 : index
    %693 = memref.load %arg3[%c45_647] : memref<49xf32, #tpu.memory_space<smem>>
    %694 = vector.broadcast %693 : f32 to vector<1x16x16xf32>
    %695 = arith.mulf %692, %694 : vector<1x16x16xf32>
    %696 = arith.addf %672, %695 : vector<1x16x16xf32>
    %c4_648 = arith.constant 4 : index
    %c0_649 = arith.constant 0 : index
    %c6_650 = arith.constant 6 : index
    %c0_651 = arith.constant 0 : index
    %697 = vector.load %arg8[%c4_648, %c0_649, %c6_650, %c0_651] : memref<7x1x22x16xf32, #tpu.memory_space<vmem>>, vector<1x1x16x16xf32>
    %698 = vector.shape_cast %697 : vector<1x1x16x16xf32> to vector<1x16x16xf32>
    %c46 = arith.constant 46 : index
    %699 = memref.load %arg2[%c46] : memref<49xf32, #tpu.memory_space<smem>>
    %700 = vector.broadcast %699 : f32 to vector<1x16x16xf32>
    %701 = arith.mulf %698, %700 : vector<1x16x16xf32>
    %702 = arith.addf %678, %701 : vector<1x16x16xf32>
    %c4_652 = arith.constant 4 : index
    %c0_653 = arith.constant 0 : index
    %c6_654 = arith.constant 6 : index
    %c0_655 = arith.constant 0 : index
    %703 = vector.load %arg9[%c4_652, %c0_653, %c6_654, %c0_655] : memref<7x1x22x16xf32, #tpu.memory_space<vmem>>, vector<1x1x16x16xf32>
    %704 = vector.shape_cast %703 : vector<1x1x16x16xf32> to vector<1x16x16xf32>
    %c46_656 = arith.constant 46 : index
    %705 = memref.load %arg3[%c46_656] : memref<49xf32, #tpu.memory_space<smem>>
    %706 = vector.broadcast %705 : f32 to vector<1x16x16xf32>
    %707 = arith.mulf %704, %706 : vector<1x16x16xf32>
    %708 = arith.addf %684, %707 : vector<1x16x16xf32>
    %c5_657 = arith.constant 5 : index
    %c0_658 = arith.constant 0 : index
    %c6_659 = arith.constant 6 : index
    %c0_660 = arith.constant 0 : index
    %709 = vector.load %arg8[%c5_657, %c0_658, %c6_659, %c0_660] : memref<7x1x22x16xf32, #tpu.memory_space<vmem>>, vector<1x1x16x16xf32>
    %710 = vector.shape_cast %709 : vector<1x1x16x16xf32> to vector<1x16x16xf32>
    %c47 = arith.constant 47 : index
    %711 = memref.load %arg2[%c47] : memref<49xf32, #tpu.memory_space<smem>>
    %712 = vector.broadcast %711 : f32 to vector<1x16x16xf32>
    %713 = arith.mulf %710, %712 : vector<1x16x16xf32>
    %714 = arith.addf %690, %713 : vector<1x16x16xf32>
    %c5_661 = arith.constant 5 : index
    %c0_662 = arith.constant 0 : index
    %c6_663 = arith.constant 6 : index
    %c0_664 = arith.constant 0 : index
    %715 = vector.load %arg9[%c5_661, %c0_662, %c6_663, %c0_664] : memref<7x1x22x16xf32, #tpu.memory_space<vmem>>, vector<1x1x16x16xf32>
    %716 = vector.shape_cast %715 : vector<1x1x16x16xf32> to vector<1x16x16xf32>
    %c47_665 = arith.constant 47 : index
    %717 = memref.load %arg3[%c47_665] : memref<49xf32, #tpu.memory_space<smem>>
    %718 = vector.broadcast %717 : f32 to vector<1x16x16xf32>
    %719 = arith.mulf %716, %718 : vector<1x16x16xf32>
    %720 = arith.addf %696, %719 : vector<1x16x16xf32>
    %c6_666 = arith.constant 6 : index
    %c0_667 = arith.constant 0 : index
    %c6_668 = arith.constant 6 : index
    %c0_669 = arith.constant 0 : index
    %721 = vector.load %arg8[%c6_666, %c0_667, %c6_668, %c0_669] : memref<7x1x22x16xf32, #tpu.memory_space<vmem>>, vector<1x1x16x16xf32>
    %722 = vector.shape_cast %721 : vector<1x1x16x16xf32> to vector<1x16x16xf32>
    %c48 = arith.constant 48 : index
    %723 = memref.load %arg2[%c48] : memref<49xf32, #tpu.memory_space<smem>>
    %724 = vector.broadcast %723 : f32 to vector<1x16x16xf32>
    %725 = arith.mulf %722, %724 : vector<1x16x16xf32>
    %726 = arith.addf %702, %725 : vector<1x16x16xf32>
    %c6_670 = arith.constant 6 : index
    %c0_671 = arith.constant 0 : index
    %c6_672 = arith.constant 6 : index
    %c0_673 = arith.constant 0 : index
    %727 = vector.load %arg9[%c6_670, %c0_671, %c6_672, %c0_673] : memref<7x1x22x16xf32, #tpu.memory_space<vmem>>, vector<1x1x16x16xf32>
    %728 = vector.shape_cast %727 : vector<1x1x16x16xf32> to vector<1x16x16xf32>
    %c48_674 = arith.constant 48 : index
    %729 = memref.load %arg3[%c48_674] : memref<49xf32, #tpu.memory_space<smem>>
    %730 = vector.broadcast %729 : f32 to vector<1x16x16xf32>
    %731 = arith.mulf %728, %730 : vector<1x16x16xf32>
    %732 = arith.addf %708, %731 : vector<1x16x16xf32>
    %733 = arith.addf %726, %732 : vector<1x16x16xf32>
    %734 = arith.addf %714, %720 : vector<1x16x16xf32>
    %735 = arith.addf %733, %734 : vector<1x16x16xf32>
    %c0_675 = arith.constant 0 : index
    %736 = memref.load %arg4[%c0_675] : memref<1xf32, #tpu.memory_space<smem>>
    %737 = vector.broadcast %736 : f32 to vector<1x16x16xf32>
    %738 = arith.addf %735, %737 : vector<1x16x16xf32>
    %739 = arith.negf %738 : vector<1x16x16xf32>
    %740 = math.exp %739 : vector<1x16x16xf32>
    %cst_676 = arith.constant 1.000000e+00 : f32
    %741 = vector.broadcast %cst_676 : f32 to vector<1x16x16xf32>
    %742 = arith.addf %741, %740 : vector<1x16x16xf32>
    %743 = arith.divf %741, %742 : vector<1x16x16xf32>
    %744 = vector.extract_strided_slice %743 {offsets = [0, 0, 0], sizes = [1, 1, 16], strides = [1, 1, 1]} : vector<1x16x16xf32> to vector<1x1x16xf32>
    %c0_677 = arith.constant 0 : index
    %c0_678 = arith.constant 0 : index
    %c0_679 = arith.constant 0 : index
    %745 = vector.load %arg10[%c0_677, %c0_678, %c0_679] : memref<1x1x256xf32, #tpu.memory_space<vmem>>, vector<1x1x16xf32>
    tpu.vector_store %arg10[%c0_677, %c0_678, %c0_679], %744 {strides = array<i32>} : memref<1x1x256xf32, #tpu.memory_space<vmem>>, vector<1x1x16xf32>,
    %746 = vector.extract_strided_slice %743 {offsets = [0, 1, 0], sizes = [1, 1, 16], strides = [1, 1, 1]} : vector<1x16x16xf32> to vector<1x1x16xf32>
    %c0_680 = arith.constant 0 : index
    %c0_681 = arith.constant 0 : index
    %c16_682 = arith.constant 16 : index
    %747 = vector.load %arg10[%c0_680, %c0_681, %c16_682] : memref<1x1x256xf32, #tpu.memory_space<vmem>>, vector<1x1x16xf32>
    tpu.vector_store %arg10[%c0_680, %c0_681, %c16_682], %746 {strides = array<i32>} : memref<1x1x256xf32, #tpu.memory_space<vmem>>, vector<1x1x16xf32>,
    %748 = vector.extract_strided_slice %743 {offsets = [0, 2, 0], sizes = [1, 1, 16], strides = [1, 1, 1]} : vector<1x16x16xf32> to vector<1x1x16xf32>
    %c0_683 = arith.constant 0 : index
    %c0_684 = arith.constant 0 : index
    %c32_685 = arith.constant 32 : index
    %749 = vector.load %arg10[%c0_683, %c0_684, %c32_685] : memref<1x1x256xf32, #tpu.memory_space<vmem>>, vector<1x1x16xf32>
    tpu.vector_store %arg10[%c0_683, %c0_684, %c32_685], %748 {strides = array<i32>} : memref<1x1x256xf32, #tpu.memory_space<vmem>>, vector<1x1x16xf32>,
    %750 = vector.extract_strided_slice %743 {offsets = [0, 3, 0], sizes = [1, 1, 16], strides = [1, 1, 1]} : vector<1x16x16xf32> to vector<1x1x16xf32>
    %c0_686 = arith.constant 0 : index
    %c0_687 = arith.constant 0 : index
    %c48_688 = arith.constant 48 : index
    %751 = vector.load %arg10[%c0_686, %c0_687, %c48_688] : memref<1x1x256xf32, #tpu.memory_space<vmem>>, vector<1x1x16xf32>
    tpu.vector_store %arg10[%c0_686, %c0_687, %c48_688], %750 {strides = array<i32>} : memref<1x1x256xf32, #tpu.memory_space<vmem>>, vector<1x1x16xf32>,
    %752 = vector.extract_strided_slice %743 {offsets = [0, 4, 0], sizes = [1, 1, 16], strides = [1, 1, 1]} : vector<1x16x16xf32> to vector<1x1x16xf32>
    %c0_689 = arith.constant 0 : index
    %c0_690 = arith.constant 0 : index
    %c64 = arith.constant 64 : index
    %753 = vector.load %arg10[%c0_689, %c0_690, %c64] : memref<1x1x256xf32, #tpu.memory_space<vmem>>, vector<1x1x16xf32>
    tpu.vector_store %arg10[%c0_689, %c0_690, %c64], %752 {strides = array<i32>} : memref<1x1x256xf32, #tpu.memory_space<vmem>>, vector<1x1x16xf32>,
    %754 = vector.extract_strided_slice %743 {offsets = [0, 5, 0], sizes = [1, 1, 16], strides = [1, 1, 1]} : vector<1x16x16xf32> to vector<1x1x16xf32>
    %c0_691 = arith.constant 0 : index
    %c0_692 = arith.constant 0 : index
    %c80 = arith.constant 80 : index
    %755 = vector.load %arg10[%c0_691, %c0_692, %c80] : memref<1x1x256xf32, #tpu.memory_space<vmem>>, vector<1x1x16xf32>
    tpu.vector_store %arg10[%c0_691, %c0_692, %c80], %754 {strides = array<i32>} : memref<1x1x256xf32, #tpu.memory_space<vmem>>, vector<1x1x16xf32>,
    %756 = vector.extract_strided_slice %743 {offsets = [0, 6, 0], sizes = [1, 1, 16], strides = [1, 1, 1]} : vector<1x16x16xf32> to vector<1x1x16xf32>
    %c0_693 = arith.constant 0 : index
    %c0_694 = arith.constant 0 : index
    %c96 = arith.constant 96 : index
    %757 = vector.load %arg10[%c0_693, %c0_694, %c96] : memref<1x1x256xf32, #tpu.memory_space<vmem>>, vector<1x1x16xf32>
    tpu.vector_store %arg10[%c0_693, %c0_694, %c96], %756 {strides = array<i32>} : memref<1x1x256xf32, #tpu.memory_space<vmem>>, vector<1x1x16xf32>,
    %758 = vector.extract_strided_slice %743 {offsets = [0, 7, 0], sizes = [1, 1, 16], strides = [1, 1, 1]} : vector<1x16x16xf32> to vector<1x1x16xf32>
    %c0_695 = arith.constant 0 : index
    %c0_696 = arith.constant 0 : index
    %c112 = arith.constant 112 : index
    %759 = vector.load %arg10[%c0_695, %c0_696, %c112] : memref<1x1x256xf32, #tpu.memory_space<vmem>>, vector<1x1x16xf32>
    tpu.vector_store %arg10[%c0_695, %c0_696, %c112], %758 {strides = array<i32>} : memref<1x1x256xf32, #tpu.memory_space<vmem>>, vector<1x1x16xf32>,
    %760 = vector.extract_strided_slice %743 {offsets = [0, 8, 0], sizes = [1, 1, 16], strides = [1, 1, 1]} : vector<1x16x16xf32> to vector<1x1x16xf32>
    %c0_697 = arith.constant 0 : index
    %c0_698 = arith.constant 0 : index
    %c128 = arith.constant 128 : index
    %761 = vector.load %arg10[%c0_697, %c0_698, %c128] : memref<1x1x256xf32, #tpu.memory_space<vmem>>, vector<1x1x16xf32>
    tpu.vector_store %arg10[%c0_697, %c0_698, %c128], %760 {strides = array<i32>} : memref<1x1x256xf32, #tpu.memory_space<vmem>>, vector<1x1x16xf32>,
    %762 = vector.extract_strided_slice %743 {offsets = [0, 9, 0], sizes = [1, 1, 16], strides = [1, 1, 1]} : vector<1x16x16xf32> to vector<1x1x16xf32>
    %c0_699 = arith.constant 0 : index
    %c0_700 = arith.constant 0 : index
    %c144 = arith.constant 144 : index
    %763 = vector.load %arg10[%c0_699, %c0_700, %c144] : memref<1x1x256xf32, #tpu.memory_space<vmem>>, vector<1x1x16xf32>
    tpu.vector_store %arg10[%c0_699, %c0_700, %c144], %762 {strides = array<i32>} : memref<1x1x256xf32, #tpu.memory_space<vmem>>, vector<1x1x16xf32>,
    %764 = vector.extract_strided_slice %743 {offsets = [0, 10, 0], sizes = [1, 1, 16], strides = [1, 1, 1]} : vector<1x16x16xf32> to vector<1x1x16xf32>
    %c0_701 = arith.constant 0 : index
    %c0_702 = arith.constant 0 : index
    %c160 = arith.constant 160 : index
    %765 = vector.load %arg10[%c0_701, %c0_702, %c160] : memref<1x1x256xf32, #tpu.memory_space<vmem>>, vector<1x1x16xf32>
    tpu.vector_store %arg10[%c0_701, %c0_702, %c160], %764 {strides = array<i32>} : memref<1x1x256xf32, #tpu.memory_space<vmem>>, vector<1x1x16xf32>,
    %766 = vector.extract_strided_slice %743 {offsets = [0, 11, 0], sizes = [1, 1, 16], strides = [1, 1, 1]} : vector<1x16x16xf32> to vector<1x1x16xf32>
    %c0_703 = arith.constant 0 : index
    %c0_704 = arith.constant 0 : index
    %c176 = arith.constant 176 : index
    %767 = vector.load %arg10[%c0_703, %c0_704, %c176] : memref<1x1x256xf32, #tpu.memory_space<vmem>>, vector<1x1x16xf32>
    tpu.vector_store %arg10[%c0_703, %c0_704, %c176], %766 {strides = array<i32>} : memref<1x1x256xf32, #tpu.memory_space<vmem>>, vector<1x1x16xf32>,
    %768 = vector.extract_strided_slice %743 {offsets = [0, 12, 0], sizes = [1, 1, 16], strides = [1, 1, 1]} : vector<1x16x16xf32> to vector<1x1x16xf32>
    %c0_705 = arith.constant 0 : index
    %c0_706 = arith.constant 0 : index
    %c192 = arith.constant 192 : index
    %769 = vector.load %arg10[%c0_705, %c0_706, %c192] : memref<1x1x256xf32, #tpu.memory_space<vmem>>, vector<1x1x16xf32>
    tpu.vector_store %arg10[%c0_705, %c0_706, %c192], %768 {strides = array<i32>} : memref<1x1x256xf32, #tpu.memory_space<vmem>>, vector<1x1x16xf32>,
    %770 = vector.extract_strided_slice %743 {offsets = [0, 13, 0], sizes = [1, 1, 16], strides = [1, 1, 1]} : vector<1x16x16xf32> to vector<1x1x16xf32>
    %c0_707 = arith.constant 0 : index
    %c0_708 = arith.constant 0 : index
    %c208 = arith.constant 208 : index
    %771 = vector.load %arg10[%c0_707, %c0_708, %c208] : memref<1x1x256xf32, #tpu.memory_space<vmem>>, vector<1x1x16xf32>
    tpu.vector_store %arg10[%c0_707, %c0_708, %c208], %770 {strides = array<i32>} : memref<1x1x256xf32, #tpu.memory_space<vmem>>, vector<1x1x16xf32>,
    %772 = vector.extract_strided_slice %743 {offsets = [0, 14, 0], sizes = [1, 1, 16], strides = [1, 1, 1]} : vector<1x16x16xf32> to vector<1x1x16xf32>
    %c0_709 = arith.constant 0 : index
    %c0_710 = arith.constant 0 : index
    %c224 = arith.constant 224 : index
    %773 = vector.load %arg10[%c0_709, %c0_710, %c224] : memref<1x1x256xf32, #tpu.memory_space<vmem>>, vector<1x1x16xf32>
    tpu.vector_store %arg10[%c0_709, %c0_710, %c224], %772 {strides = array<i32>} : memref<1x1x256xf32, #tpu.memory_space<vmem>>, vector<1x1x16xf32>,
    %774 = vector.extract_strided_slice %743 {offsets = [0, 15, 0], sizes = [1, 1, 16], strides = [1, 1, 1]} : vector<1x16x16xf32> to vector<1x1x16xf32>
    %c0_711 = arith.constant 0 : index
    %c0_712 = arith.constant 0 : index
    %c240 = arith.constant 240 : index
    %775 = vector.load %arg10[%c0_711, %c0_712, %c240] : memref<1x1x256xf32, #tpu.memory_space<vmem>>, vector<1x1x16xf32>
    tpu.vector_store %arg10[%c0_711, %c0_712, %c240], %774 {strides = array<i32>} : memref<1x1x256xf32, #tpu.memory_space<vmem>>, vector<1x1x16xf32>,
    %c0_713 = arith.constant 0 : index
    %c0_714 = arith.constant 0 : index
    %c0_715 = arith.constant 0 : index
    %776 = vector.load %arg10[%c0_713, %c0_714, %c0_715] : memref<1x1x256xf32, #tpu.memory_space<vmem>>, vector<1x1x256xf32>
    %c0_716 = arith.constant 0 : index
    %c0_717 = arith.constant 0 : index
    %c0_718 = arith.constant 0 : index
    %777 = vector.load %arg1[%c0_716, %c0_717, %c0_718] : memref<1x4x256xf32, #tpu.memory_space<vmem>>, vector<1x4x256xf32>
    %778 = vector.broadcast %776 : vector<1x1x256xf32> to vector<1x4x256xf32>
    %779 = arith.mulf %777, %778 : vector<1x4x256xf32>
    %c0_719 = arith.constant 0 : index
    %c0_720 = arith.constant 0 : index
    %c0_721 = arith.constant 0 : index
    %780 = vector.load %arg5[%c0_719, %c0_720, %c0_721] : memref<1x4x256xf32, #tpu.memory_space<vmem>>, vector<1x4x256xf32>
    tpu.vector_store %arg5[%c0_719, %c0_720, %c0_721], %779 {strides = array<i32>} : memref<1x4x256xf32, #tpu.memory_space<vmem>>, vector<1x4x256xf32>,
    return
  }
  func.func @transform_0(%arg0: i32) -> (i32, i32, i32) {
    %c0_i32 = arith.constant 0 : i32
    %c0_i32_0 = arith.constant 0 : i32
    %c0_i32_1 = arith.constant 0 : i32
    return %arg0, %c0_i32, %c0_i32_0 : i32, i32, i32
  }
  func.func @transform_1(%arg0: i32) -> i32 {
    %c0_i32 = arith.constant 0 : i32
    %c0_i32_0 = arith.constant 0 : i32
    return %c0_i32 : i32
  }
  func.func @transform_2(%arg0: i32) -> i32 {
    %c0_i32 = arith.constant 0 : i32
    %c0_i32_0 = arith.constant 0 : i32
    return %c0_i32 : i32
  }
  func.func @transform_3(%arg0: i32) -> i32 {
    %c0_i32 = arith.constant 0 : i32
    %c0_i32_0 = arith.constant 0 : i32
    return %c0_i32 : i32
  }
  func.func @transform_4(%arg0: i32) -> (i32, i32, i32) {
    %c0_i32 = arith.constant 0 : i32
    %c0_i32_0 = arith.constant 0 : i32
    %c0_i32_1 = arith.constant 0 : i32
    return %arg0, %c0_i32, %c0_i32_0 : i32, i32, i32
  }
}

</mosaic_0001>

<llo_original>
// kernel: tpu_custom_call.1
$region0: #{tpu_custom_call.1}
  #allocation0 [shape = 'u32[]', space=smem, size = 0x4, offset = 0x4, fixed_abs, tag = 'smem constant byte address 0x4 - core index']
  #allocation1 [shape = 'u32[144,128]{1,0:T(1,128)}', space=vmem, size = 0x12000, scoped, tag = 'internal scratch']
  #allocation2 [shape = 'f32[1,22,22]{2,1,0:T(8,128)}', space=vmem, size = 0x3000, scoped, tag = 'scratch operand']
  #allocation3 [shape = 'f32[1,22,22]{2,1,0:T(8,128)}', space=vmem, size = 0x3000, scoped, tag = 'scratch operand']
  #allocation4 [shape = 'f32[7,1,22,16]{3,2,1,0:T(8,128)}', space=vmem, size = 0x15000, scoped, tag = 'scratch operand']
  #allocation5 [shape = 'f32[7,1,22,16]{3,2,1,0:T(8,128)}', space=vmem, size = 0x15000, scoped, tag = 'scratch operand']
  #allocation6 [shape = 'f32[1,1,256]{2,1,0:T(1,128)}', space=vmem, size = 0x400, scoped, tag = 'scratch operand']
  #allocation7 [shape = 'f32[1]{0:T(128)S(6)}', space=smem, size = 0x200, scoped, tag = 'scoped memory for tpu_custom_call.1']
  %s0 = inlined_call_operand.hbm [shape: f32[2,4,256], index: 0, kind: input, shape index: {}]
  %s1 = inlined_call_operand.vmem [shape: f32[49], index: 1, kind: input, shape index: {}]
  %s2 = inlined_call_operand.vmem [shape: f32[49], index: 2, kind: input, shape index: {}]
  %s3 = inlined_call_operand.<no memory space> [shape: f32[1], index: 3, kind: input, shape index: {}]
  %s4 = inlined_call_operand.hbm [shape: f32[2,4,256], index: 4, kind: output, shape index: {}]
  %s5 = sld [smem:[#allocation0]]
  $region61: #{tpu_custom_call.1} parent=0
    _
  %s7 = ssub.s32 1, %s5
  %s8 = scalar_select 0, %s7, %s5
  %9 = sst [smem:[#allocation7]] %s3
  $region1: #{tpu_custom_call.1} parent=0
    #allocation8 [shape = 'u8[8192]{0}', space=vmem, size = 0x2000, scoped, tag = 'input window, operand 0']
    #allocation9 [shape = 's32[2]{0}', space=sflag, size = 0x8, scoped, tag = 'scoped memory for tpu_custom_call.1']
    #allocation10 [shape = 's32[2]{0}', space=sflag, size = 0x8, scoped, tag = 'scoped memory for tpu_custom_call.1']
    #allocation11 [shape = 's32[2]{0}', space=sflag, size = 0x8, scoped, tag = 'scoped memory for tpu_custom_call.1']
    #allocation12 [shape = 'u8[512]{0}', space=smem, size = 0x200, scoped, tag = 'input window, operand 1, single buffered']
    #allocation13 [shape = 'u8[512]{0}', space=smem, size = 0x200, scoped, tag = 'input window, operand 2, single buffered']
    #allocation14 [shape = 's32[1]{0}', space=sflag, size = 0x4, scoped, tag = 'scoped memory for tpu_custom_call.1']
    #allocation15 [shape = 'u8[8192]{0}', space=vmem, size = 0x2000, scoped, tag = 'output window, operand 0']
    %10 = vsyncpa [#allocation9], 0
    %s11 = scalar_lea.sflag [#allocation9], 1
    %12 = vsyncpa %s11, 0
    %13 = vsyncpa [#allocation11], 0
    %14 = vsyncpa [#allocation14], 0
    %15 = vsyncpa [#allocation10], 0
    %s16 = scalar_lea.sflag [#allocation10], 1
    %17 = vsyncpa %s16, 0
    loop: start=0, step=1, limit=4
    $region2: #{tpu_custom_call.1} parent=1 // loop_pre_header
      _
    $region3: #{tpu_custom_call.1} parent=1 // loop_header
      %s19 = sphi 0, %s23
      %p20 = scmp.ge.s32.totalorder %s19, 4
      %s29 = sphi 0, %s31
      %s32 = sphi 0, %s29
      %s33 = sphi 0, %s32
      %s49 = sphi 0, %s33
      %s53 = sphi 0, %s53
      %s55 = sphi 0, %s53
      %s56 = sphi 0, %s55
      %s70 = sphi 0, %s56
      %s74 = sphi 0, %s74
      %s76 = sphi 0, %s74
      %s77 = sphi 0, %s76
      %s91 = sphi 0, %s77
      %s95 = sphi 0, %s95
      %s97 = sphi 0, %s95
      %s98 = sphi 0, %s97
      %s112 = sphi 0, %s98
      %s118 = sphi 0, %s120
      %s121 = sphi 0, %s118
      %s122 = sphi 0, %s121
      %s138 = sphi 0, %s122
    $region4: #{tpu_custom_call.1} parent=1 // loop_header_branch
      %22 = sbr.rel (%p20) target = $region8
    $region5: #{tpu_custom_call.1} parent=1 // loop_body
      %s24 = ssub.s32 %s19, 1
      %s25 = ssub.s32 %s19, 2
      %s26 = sadd.s32 %s19, 1
      %s27 = ssub.s32 %s19, %s26
      %p28 = scmp.eq.s32.totalorder %s27, 0
      %s30 = sadd.s32 %s29, 1
      %s31 = scalar_select %p28, %s29, %s30
      %p34 = pneg %p28
      %p35 = scmp.eq.s32.totalorder %s19, 1
      %p36 = por %p34, %p35
      %p37 = scmp.ne.s32.totalorder %s29, %s32
      %p38 = scmp.eq.s32.totalorder %s19, 0
      %p39 = por %p37, %p38
      %p40 = scmp.ne.s32.totalorder %s29, %s32
      %p41 = scmp.eq.s32.totalorder %s24, 1
      %p42 = por %p40, %p41
      %p43 = scmp.ne.s32.totalorder %s32, %s33
      %p44 = scmp.eq.s32.totalorder %s24, 0
      %p45 = por %p43, %p44
      %p46 = scmp.ne.s32.totalorder %s32, %s33
      %p47 = scmp.eq.s32.totalorder %s25, 1
      %p48 = por %p46, %p47
      %p50 = scmp.ne.s32.totalorder %s33, %s49
      %p51 = scmp.eq.s32.totalorder %s25, 0
      %p52 = por %p50, %p51
      %s54 = sadd.s32 %s53, 1
      %p57 = scmp.eq.s32.totalorder %s19, 1
      %p58 = scmp.ne.s32.totalorder %s53, %s55
      %p59 = scmp.eq.s32.totalorder %s19, 0
      %p60 = por %p58, %p59
      %p61 = scmp.ne.s32.totalorder %s53, %s55
      %p62 = scmp.eq.s32.totalorder %s24, 1
      %p63 = por %p61, %p62
      %p64 = scmp.ne.s32.totalorder %s55, %s56
      %p65 = scmp.eq.s32.totalorder %s24, 0
      %p66 = por %p64, %p65
      %p67 = scmp.ne.s32.totalorder %s55, %s56
      %p68 = scmp.eq.s32.totalorder %s25, 1
      %p69 = por %p67, %p68
      %p71 = scmp.ne.s32.totalorder %s56, %s70
      %p72 = scmp.eq.s32.totalorder %s25, 0
      %p73 = por %p71, %p72
      %s75 = sadd.s32 %s74, 1
      %p78 = scmp.eq.s32.totalorder %s19, 1
      %p79 = scmp.ne.s32.totalorder %s74, %s76
      %p80 = scmp.eq.s32.totalorder %s19, 0
      %p81 = por %p79, %p80
      %p82 = scmp.ne.s32.totalorder %s74, %s76
      %p83 = scmp.eq.s32.totalorder %s24, 1
      %p84 = por %p82, %p83
      %p85 = scmp.ne.s32.totalorder %s76, %s77
      %p86 = scmp.eq.s32.totalorder %s24, 0
      %p87 = por %p85, %p86
      %p88 = scmp.ne.s32.totalorder %s76, %s77
      %p89 = scmp.eq.s32.totalorder %s25, 1
      %p90 = por %p88, %p89
      %p92 = scmp.ne.s32.totalorder %s77, %s91
      %p93 = scmp.eq.s32.totalorder %s25, 0
      %p94 = por %p92, %p93
      %s96 = sadd.s32 %s95, 1
      %p99 = scmp.eq.s32.totalorder %s19, 1
      %p100 = scmp.ne.s32.totalorder %s95, %s97
      %p101 = scmp.eq.s32.totalorder %s19, 0
      %p102 = por %p100, %p101
      %p103 = scmp.ne.s32.totalorder %s95, %s97
      %p104 = scmp.eq.s32.totalorder %s24, 1
      %p105 = por %p103, %p104
      %p106 = scmp.ne.s32.totalorder %s97, %s98
      %p107 = scmp.eq.s32.totalorder %s24, 0
      %p108 = por %p106, %p107
      %p109 = scmp.ne.s32.totalorder %s97, %s98
      %p110 = scmp.eq.s32.totalorder %s25, 1
      %p111 = por %p109, %p110
      %p113 = scmp.ne.s32.totalorder %s98, %s112
      %p114 = scmp.eq.s32.totalorder %s25, 0
      %p115 = por %p113, %p114
      %s116 = ssub.s32 %s19, %s26
      %p117 = scmp.eq.s32.totalorder %s116, 0
      %s119 = sadd.s32 %s118, 1
      %s120 = scalar_select %p117, %s118, %s119
      %p123 = pneg %p117
      %p124 = scmp.eq.s32.totalorder %s19, 1
      %p125 = por %p123, %p124
      %p126 = scmp.ne.s32.totalorder %s118, %s121
      %p127 = scmp.eq.s32.totalorder %s19, 0
      %p128 = por %p126, %p127
      %p129 = scmp.ne.s32.totalorder %s118, %s121
      %p130 = scmp.eq.s32.totalorder %s24, 1
      %p131 = por %p129, %p130
      %p132 = scmp.ne.s32.totalorder %s121, %s122
      %p133 = scmp.eq.s32.totalorder %s24, 0
      %p134 = por %p132, %p133
      %p135 = scmp.ne.s32.totalorder %s121, %s122
      %p136 = scmp.eq.s32.totalorder %s25, 1
      %p137 = por %p135, %p136
      %p139 = scmp.ne.s32.totalorder %s122, %s138
      %p140 = scmp.eq.s32.totalorder %s25, 0
      %p141 = por %p139, %p140
      %p142 = scmp.le.s32.totalorder 1, %s19
      %p143 = scmp.lt.s32.totalorder %s19, 3
      %p144 = pnand %p142, %p143
      %p145 = pneg %p144
      // Predicated region
      $region9: #{tpu_custom_call.1} parent=5 // pred_check
        _
      $region10: #{tpu_custom_call.1} parent=5 // pred_check_branch
        %147 = sbr.rel (%p144) target = $region12
      $region11: #{tpu_custom_call.1} parent=5 // pred_region
        %s148 = ssub.s32 %s19, 1
        // Predicated region
        $region13: #{tpu_custom_call.1} parent=11 // pred_check
          %p149 = pneg %p66
        $region14: #{tpu_custom_call.1} parent=11 // pred_check_branch
          %151 = sbr.rel (%p149) target = $region16
        $region15: #{tpu_custom_call.1} parent=11 // pred_region
          %s153 = ssub.s32 16, 16
          %154 = vsyncadd [#allocation11], %s153
          %s156 = sshll.u32 %s1, 4
          %s157 = int_to_ptr.vmem [resolvable:$true] %s156
          %159 = dma.vmem_to_smem %s157, 16, [#allocation12], [#allocation11]
        $region16: #{tpu_custom_call.1} parent=11 // pred_fallthru
          _
        // Predicated region
        $region17: #{tpu_custom_call.1} parent=11 // pred_check
          %p160 = pneg %p87
        $region18: #{tpu_custom_call.1} parent=11 // pred_check_branch
          %162 = sbr.rel (%p160) target = $region20
        $region19: #{tpu_custom_call.1} parent=11 // pred_region
          %s164 = ssub.s32 16, 16
          %165 = vsyncadd [#allocation14], %s164
          %s167 = sshll.u32 %s2, 4
          %s168 = int_to_ptr.vmem [resolvable:$true] %s167
          %170 = dma.vmem_to_smem %s168, 16, [#allocation13], [#allocation14]
        $region20: #{tpu_custom_call.1} parent=11 // pred_fallthru
          _
        // Predicated region
        $region21: #{tpu_custom_call.1} parent=11 // pred_check
          %p171 = pneg %p108
        $region22: #{tpu_custom_call.1} parent=11 // pred_check_branch
          %173 = sbr.rel (%p171) target = $region24
        $region23: #{tpu_custom_call.1} parent=11 // pred_region
          _
        $region24: #{tpu_custom_call.1} parent=11 // pred_fallthru
          _
      $region12: #{tpu_custom_call.1} parent=5 // pred_fallthru
        _
      %p174 = scmp.lt.s32.totalorder %s19, 2
      // Predicated region
      $region25: #{tpu_custom_call.1} parent=5 // pred_check
        %p175 = pneg %p174
      $region26: #{tpu_custom_call.1} parent=5 // pred_check_branch
        %177 = sbr.rel (%p175) target = $region28
      $region27: #{tpu_custom_call.1} parent=5 // pred_region
        // Predicated region
        $region29: #{tpu_custom_call.1} parent=27 // pred_check
          %p178 = pneg %p39
        $region30: #{tpu_custom_call.1} parent=27 // pred_check_branch
          %180 = sbr.rel (%p178) target = $region32
        $region31: #{tpu_custom_call.1} parent=27 // pred_region
          %s181 = sand.u32 %s29, 1
          %s182 = scalar_lea.sflag [#allocation9], %s181
          %s183 = sand.u32 %s29, 1
          %s184 = smul.addr %s183, 8
          %s185 = scalar_lea.vmem [#allocation8], %s184
          %s187 = ssub.s32 128, 128
          %188 = vsyncadd %s182, %s187
          %s189 = smul.addr %s19, 2
          %s190 = smul.addr %s189, 64
          %s191 = scalar_lea.hbm %s0, %s190
          %s193 = sshll.u32 %s185, 4
          %s194 = int_to_ptr.vmem [resolvable:$true] %s193
          %196 = dma.hbm_to_vmem [thread:$0]  %s191, 128, %s194, %s182
        $region32: #{tpu_custom_call.1} parent=27 // pred_fallthru
          _
      $region28: #{tpu_custom_call.1} parent=5 // pred_fallthru
        _
      %p197 = scmp.le.s32.totalorder 1, %s19
      %p198 = scmp.lt.s32.totalorder %s19, 3
      %p199 = pnand %p197, %p198
      %p200 = pneg %p199
      // Predicated region
      $region33: #{tpu_custom_call.1} parent=5 // pred_check
        _
      $region34: #{tpu_custom_call.1} parent=5 // pred_check_branch
        %202 = sbr.rel (%p199) target = $region36
      $region35: #{tpu_custom_call.1} parent=5 // pred_region
        %s203 = ssub.s32 %s19, 1
        %s204 = sand.u32 %s32, 1
        %s205 = scalar_lea.sflag [#allocation9], %s204
        %s206 = sand.u32 %s32, 1
        %s207 = smul.addr %s206, 8
        %s208 = scalar_lea.vmem [#allocation8], %s207
        // Predicated region
        $region37: #{tpu_custom_call.1} parent=35 // pred_check
          %p209 = pneg %p45
        $region38: #{tpu_custom_call.1} parent=35 // pred_check_branch
          %211 = sbr.rel (%p209) target = $region40
        $region39: #{tpu_custom_call.1} parent=35 // pred_region
          %212 = dma.done %s205, 128
        $region40: #{tpu_custom_call.1} parent=35 // pred_fallthru
          _
        // Predicated region
        $region41: #{tpu_custom_call.1} parent=35 // pred_check
          %p213 = pneg %p66
        $region42: #{tpu_custom_call.1} parent=35 // pred_check_branch
          %215 = sbr.rel (%p213) target = $region44
        $region43: #{tpu_custom_call.1} parent=35 // pred_region
          %216 = dma.done [#allocation11], 16
        $region44: #{tpu_custom_call.1} parent=35 // pred_fallthru
          _
        // Predicated region
        $region45: #{tpu_custom_call.1} parent=35 // pred_check
          %p217 = pneg %p87
        $region46: #{tpu_custom_call.1} parent=35 // pred_check_branch
          %219 = sbr.rel (%p217) target = $region48
        $region47: #{tpu_custom_call.1} parent=35 // pred_region
          %220 = dma.done [#allocation14], 16
        $region48: #{tpu_custom_call.1} parent=35 // pred_fallthru
          _
        %221 = sfence
        %s222 = sand.u32 %s32, 1
        %s223 = scalar_lea.sflag [#allocation9], %s222
        %s224 = sand.u32 %s32, 1
        %s225 = smul.addr %s224, 8
        %s226 = scalar_lea.vmem [#allocation8], %s225
        %p227 = pneg %p45
        %p228 = pneg %p42
        %p229 = pneg %p66
        %p230 = pneg %p63
        %p231 = pneg %p87
        %p232 = pneg %p84
        %p233 = pneg %p108
        %p234 = pneg %p105
        %p235 = pneg %p134
        %p236 = pneg %p131
        %s237 = sand.u32 %s121, 1
        %s238 = scalar_lea.sflag [#allocation10], %s237
        %s239 = sand.u32 %s121, 1
        %s240 = smul.addr %s239, 8
        %s241 = scalar_lea.vmem [#allocation15], %s240
        %v242 = vld [vmem:[%s208] sm:$0xff]
        %v244 = vcombine.high %v242, %v242
        %vm246 = vcmask 1043456
        %v247 = vsel %vm246, %v242, 0.0
        %v248 = vrot.slane %v247, 4
        %v249 = vadd.f32 %v247, %v248
        %v250 = vrot.slane %v249, 2
        %v251 = vadd.f32 %v249, %v250
        %v252 = vrot.slane %v251, 1
        %v253 = vadd.f32 %v251, %v252
        %v254 = vsel %vm246, %v244, 0.0
        %v255 = vrot.slane %v254, 4
        %v256 = vadd.f32 %v254, %v255
        %v257 = vrot.slane %v256, 2
        %v258 = vadd.f32 %v256, %v257
        %v259 = vrot.slane %v258, 1
        %v260 = vadd.f32 %v258, %v259
        %v261 = vsel %vm246, %v242, -inf
        %v262 = vrot.slane %v261, 4
        %v263 = vmax.f32 %v261, %v262
        %v264 = vrot.slane %v263, 2
        %v265 = vmax.f32 %v263, %v264
        %v266 = vrot.slane %v265, 1
        %v267 = vmax.f32 %v265, %v266
        %v268 = vsel %vm246, %v244, -inf
        %v269 = vrot.slane %v268, 4
        %v270 = vmax.f32 %v268, %v269
        %v271 = vrot.slane %v270, 2
        %v272 = vmax.f32 %v270, %v271
        %v273 = vrot.slane %v272, 1
        %v274 = vmax.f32 %v272, %v273
        %vm275 = vcmask 174080
        %276 = vst.msk [vmem:[#allocation2] sm:$0x7] %vm275, 0.0
        %277 = vst.msk [vmem:[#allocation2 + $0x13] sm:$0x7] %vm275, 0.0
        %vm278 = vcmask 23552
        %279 = vst.msk [vmem:[#allocation2 + $0x3] sm:$0xff] %vm278, 0.0
        %280 = vst.msk [vmem:[#allocation2 + $0xb] sm:$0xff] %vm278, 0.0
        %vm281 = vcmask 179352
        %282 = vst.msk [vmem:[#allocation2 + $0x3] sm:$0xff] %vm281, 0.0
        %283 = vst.msk [vmem:[#allocation2 + $0xb] sm:$0xff] %vm281, 0.0
        %284 = vst.msk [vmem:[#allocation3] sm:$0x7] %vm275, 0.0
        %285 = vst.msk [vmem:[#allocation3 + $0x13] sm:$0x7] %vm275, 0.0
        %286 = vst.msk [vmem:[#allocation3 + $0x3] sm:$0xff] %vm278, 0.0
        %287 = vst.msk [vmem:[#allocation3 + $0xb] sm:$0xff] %vm278, 0.0
        %288 = vst.msk [vmem:[#allocation3 + $0x3] sm:$0xff] %vm281, 0.0
        %289 = vst.msk [vmem:[#allocation3 + $0xb] sm:$0xff] %vm281, 0.0
        %291 = vrot.lane.b32.xlu0 %v253, 3
        %v292 = vpop.permute.xlu0 %291
        %vm294 = vcmask 147480
        %295 = vst.msk [vmem:[#allocation2 + $0x3] sm:$0x1] %vm294, %v292
        %297 = vrot.lane.b32.xlu0 %v267, 3
        %v298 = vpop.permute.xlu0 %297
        %300 = vst.msk [vmem:[#allocation3 + $0x3] sm:$0x1] %vm294, %v298
        %301 = vrot.lane.b32.xlu0 %v253, 115
        %v302 = vpop.permute.xlu0 %301
        %304 = vst.msk [vmem:[#allocation2 + $0x4] sm:$0x1] %vm294, %v302
        %305 = vrot.lane.b32.xlu0 %v267, 115
        %v306 = vpop.permute.xlu0 %305
        %308 = vst.msk [vmem:[#allocation3 + $0x4] sm:$0x1] %vm294, %v306
        %309 = vrot.lane.b32.xlu0 %v253, 99
        %v310 = vpop.permute.xlu0 %309
        %312 = vst.msk [vmem:[#allocation2 + $0x5] sm:$0x1] %vm294, %v310
        %313 = vrot.lane.b32.xlu0 %v267, 99
        %v314 = vpop.permute.xlu0 %313
        %316 = vst.msk [vmem:[#allocation3 + $0x5] sm:$0x1] %vm294, %v314
        %317 = vrot.lane.b32.xlu0 %v253, 83
        %v318 = vpop.permute.xlu0 %317
        %320 = vst.msk [vmem:[#allocation2 + $0x6] sm:$0x1] %vm294, %v318
        %321 = vrot.lane.b32.xlu0 %v267, 83
        %v322 = vpop.permute.xlu0 %321
        %324 = vst.msk [vmem:[#allocation3 + $0x6] sm:$0x1] %vm294, %v322
        %325 = vrot.lane.b32.xlu0 %v253, 67
        %v326 = vpop.permute.xlu0 %325
        %328 = vst.msk [vmem:[#allocation2 + $0x7] sm:$0x1] %vm294, %v326
        %329 = vrot.lane.b32.xlu0 %v267, 67
        %v330 = vpop.permute.xlu0 %329
        %332 = vst.msk [vmem:[#allocation3 + $0x7] sm:$0x1] %vm294, %v330
        %333 = vrot.lane.b32.xlu0 %v253, 51
        %v334 = vpop.permute.xlu0 %333
        %336 = vst.msk [vmem:[#allocation2 + $0x8] sm:$0x1] %vm294, %v334
        %337 = vrot.lane.b32.xlu0 %v267, 51
        %v338 = vpop.permute.xlu0 %337
        %340 = vst.msk [vmem:[#allocation3 + $0x8] sm:$0x1] %vm294, %v338
        %341 = vrot.lane.b32.xlu0 %v253, 35
        %v342 = vpop.permute.xlu0 %341
        %344 = vst.msk [vmem:[#allocation2 + $0x9] sm:$0x1] %vm294, %v342
        %345 = vrot.lane.b32.xlu0 %v267, 35
        %v346 = vpop.permute.xlu0 %345
        %348 = vst.msk [vmem:[#allocation3 + $0x9] sm:$0x1] %vm294, %v346
        %349 = vrot.lane.b32.xlu0 %v253, 19
        %v350 = vpop.permute.xlu0 %349
        %352 = vst.msk [vmem:[#allocation2 + $0xa] sm:$0x1] %vm294, %v350
        %353 = vrot.lane.b32.xlu0 %v267, 19
        %v354 = vpop.permute.xlu0 %353
        %356 = vst.msk [vmem:[#allocation3 + $0xa] sm:$0x1] %vm294, %v354
        %358 = vrot.lane.b32.xlu0 %v260, 3
        %v359 = vpop.permute.xlu0 %358
        %361 = vst.msk [vmem:[#allocation2 + $0xb] sm:$0x1] %vm294, %v359
        %363 = vrot.lane.b32.xlu0 %v274, 3
        %v364 = vpop.permute.xlu0 %363
        %366 = vst.msk [vmem:[#allocation3 + $0xb] sm:$0x1] %vm294, %v364
        %367 = vrot.lane.b32.xlu0 %v260, 115
        %v368 = vpop.permute.xlu0 %367
        %370 = vst.msk [vmem:[#allocation2 + $0xc] sm:$0x1] %vm294, %v368
        %371 = vrot.lane.b32.xlu0 %v274, 115
        %v372 = vpop.permute.xlu0 %371
        %374 = vst.msk [vmem:[#allocation3 + $0xc] sm:$0x1] %vm294, %v372
        %375 = vrot.lane.b32.xlu0 %v260, 99
        %v376 = vpop.permute.xlu0 %375
        %378 = vst.msk [vmem:[#allocation2 + $0xd] sm:$0x1] %vm294, %v376
        %379 = vrot.lane.b32.xlu0 %v274, 99
        %v380 = vpop.permute.xlu0 %379
        %382 = vst.msk [vmem:[#allocation3 + $0xd] sm:$0x1] %vm294, %v380
        %383 = vrot.lane.b32.xlu0 %v260, 83
        %v384 = vpop.permute.xlu0 %383
        %386 = vst.msk [vmem:[#allocation2 + $0xe] sm:$0x1] %vm294, %v384
        %387 = vrot.lane.b32.xlu0 %v274, 83
        %v388 = vpop.permute.xlu0 %387
        %390 = vst.msk [vmem:[#allocation3 + $0xe] sm:$0x1] %vm294, %v388
        %391 = vrot.lane.b32.xlu0 %v260, 67
        %v392 = vpop.permute.xlu0 %391
        %394 = vst.msk [vmem:[#allocation2 + $0xf] sm:$0x1] %vm294, %v392
        %395 = vrot.lane.b32.xlu0 %v274, 67
        %v396 = vpop.permute.xlu0 %395
        %398 = vst.msk [vmem:[#allocation3 + $0xf] sm:$0x1] %vm294, %v396
        %399 = vrot.lane.b32.xlu0 %v260, 51
        %v400 = vpop.permute.xlu0 %399
        %402 = vst.msk [vmem:[#allocation2 + $0x10] sm:$0x1] %vm294, %v400
        %403 = vrot.lane.b32.xlu0 %v274, 51
        %v404 = vpop.permute.xlu0 %403
        %406 = vst.msk [vmem:[#allocation3 + $0x10] sm:$0x1] %vm294, %v404
        %407 = vrot.lane.b32.xlu0 %v260, 35
        %v408 = vpop.permute.xlu0 %407
        %410 = vst.msk [vmem:[#allocation2 + $0x11] sm:$0x1] %vm294, %v408
        %411 = vrot.lane.b32.xlu0 %v274, 35
        %v412 = vpop.permute.xlu0 %411
        %414 = vst.msk [vmem:[#allocation3 + $0x11] sm:$0x1] %vm294, %v412
        %415 = vrot.lane.b32.xlu0 %v260, 19
        %v416 = vpop.permute.xlu0 %415
        %418 = vst.msk [vmem:[#allocation2 + $0x12] sm:$0x1] %vm294, %v416
        %419 = vrot.lane.b32.xlu0 %v274, 19
        %v420 = vpop.permute.xlu0 %419
        %422 = vst.msk [vmem:[#allocation3 + $0x12] sm:$0x1] %vm294, %v420
        %v423 = vld [vmem:[#allocation2] sm:$0xff]
        %v424 = vld [vmem:[#allocation2 + $0x8] sm:$0xff]
        %v425 = vld [vmem:[#allocation2 + $0x10] sm:$0x3f]
        %vm426 = vcmask 130048
        %427 = vst.msk [vmem:[#allocation4] sm:$0xff] %vm426, %v423
        %428 = vst.msk [vmem:[#allocation4 + $0x8] sm:$0xff] %vm426, %v424
        %vm429 = vcmask 128000
        %430 = vst.msk [vmem:[#allocation4 + $0x10] sm:$0x3f] %vm429, %v425
        %v431 = vld [vmem:[#allocation3] sm:$0xff]
        %v432 = vld [vmem:[#allocation3 + $0x8] sm:$0xff]
        %v433 = vld [vmem:[#allocation3 + $0x10] sm:$0x3f]
        %434 = vst.msk [vmem:[#allocation5] sm:$0xff] %vm426, %v431
        %435 = vst.msk [vmem:[#allocation5 + $0x8] sm:$0xff] %vm426, %v432
        %436 = vst.msk [vmem:[#allocation5 + $0x10] sm:$0x3f] %vm429, %v433
        %v437 = vld [vmem:[#allocation2] sm:$0xff]
        %v438 = vld [vmem:[#allocation2 + $0x8] sm:$0xff]
        %v439 = vld [vmem:[#allocation2 + $0x10] sm:$0x3f]
        %443 = vrot.lane.b32.xlu0 %v437, 127
        %v444 = vpop.permute.xlu0 %443
        %445 = vrot.lane.b32.xlu0 %v438, 127
        %v446 = vpop.permute.xlu0 %445
        %447 = vrot.lane.b32.xlu0 %v439, 127
        %v448 = vpop.permute.xlu0 %447
        %s452 = scalar_lea.vmem [#allocation4], 24
        %453 = vst.msk [vmem:[%s452] sm:$0xff] %vm426, %v444
        %454 = vst.msk [vmem:[%s452 + $0x8] sm:$0xff] %vm426, %v446
        %455 = vst.msk [vmem:[%s452 + $0x10] sm:$0x3f] %vm429, %v448
        %v456 = vld [vmem:[#allocation3] sm:$0xff]
        %v457 = vld [vmem:[#allocation3 + $0x8] sm:$0xff]
        %v458 = vld [vmem:[#allocation3 + $0x10] sm:$0x3f]
        %462 = vrot.lane.b32.xlu0 %v456, 127
        %v463 = vpop.permute.xlu0 %462
        %464 = vrot.lane.b32.xlu0 %v457, 127
        %v465 = vpop.permute.xlu0 %464
        %466 = vrot.lane.b32.xlu0 %v458, 127
        %v467 = vpop.permute.xlu0 %466
        %s471 = scalar_lea.vmem [#allocation5], 24
        %472 = vst.msk [vmem:[%s471] sm:$0xff] %vm426, %v463
        %473 = vst.msk [vmem:[%s471 + $0x8] sm:$0xff] %vm426, %v465
        %474 = vst.msk [vmem:[%s471 + $0x10] sm:$0x3f] %vm429, %v467
        %v475 = vld [vmem:[#allocation2] sm:$0xff]
        %v476 = vld [vmem:[#allocation2 + $0x8] sm:$0xff]
        %v477 = vld [vmem:[#allocation2 + $0x10] sm:$0x3f]
        %481 = vrot.lane.b32.xlu0 %v475, 126
        %v482 = vpop.permute.xlu0 %481
        %483 = vrot.lane.b32.xlu0 %v476, 126
        %v484 = vpop.permute.xlu0 %483
        %485 = vrot.lane.b32.xlu0 %v477, 126
        %v486 = vpop.permute.xlu0 %485
        %s490 = scalar_lea.vmem [#allocation4], 48
        %491 = vst.msk [vmem:[%s490] sm:$0xff] %vm426, %v482
        %492 = vst.msk [vmem:[%s490 + $0x8] sm:$0xff] %vm426, %v484
        %493 = vst.msk [vmem:[%s490 + $0x10] sm:$0x3f] %vm429, %v486
        %v494 = vld [vmem:[#allocation3] sm:$0xff]
        %v495 = vld [vmem:[#allocation3 + $0x8] sm:$0xff]
        %v496 = vld [vmem:[#allocation3 + $0x10] sm:$0x3f]
        %500 = vrot.lane.b32.xlu0 %v494, 126
        %v501 = vpop.permute.xlu0 %500
        %502 = vrot.lane.b32.xlu0 %v495, 126
        %v503 = vpop.permute.xlu0 %502
        %504 = vrot.lane.b32.xlu0 %v496, 126
        %v505 = vpop.permute.xlu0 %504
        %s509 = scalar_lea.vmem [#allocation5], 48
        %510 = vst.msk [vmem:[%s509] sm:$0xff] %vm426, %v501
        %511 = vst.msk [vmem:[%s509 + $0x8] sm:$0xff] %vm426, %v503
        %512 = vst.msk [vmem:[%s509 + $0x10] sm:$0x3f] %vm429, %v505
        %v513 = vld [vmem:[#allocation2] sm:$0xff]
        %v514 = vld [vmem:[#allocation2 + $0x8] sm:$0xff]
        %v515 = vld [vmem:[#allocation2 + $0x10] sm:$0x3f]
        %519 = vrot.lane.b32.xlu0 %v513, 125
        %v520 = vpop.permute.xlu0 %519
        %521 = vrot.lane.b32.xlu0 %v514, 125
        %v522 = vpop.permute.xlu0 %521
        %523 = vrot.lane.b32.xlu0 %v515, 125
        %v524 = vpop.permute.xlu0 %523
        %s528 = scalar_lea.vmem [#allocation4], 72
        %529 = vst.msk [vmem:[%s528] sm:$0xff] %vm426, %v520
        %530 = vst.msk [vmem:[%s528 + $0x8] sm:$0xff] %vm426, %v522
        %531 = vst.msk [vmem:[%s528 + $0x10] sm:$0x3f] %vm429, %v524
        %v532 = vld [vmem:[#allocation3] sm:$0xff]
        %v533 = vld [vmem:[#allocation3 + $0x8] sm:$0xff]
        %v534 = vld [vmem:[#allocation3 + $0x10] sm:$0x3f]
        %538 = vrot.lane.b32.xlu0 %v532, 125
        %v539 = vpop.permute.xlu0 %538
        %540 = vrot.lane.b32.xlu0 %v533, 125
        %v541 = vpop.permute.xlu0 %540
        %542 = vrot.lane.b32.xlu0 %v534, 125
        %v543 = vpop.permute.xlu0 %542
        %s547 = scalar_lea.vmem [#allocation5], 72
        %548 = vst.msk [vmem:[%s547] sm:$0xff] %vm426, %v539
        %549 = vst.msk [vmem:[%s547 + $0x8] sm:$0xff] %vm426, %v541
        %550 = vst.msk [vmem:[%s547 + $0x10] sm:$0x3f] %vm429, %v543
        %v551 = vld [vmem:[#allocation2] sm:$0xff]
        %v552 = vld [vmem:[#allocation2 + $0x8] sm:$0xff]
        %v553 = vld [vmem:[#allocation2 + $0x10] sm:$0x3f]
        %557 = vrot.lane.b32.xlu0 %v551, 124
        %v558 = vpop.permute.xlu0 %557
        %559 = vrot.lane.b32.xlu0 %v552, 124
        %v560 = vpop.permute.xlu0 %559
        %561 = vrot.lane.b32.xlu0 %v553, 124
        %v562 = vpop.permute.xlu0 %561
        %s566 = scalar_lea.vmem [#allocation4], 96
        %567 = vst.msk [vmem:[%s566] sm:$0xff] %vm426, %v558
        %568 = vst.msk [vmem:[%s566 + $0x8] sm:$0xff] %vm426, %v560
        %569 = vst.msk [vmem:[%s566 + $0x10] sm:$0x3f] %vm429, %v562
        %v570 = vld [vmem:[#allocation3] sm:$0xff]
        %v571 = vld [vmem:[#allocation3 + $0x8] sm:$0xff]
        %v572 = vld [vmem:[#allocation3 + $0x10] sm:$0x3f]
        %576 = vrot.lane.b32.xlu0 %v570, 124
        %v577 = vpop.permute.xlu0 %576
        %578 = vrot.lane.b32.xlu0 %v571, 124
        %v579 = vpop.permute.xlu0 %578
        %580 = vrot.lane.b32.xlu0 %v572, 124
        %v581 = vpop.permute.xlu0 %580
        %s585 = scalar_lea.vmem [#allocation5], 96
        %586 = vst.msk [vmem:[%s585] sm:$0xff] %vm426, %v577
        %587 = vst.msk [vmem:[%s585 + $0x8] sm:$0xff] %vm426, %v579
        %588 = vst.msk [vmem:[%s585 + $0x10] sm:$0x3f] %vm429, %v581
        %v589 = vld [vmem:[#allocation2] sm:$0xff]
        %v590 = vld [vmem:[#allocation2 + $0x8] sm:$0xff]
        %v591 = vld [vmem:[#allocation2 + $0x10] sm:$0x3f]
        %595 = vrot.lane.b32.xlu0 %v589, 123
        %v596 = vpop.permute.xlu0 %595
        %597 = vrot.lane.b32.xlu0 %v590, 123
        %v598 = vpop.permute.xlu0 %597
        %599 = vrot.lane.b32.xlu0 %v591, 123
        %v600 = vpop.permute.xlu0 %599
        %s604 = scalar_lea.vmem [#allocation4], 120
        %605 = vst.msk [vmem:[%s604] sm:$0xff] %vm426, %v596
        %606 = vst.msk [vmem:[%s604 + $0x8] sm:$0xff] %vm426, %v598
        %607 = vst.msk [vmem:[%s604 + $0x10] sm:$0x3f] %vm429, %v600
        %v608 = vld [vmem:[#allocation3] sm:$0xff]
        %v609 = vld [vmem:[#allocation3 + $0x8] sm:$0xff]
        %v610 = vld [vmem:[#allocation3 + $0x10] sm:$0x3f]
        %614 = vrot.lane.b32.xlu0 %v608, 123
        %v615 = vpop.permute.xlu0 %614
        %616 = vrot.lane.b32.xlu0 %v609, 123
        %v617 = vpop.permute.xlu0 %616
        %618 = vrot.lane.b32.xlu0 %v610, 123
        %v619 = vpop.permute.xlu0 %618
        %s623 = scalar_lea.vmem [#allocation5], 120
        %624 = vst.msk [vmem:[%s623] sm:$0xff] %vm426, %v615
        %625 = vst.msk [vmem:[%s623 + $0x8] sm:$0xff] %vm426, %v617
        %626 = vst.msk [vmem:[%s623 + $0x10] sm:$0x3f] %vm429, %v619
        %v627 = vld [vmem:[#allocation2] sm:$0xff]
        %v628 = vld [vmem:[#allocation2 + $0x8] sm:$0xff]
        %v629 = vld [vmem:[#allocation2 + $0x10] sm:$0x3f]
        %633 = vrot.lane.b32.xlu0 %v627, 122
        %v634 = vpop.permute.xlu0 %633
        %635 = vrot.lane.b32.xlu0 %v628, 122
        %v636 = vpop.permute.xlu0 %635
        %637 = vrot.lane.b32.xlu0 %v629, 122
        %v638 = vpop.permute.xlu0 %637
        %s642 = scalar_lea.vmem [#allocation4], 144
        %643 = vst.msk [vmem:[%s642] sm:$0xff] %vm426, %v634
        %644 = vst.msk [vmem:[%s642 + $0x8] sm:$0xff] %vm426, %v636
        %645 = vst.msk [vmem:[%s642 + $0x10] sm:$0x3f] %vm429, %v638
        %v646 = vld [vmem:[#allocation3] sm:$0xff]
        %v647 = vld [vmem:[#allocation3 + $0x8] sm:$0xff]
        %v648 = vld [vmem:[#allocation3 + $0x10] sm:$0x3f]
        %652 = vrot.lane.b32.xlu0 %v646, 122
        %v653 = vpop.permute.xlu0 %652
        %654 = vrot.lane.b32.xlu0 %v647, 122
        %v655 = vpop.permute.xlu0 %654
        %656 = vrot.lane.b32.xlu0 %v648, 122
        %v657 = vpop.permute.xlu0 %656
        %s661 = scalar_lea.vmem [#allocation5], 144
        %662 = vst.msk [vmem:[%s661] sm:$0xff] %vm426, %v653
        %663 = vst.msk [vmem:[%s661 + $0x8] sm:$0xff] %vm426, %v655
        %664 = vst.msk [vmem:[%s661 + $0x10] sm:$0x3f] %vm429, %v657
        %v665 = vld [vmem:[#allocation4] sm:$0xff]
        %v666 = vld [vmem:[#allocation4 + $0x8] sm:$0xff]
        %s667 = sld [smem:[#allocation12]]
        %v668 = vstv %s667
        %v669 = vmul.f32 %v665, %v668
        %v670 = vmul.f32 %v666, %v668
        %v671 = vadd.f32 %v669, 0.0
        %v672 = vadd.f32 %v670, 0.0
        %v673 = vld [vmem:[#allocation5] sm:$0xff]
        %v674 = vld [vmem:[#allocation5 + $0x8] sm:$0xff]
        %s675 = sld [smem:[#allocation13]]
        %v676 = vstv %s675
        %v677 = vmul.f32 %v673, %v676
        %v678 = vmul.f32 %v674, %v676
        %v679 = vadd.f32 %v677, 0.0
        %v680 = vadd.f32 %v678, 0.0
        %v681 = vld [vmem:[%s452] sm:$0xff]
        %v682 = vld [vmem:[%s452 + $0x8] sm:$0xff]
        %s683 = sld [smem:[#allocation12 + $0x1]]
        %v684 = vstv %s683
        %v685 = vmul.f32 %v681, %v684
        %v686 = vmul.f32 %v682, %v684
        %v687 = vadd.f32 %v685, 0.0
        %v688 = vadd.f32 %v686, 0.0
        %v689 = vld [vmem:[%s471] sm:$0xff]
        %v690 = vld [vmem:[%s471 + $0x8] sm:$0xff]
        %s691 = sld [smem:[#allocation13 + $0x1]]
        %v692 = vstv %s691
        %v693 = vmul.f32 %v689, %v692
        %v694 = vmul.f32 %v690, %v692
        %v695 = vadd.f32 %v693, 0.0
        %v696 = vadd.f32 %v694, 0.0
        %v697 = vld [vmem:[%s490] sm:$0xff]
        %v698 = vld [vmem:[%s490 + $0x8] sm:$0xff]
        %s699 = sld [smem:[#allocation12 + $0x2]]
        %v700 = vstv %s699
        %v701 = vmul.f32 %v697, %v700
        %v702 = vmul.f32 %v698, %v700
        %v703 = vadd.f32 %v671, %v701
        %v704 = vadd.f32 %v672, %v702
        %v705 = vld [vmem:[%s509] sm:$0xff]
        %v706 = vld [vmem:[%s509 + $0x8] sm:$0xff]
        %s707 = sld [smem:[#allocation13 + $0x2]]
        %v708 = vstv %s707
        %v709 = vmul.f32 %v705, %v708
        %v710 = vmul.f32 %v706, %v708
        %v711 = vadd.f32 %v679, %v709
        %v712 = vadd.f32 %v680, %v710
        %v713 = vld [vmem:[%s528] sm:$0xff]
        %v714 = vld [vmem:[%s528 + $0x8] sm:$0xff]
        %s715 = sld [smem:[#allocation12 + $0x3]]
        %v716 = vstv %s715
        %v717 = vmul.f32 %v713, %v716
        %v718 = vmul.f32 %v714, %v716
        %v719 = vadd.f32 %v687, %v717
        %v720 = vadd.f32 %v688, %v718
        %v721 = vld [vmem:[%s547] sm:$0xff]
        %v722 = vld [vmem:[%s547 + $0x8] sm:$0xff]
        %s723 = sld [smem:[#allocation13 + $0x3]]
        %v724 = vstv %s723
        %v725 = vmul.f32 %v721, %v724
        %v726 = vmul.f32 %v722, %v724
        %v727 = vadd.f32 %v695, %v725
        %v728 = vadd.f32 %v696, %v726
        %v729 = vld [vmem:[%s566] sm:$0xff]
        %v730 = vld [vmem:[%s566 + $0x8] sm:$0xff]
        %s731 = sld [smem:[#allocation12 + $0x4]]
        %v732 = vstv %s731
        %v733 = vmul.f32 %v729, %v732
        %v734 = vmul.f32 %v730, %v732
        %v735 = vadd.f32 %v703, %v733
        %v736 = vadd.f32 %v704, %v734
        %v737 = vld [vmem:[%s585] sm:$0xff]
        %v738 = vld [vmem:[%s585 + $0x8] sm:$0xff]
        %s739 = sld [smem:[#allocation13 + $0x4]]
        %v740 = vstv %s739
        %v741 = vmul.f32 %v737, %v740
        %v742 = vmul.f32 %v738, %v740
        %v743 = vadd.f32 %v711, %v741
        %v744 = vadd.f32 %v712, %v742
        %v745 = vld [vmem:[%s604] sm:$0xff]
        %v746 = vld [vmem:[%s604 + $0x8] sm:$0xff]
        %s747 = sld [smem:[#allocation12 + $0x5]]
        %v748 = vstv %s747
        %v749 = vmul.f32 %v745, %v748
        %v750 = vmul.f32 %v746, %v748
        %v751 = vadd.f32 %v719, %v749
        %v752 = vadd.f32 %v720, %v750
        %v753 = vld [vmem:[%s623] sm:$0xff]
        %v754 = vld [vmem:[%s623 + $0x8] sm:$0xff]
        %s755 = sld [smem:[#allocation13 + $0x5]]
        %v756 = vstv %s755
        %v757 = vmul.f32 %v753, %v756
        %v758 = vmul.f32 %v754, %v756
        %v759 = vadd.f32 %v727, %v757
        %v760 = vadd.f32 %v728, %v758
        %v761 = vld [vmem:[%s642] sm:$0xff]
        %v762 = vld [vmem:[%s642 + $0x8] sm:$0xff]
        %s763 = sld [smem:[#allocation12 + $0x6]]
        %v764 = vstv %s763
        %v765 = vmul.f32 %v761, %v764
        %v766 = vmul.f32 %v762, %v764
        %v767 = vadd.f32 %v735, %v765
        %v768 = vadd.f32 %v736, %v766
        %v769 = vld [vmem:[%s661] sm:$0xff]
        %v770 = vld [vmem:[%s661 + $0x8] sm:$0xff]
        %s771 = sld [smem:[#allocation13 + $0x6]]
        %v772 = vstv %s771
        %v773 = vmul.f32 %v769, %v772
        %v774 = vmul.f32 %v770, %v772
        %v775 = vadd.f32 %v743, %v773
        %v776 = vadd.f32 %v744, %v774
        %v777 = vld [vmem:[#allocation4 + $0x1] sm:$0xff]
        %v778 = vld [vmem:[#allocation4 + $0x9] sm:$0xff]
        %s779 = sld [smem:[#allocation12 + $0x7]]
        %v780 = vstv %s779
        %v781 = vmul.f32 %v777, %v780
        %v782 = vmul.f32 %v778, %v780
        %v783 = vadd.f32 %v751, %v781
        %v784 = vadd.f32 %v752, %v782
        %v785 = vld [vmem:[#allocation5 + $0x1] sm:$0xff]
        %v786 = vld [vmem:[#allocation5 + $0x9] sm:$0xff]
        %s787 = sld [smem:[#allocation13 + $0x7]]
        %v788 = vstv %s787
        %v789 = vmul.f32 %v785, %v788
        %v790 = vmul.f32 %v786, %v788
        %v791 = vadd.f32 %v759, %v789
        %v792 = vadd.f32 %v760, %v790
        %v793 = vld [vmem:[%s452 + $0x1] sm:$0xff]
        %v794 = vld [vmem:[%s452 + $0x9] sm:$0xff]
        %s795 = sld [smem:[#allocation12 + $0x8]]
        %v796 = vstv %s795
        %v797 = vmul.f32 %v793, %v796
        %v798 = vmul.f32 %v794, %v796
        %v799 = vadd.f32 %v767, %v797
        %v800 = vadd.f32 %v768, %v798
        %v801 = vld [vmem:[%s471 + $0x1] sm:$0xff]
        %v802 = vld [vmem:[%s471 + $0x9] sm:$0xff]
        %s803 = sld [smem:[#allocation13 + $0x8]]
        %v804 = vstv %s803
        %v805 = vmul.f32 %v801, %v804
        %v806 = vmul.f32 %v802, %v804
        %v807 = vadd.f32 %v775, %v805
        %v808 = vadd.f32 %v776, %v806
        %v809 = vld [vmem:[%s490 + $0x1] sm:$0xff]
        %v810 = vld [vmem:[%s490 + $0x9] sm:$0xff]
        %s811 = sld [smem:[#allocation12 + $0x9]]
        %v812 = vstv %s811
        %v813 = vmul.f32 %v809, %v812
        %v814 = vmul.f32 %v810, %v812
        %v815 = vadd.f32 %v783, %v813
        %v816 = vadd.f32 %v784, %v814
        %v817 = vld [vmem:[%s509 + $0x1] sm:$0xff]
        %v818 = vld [vmem:[%s509 + $0x9] sm:$0xff]
        %s819 = sld [smem:[#allocation13 + $0x9]]
        %v820 = vstv %s819
        %v821 = vmul.f32 %v817, %v820
        %v822 = vmul.f32 %v818, %v820
        %v823 = vadd.f32 %v791, %v821
        %v824 = vadd.f32 %v792, %v822
        %v825 = vld [vmem:[%s528 + $0x1] sm:$0xff]
        %v826 = vld [vmem:[%s528 + $0x9] sm:$0xff]
        %s827 = sld [smem:[#allocation12 + $0xa]]
        %v828 = vstv %s827
        %v829 = vmul.f32 %v825, %v828
        %v830 = vmul.f32 %v826, %v828
        %v831 = vadd.f32 %v799, %v829
        %v832 = vadd.f32 %v800, %v830
        %v833 = vld [vmem:[%s547 + $0x1] sm:$0xff]
        %v834 = vld [vmem:[%s547 + $0x9] sm:$0xff]
        %s835 = sld [smem:[#allocation13 + $0xa]]
        %v836 = vstv %s835
        %v837 = vmul.f32 %v833, %v836
        %v838 = vmul.f32 %v834, %v836
        %v839 = vadd.f32 %v807, %v837
        %v840 = vadd.f32 %v808, %v838
        %v841 = vld [vmem:[%s566 + $0x1] sm:$0xff]
        %v842 = vld [vmem:[%s566 + $0x9] sm:$0xff]
        %s843 = sld [smem:[#allocation12 + $0xb]]
        %v844 = vstv %s843
        %v845 = vmul.f32 %v841, %v844
        %v846 = vmul.f32 %v842, %v844
        %v847 = vadd.f32 %v815, %v845
        %v848 = vadd.f32 %v816, %v846
        %v849 = vld [vmem:[%s585 + $0x1] sm:$0xff]
        %v850 = vld [vmem:[%s585 + $0x9] sm:$0xff]
        %s851 = sld [smem:[#allocation13 + $0xb]]
        %v852 = vstv %s851
        %v853 = vmul.f32 %v849, %v852
        %v854 = vmul.f32 %v850, %v852
        %v855 = vadd.f32 %v823, %v853
        %v856 = vadd.f32 %v824, %v854
        %v857 = vld [vmem:[%s604 + $0x1] sm:$0xff]
        %v858 = vld [vmem:[%s604 + $0x9] sm:$0xff]
        %s859 = sld [smem:[#allocation12 + $0xc]]
        %v860 = vstv %s859
        %v861 = vmul.f32 %v857, %v860
        %v862 = vmul.f32 %v858, %v860
        %v863 = vadd.f32 %v831, %v861
        %v864 = vadd.f32 %v832, %v862
        %v865 = vld [vmem:[%s623 + $0x1] sm:$0xff]
        %v866 = vld [vmem:[%s623 + $0x9] sm:$0xff]
        %s867 = sld [smem:[#allocation13 + $0xc]]
        %v868 = vstv %s867
        %v869 = vmul.f32 %v865, %v868
        %v870 = vmul.f32 %v866, %v868
        %v871 = vadd.f32 %v839, %v869
        %v872 = vadd.f32 %v840, %v870
        %v873 = vld [vmem:[%s642 + $0x1] sm:$0xff]
        %v874 = vld [vmem:[%s642 + $0x9] sm:$0xff]
        %s875 = sld [smem:[#allocation12 + $0xd]]
        %v876 = vstv %s875
        %v877 = vmul.f32 %v873, %v876
        %v878 = vmul.f32 %v874, %v876
        %v879 = vadd.f32 %v847, %v877
        %v880 = vadd.f32 %v848, %v878
        %v881 = vld [vmem:[%s661 + $0x1] sm:$0xff]
        %v882 = vld [vmem:[%s661 + $0x9] sm:$0xff]
        %s883 = sld [smem:[#allocation13 + $0xd]]
        %v884 = vstv %s883
        %v885 = vmul.f32 %v881, %v884
        %v886 = vmul.f32 %v882, %v884
        %v887 = vadd.f32 %v855, %v885
        %v888 = vadd.f32 %v856, %v886
        %v889 = vld [vmem:[#allocation4 + $0x2] sm:$0xff]
        %v890 = vld [vmem:[#allocation4 + $0xa] sm:$0xff]
        %s891 = sld [smem:[#allocation12 + $0xe]]
        %v892 = vstv %s891
        %v893 = vmul.f32 %v889, %v892
        %v894 = vmul.f32 %v890, %v892
        %v895 = vadd.f32 %v863, %v893
        %v896 = vadd.f32 %v864, %v894
        %v897 = vld [vmem:[#allocation5 + $0x2] sm:$0xff]
        %v898 = vld [vmem:[#allocation5 + $0xa] sm:$0xff]
        %s899 = sld [smem:[#allocation13 + $0xe]]
        %v900 = vstv %s899
        %v901 = vmul.f32 %v897, %v900
        %v902 = vmul.f32 %v898, %v900
        %v903 = vadd.f32 %v871, %v901
        %v904 = vadd.f32 %v872, %v902
        %v905 = vld [vmem:[%s452 + $0x2] sm:$0xff]
        %v906 = vld [vmem:[%s452 + $0xa] sm:$0xff]
        %s907 = sld [smem:[#allocation12 + $0xf]]
        %v908 = vstv %s907
        %v909 = vmul.f32 %v905, %v908
        %v910 = vmul.f32 %v906, %v908
        %v911 = vadd.f32 %v879, %v909
        %v912 = vadd.f32 %v880, %v910
        %v913 = vld [vmem:[%s471 + $0x2] sm:$0xff]
        %v914 = vld [vmem:[%s471 + $0xa] sm:$0xff]
        %s915 = sld [smem:[#allocation13 + $0xf]]
        %v916 = vstv %s915
        %v917 = vmul.f32 %v913, %v916
        %v918 = vmul.f32 %v914, %v916
        %v919 = vadd.f32 %v887, %v917
        %v920 = vadd.f32 %v888, %v918
        %v921 = vld [vmem:[%s490 + $0x2] sm:$0xff]
        %v922 = vld [vmem:[%s490 + $0xa] sm:$0xff]
        %s923 = sld [smem:[#allocation12 + $0x10]]
        %v924 = vstv %s923
        %v925 = vmul.f32 %v921, %v924
        %v926 = vmul.f32 %v922, %v924
        %v927 = vadd.f32 %v895, %v925
        %v928 = vadd.f32 %v896, %v926
        %v929 = vld [vmem:[%s509 + $0x2] sm:$0xff]
        %v930 = vld [vmem:[%s509 + $0xa] sm:$0xff]
        %s931 = sld [smem:[#allocation13 + $0x10]]
        %v932 = vstv %s931
        %v933 = vmul.f32 %v929, %v932
        %v934 = vmul.f32 %v930, %v932
        %v935 = vadd.f32 %v903, %v933
        %v936 = vadd.f32 %v904, %v934
        %v937 = vld [vmem:[%s528 + $0x2] sm:$0xff]
        %v938 = vld [vmem:[%s528 + $0xa] sm:$0xff]
        %s939 = sld [smem:[#allocation12 + $0x11]]
        %v940 = vstv %s939
        %v941 = vmul.f32 %v937, %v940
        %v942 = vmul.f32 %v938, %v940
        %v943 = vadd.f32 %v911, %v941
        %v944 = vadd.f32 %v912, %v942
        %v945 = vld [vmem:[%s547 + $0x2] sm:$0xff]
        %v946 = vld [vmem:[%s547 + $0xa] sm:$0xff]
        %s947 = sld [smem:[#allocation13 + $0x11]]
        %v948 = vstv %s947
        %v949 = vmul.f32 %v945, %v948
        %v950 = vmul.f32 %v946, %v948
        %v951 = vadd.f32 %v919, %v949
        %v952 = vadd.f32 %v920, %v950
        %v953 = vld [vmem:[%s566 + $0x2] sm:$0xff]
        %v954 = vld [vmem:[%s566 + $0xa] sm:$0xff]
        %s955 = sld [smem:[#allocation12 + $0x12]]
        %v956 = vstv %s955
        %v957 = vmul.f32 %v953, %v956
        %v958 = vmul.f32 %v954, %v956
        %v959 = vadd.f32 %v927, %v957
        %v960 = vadd.f32 %v928, %v958
        %v961 = vld [vmem:[%s585 + $0x2] sm:$0xff]
        %v962 = vld [vmem:[%s585 + $0xa] sm:$0xff]
        %s963 = sld [smem:[#allocation13 + $0x12]]
        %v964 = vstv %s963
        %v965 = vmul.f32 %v961, %v964
        %v966 = vmul.f32 %v962, %v964
        %v967 = vadd.f32 %v935, %v965
        %v968 = vadd.f32 %v936, %v966
        %v969 = vld [vmem:[%s604 + $0x2] sm:$0xff]
        %v970 = vld [vmem:[%s604 + $0xa] sm:$0xff]
        %s971 = sld [smem:[#allocation12 + $0x13]]
        %v972 = vstv %s971
        %v973 = vmul.f32 %v969, %v972
        %v974 = vmul.f32 %v970, %v972
        %v975 = vadd.f32 %v943, %v973
        %v976 = vadd.f32 %v944, %v974
        %v977 = vld [vmem:[%s623 + $0x2] sm:$0xff]
        %v978 = vld [vmem:[%s623 + $0xa] sm:$0xff]
        %s979 = sld [smem:[#allocation13 + $0x13]]
        %v980 = vstv %s979
        %v981 = vmul.f32 %v977, %v980
        %v982 = vmul.f32 %v978, %v980
        %v983 = vadd.f32 %v951, %v981
        %v984 = vadd.f32 %v952, %v982
        %v985 = vld [vmem:[%s642 + $0x2] sm:$0xff]
        %v986 = vld [vmem:[%s642 + $0xa] sm:$0xff]
        %s987 = sld [smem:[#allocation12 + $0x14]]
        %v988 = vstv %s987
        %v989 = vmul.f32 %v985, %v988
        %v990 = vmul.f32 %v986, %v988
        %v991 = vadd.f32 %v959, %v989
        %v992 = vadd.f32 %v960, %v990
        %v993 = vld [vmem:[%s661 + $0x2] sm:$0xff]
        %v994 = vld [vmem:[%s661 + $0xa] sm:$0xff]
        %s995 = sld [smem:[#allocation13 + $0x14]]
        %v996 = vstv %s995
        %v997 = vmul.f32 %v993, %v996
        %v998 = vmul.f32 %v994, %v996
        %v999 = vadd.f32 %v967, %v997
        %v1000 = vadd.f32 %v968, %v998
        %v1001 = vld [vmem:[#allocation4 + $0x3] sm:$0xff]
        %v1002 = vld [vmem:[#allocation4 + $0xb] sm:$0xff]
        %s1003 = sld [smem:[#allocation12 + $0x15]]
        %v1004 = vstv %s1003
        %v1005 = vmul.f32 %v1001, %v1004
        %v1006 = vmul.f32 %v1002, %v1004
        %v1007 = vadd.f32 %v975, %v1005
        %v1008 = vadd.f32 %v976, %v1006
        %v1009 = vld [vmem:[#allocation5 + $0x3] sm:$0xff]
        %v1010 = vld [vmem:[#allocation5 + $0xb] sm:$0xff]
        %s1011 = sld [smem:[#allocation13 + $0x15]]
        %v1012 = vstv %s1011
        %v1013 = vmul.f32 %v1009, %v1012
        %v1014 = vmul.f32 %v1010, %v1012
        %v1015 = vadd.f32 %v983, %v1013
        %v1016 = vadd.f32 %v984, %v1014
        %v1017 = vld [vmem:[%s452 + $0x3] sm:$0xff]
        %v1018 = vld [vmem:[%s452 + $0xb] sm:$0xff]
        %s1019 = sld [smem:[#allocation12 + $0x16]]
        %v1020 = vstv %s1019
        %v1021 = vmul.f32 %v1017, %v1020
        %v1022 = vmul.f32 %v1018, %v1020
        %v1023 = vadd.f32 %v991, %v1021
        %v1024 = vadd.f32 %v992, %v1022
        %v1025 = vld [vmem:[%s471 + $0x3] sm:$0xff]
        %v1026 = vld [vmem:[%s471 + $0xb] sm:$0xff]
        %s1027 = sld [smem:[#allocation13 + $0x16]]
        %v1028 = vstv %s1027
        %v1029 = vmul.f32 %v1025, %v1028
        %v1030 = vmul.f32 %v1026, %v1028
        %v1031 = vadd.f32 %v999, %v1029
        %v1032 = vadd.f32 %v1000, %v1030
        %v1033 = vld [vmem:[%s490 + $0x3] sm:$0xff]
        %v1034 = vld [vmem:[%s490 + $0xb] sm:$0xff]
        %s1035 = sld [smem:[#allocation12 + $0x17]]
        %v1036 = vstv %s1035
        %v1037 = vmul.f32 %v1033, %v1036
        %v1038 = vmul.f32 %v1034, %v1036
        %v1039 = vadd.f32 %v1007, %v1037
        %v1040 = vadd.f32 %v1008, %v1038
        %v1041 = vld [vmem:[%s509 + $0x3] sm:$0xff]
        %v1042 = vld [vmem:[%s509 + $0xb] sm:$0xff]
        %s1043 = sld [smem:[#allocation13 + $0x17]]
        %v1044 = vstv %s1043
        %v1045 = vmul.f32 %v1041, %v1044
        %v1046 = vmul.f32 %v1042, %v1044
        %v1047 = vadd.f32 %v1015, %v1045
        %v1048 = vadd.f32 %v1016, %v1046
        %v1049 = vld [vmem:[%s528 + $0x3] sm:$0xff]
        %v1050 = vld [vmem:[%s528 + $0xb] sm:$0xff]
        %s1051 = sld [smem:[#allocation12 + $0x18]]
        %v1052 = vstv %s1051
        %v1053 = vmul.f32 %v1049, %v1052
        %v1054 = vmul.f32 %v1050, %v1052
        %v1055 = vadd.f32 %v1023, %v1053
        %v1056 = vadd.f32 %v1024, %v1054
        %v1057 = vld [vmem:[%s547 + $0x3] sm:$0xff]
        %v1058 = vld [vmem:[%s547 + $0xb] sm:$0xff]
        %s1059 = sld [smem:[#allocation13 + $0x18]]
        %v1060 = vstv %s1059
        %v1061 = vmul.f32 %v1057, %v1060
        %v1062 = vmul.f32 %v1058, %v1060
        %v1063 = vadd.f32 %v1031, %v1061
        %v1064 = vadd.f32 %v1032, %v1062
        %v1065 = vld [vmem:[%s566 + $0x3] sm:$0xff]
        %v1066 = vld [vmem:[%s566 + $0xb] sm:$0xff]
        %s1067 = sld [smem:[#allocation12 + $0x19]]
        %v1068 = vstv %s1067
        %v1069 = vmul.f32 %v1065, %v1068
        %v1070 = vmul.f32 %v1066, %v1068
        %v1071 = vadd.f32 %v1039, %v1069
        %v1072 = vadd.f32 %v1040, %v1070
        %v1073 = vld [vmem:[%s585 + $0x3] sm:$0xff]
        %v1074 = vld [vmem:[%s585 + $0xb] sm:$0xff]
        %s1075 = sld [smem:[#allocation13 + $0x19]]
        %v1076 = vstv %s1075
        %v1077 = vmul.f32 %v1073, %v1076
        %v1078 = vmul.f32 %v1074, %v1076
        %v1079 = vadd.f32 %v1047, %v1077
        %v1080 = vadd.f32 %v1048, %v1078
        %v1081 = vld [vmem:[%s604 + $0x3] sm:$0xff]
        %v1082 = vld [vmem:[%s604 + $0xb] sm:$0xff]
        %s1083 = sld [smem:[#allocation12 + $0x1a]]
        %v1084 = vstv %s1083
        %v1085 = vmul.f32 %v1081, %v1084
        %v1086 = vmul.f32 %v1082, %v1084
        %v1087 = vadd.f32 %v1055, %v1085
        %v1088 = vadd.f32 %v1056, %v1086
        %v1089 = vld [vmem:[%s623 + $0x3] sm:$0xff]
        %v1090 = vld [vmem:[%s623 + $0xb] sm:$0xff]
        %s1091 = sld [smem:[#allocation13 + $0x1a]]
        %v1092 = vstv %s1091
        %v1093 = vmul.f32 %v1089, %v1092
        %v1094 = vmul.f32 %v1090, %v1092
        %v1095 = vadd.f32 %v1063, %v1093
        %v1096 = vadd.f32 %v1064, %v1094
        %v1097 = vld [vmem:[%s642 + $0x3] sm:$0xff]
        %v1098 = vld [vmem:[%s642 + $0xb] sm:$0xff]
        %s1099 = sld [smem:[#allocation12 + $0x1b]]
        %v1100 = vstv %s1099
        %v1101 = vmul.f32 %v1097, %v1100
        %v1102 = vmul.f32 %v1098, %v1100
        %v1103 = vadd.f32 %v1071, %v1101
        %v1104 = vadd.f32 %v1072, %v1102
        %v1105 = vld [vmem:[%s661 + $0x3] sm:$0xff]
        %v1106 = vld [vmem:[%s661 + $0xb] sm:$0xff]
        %s1107 = sld [smem:[#allocation13 + $0x1b]]
        %v1108 = vstv %s1107
        %v1109 = vmul.f32 %v1105, %v1108
        %v1110 = vmul.f32 %v1106, %v1108
        %v1111 = vadd.f32 %v1079, %v1109
        %v1112 = vadd.f32 %v1080, %v1110
        %v1113 = vld [vmem:[#allocation4 + $0x4] sm:$0xff]
        %v1114 = vld [vmem:[#allocation4 + $0xc] sm:$0xff]
        %s1115 = sld [smem:[#allocation12 + $0x1c]]
        %v1116 = vstv %s1115
        %v1117 = vmul.f32 %v1113, %v1116
        %v1118 = vmul.f32 %v1114, %v1116
        %v1119 = vadd.f32 %v1087, %v1117
        %v1120 = vadd.f32 %v1088, %v1118
        %v1121 = vld [vmem:[#allocation5 + $0x4] sm:$0xff]
        %v1122 = vld [vmem:[#allocation5 + $0xc] sm:$0xff]
        %s1123 = sld [smem:[#allocation13 + $0x1c]]
        %v1124 = vstv %s1123
        %v1125 = vmul.f32 %v1121, %v1124
        %v1126 = vmul.f32 %v1122, %v1124
        %v1127 = vadd.f32 %v1095, %v1125
        %v1128 = vadd.f32 %v1096, %v1126
        %v1129 = vld [vmem:[%s452 + $0x4] sm:$0xff]
        %v1130 = vld [vmem:[%s452 + $0xc] sm:$0xff]
        %s1131 = sld [smem:[#allocation12 + $0x1d]]
        %v1132 = vstv %s1131
        %v1133 = vmul.f32 %v1129, %v1132
        %v1134 = vmul.f32 %v1130, %v1132
        %v1135 = vadd.f32 %v1103, %v1133
        %v1136 = vadd.f32 %v1104, %v1134
        %v1137 = vld [vmem:[%s471 + $0x4] sm:$0xff]
        %v1138 = vld [vmem:[%s471 + $0xc] sm:$0xff]
        %s1139 = sld [smem:[#allocation13 + $0x1d]]
        %v1140 = vstv %s1139
        %v1141 = vmul.f32 %v1137, %v1140
        %v1142 = vmul.f32 %v1138, %v1140
        %v1143 = vadd.f32 %v1111, %v1141
        %v1144 = vadd.f32 %v1112, %v1142
        %v1145 = vld [vmem:[%s490 + $0x4] sm:$0xff]
        %v1146 = vld [vmem:[%s490 + $0xc] sm:$0xff]
        %s1147 = sld [smem:[#allocation12 + $0x1e]]
        %v1148 = vstv %s1147
        %v1149 = vmul.f32 %v1145, %v1148
        %v1150 = vmul.f32 %v1146, %v1148
        %v1151 = vadd.f32 %v1119, %v1149
        %v1152 = vadd.f32 %v1120, %v1150
        %v1153 = vld [vmem:[%s509 + $0x4] sm:$0xff]
        %v1154 = vld [vmem:[%s509 + $0xc] sm:$0xff]
        %s1155 = sld [smem:[#allocation13 + $0x1e]]
        %v1156 = vstv %s1155
        %v1157 = vmul.f32 %v1153, %v1156
        %v1158 = vmul.f32 %v1154, %v1156
        %v1159 = vadd.f32 %v1127, %v1157
        %v1160 = vadd.f32 %v1128, %v1158
        %v1161 = vld [vmem:[%s528 + $0x4] sm:$0xff]
        %v1162 = vld [vmem:[%s528 + $0xc] sm:$0xff]
        %s1163 = sld [smem:[#allocation12 + $0x1f]]
        %v1164 = vstv %s1163
        %v1165 = vmul.f32 %v1161, %v1164
        %v1166 = vmul.f32 %v1162, %v1164
        %v1167 = vadd.f32 %v1135, %v1165
        %v1168 = vadd.f32 %v1136, %v1166
        %v1169 = vld [vmem:[%s547 + $0x4] sm:$0xff]
        %v1170 = vld [vmem:[%s547 + $0xc] sm:$0xff]
        %s1171 = sld [smem:[#allocation13 + $0x1f]]
        %v1172 = vstv %s1171
        %v1173 = vmul.f32 %v1169, %v1172
        %v1174 = vmul.f32 %v1170, %v1172
        %v1175 = vadd.f32 %v1143, %v1173
        %v1176 = vadd.f32 %v1144, %v1174
        %v1177 = vld [vmem:[%s566 + $0x4] sm:$0xff]
        %v1178 = vld [vmem:[%s566 + $0xc] sm:$0xff]
        %s1179 = sld [smem:[#allocation12 + $0x20]]
        %v1180 = vstv %s1179
        %v1181 = vmul.f32 %v1177, %v1180
        %v1182 = vmul.f32 %v1178, %v1180
        %v1183 = vadd.f32 %v1151, %v1181
        %v1184 = vadd.f32 %v1152, %v1182
        %v1185 = vld [vmem:[%s585 + $0x4] sm:$0xff]
        %v1186 = vld [vmem:[%s585 + $0xc] sm:$0xff]
        %s1187 = sld [smem:[#allocation13 + $0x20]]
        %v1188 = vstv %s1187
        %v1189 = vmul.f32 %v1185, %v1188
        %v1190 = vmul.f32 %v1186, %v1188
        %v1191 = vadd.f32 %v1159, %v1189
        %v1192 = vadd.f32 %v1160, %v1190
        %v1193 = vld [vmem:[%s604 + $0x4] sm:$0xff]
        %v1194 = vld [vmem:[%s604 + $0xc] sm:$0xff]
        %s1195 = sld [smem:[#allocation12 + $0x21]]
        %v1196 = vstv %s1195
        %v1197 = vmul.f32 %v1193, %v1196
        %v1198 = vmul.f32 %v1194, %v1196
        %v1199 = vadd.f32 %v1167, %v1197
        %v1200 = vadd.f32 %v1168, %v1198
        %v1201 = vld [vmem:[%s623 + $0x4] sm:$0xff]
        %v1202 = vld [vmem:[%s623 + $0xc] sm:$0xff]
        %s1203 = sld [smem:[#allocation13 + $0x21]]
        %v1204 = vstv %s1203
        %v1205 = vmul.f32 %v1201, %v1204
        %v1206 = vmul.f32 %v1202, %v1204
        %v1207 = vadd.f32 %v1175, %v1205
        %v1208 = vadd.f32 %v1176, %v1206
        %v1209 = vld [vmem:[%s642 + $0x4] sm:$0xff]
        %v1210 = vld [vmem:[%s642 + $0xc] sm:$0xff]
        %s1211 = sld [smem:[#allocation12 + $0x22]]
        %v1212 = vstv %s1211
        %v1213 = vmul.f32 %v1209, %v1212
        %v1214 = vmul.f32 %v1210, %v1212
        %v1215 = vadd.f32 %v1183, %v1213
        %v1216 = vadd.f32 %v1184, %v1214
        %v1217 = vld [vmem:[%s661 + $0x4] sm:$0xff]
        %v1218 = vld [vmem:[%s661 + $0xc] sm:$0xff]
        %s1219 = sld [smem:[#allocation13 + $0x22]]
        %v1220 = vstv %s1219
        %v1221 = vmul.f32 %v1217, %v1220
        %v1222 = vmul.f32 %v1218, %v1220
        %v1223 = vadd.f32 %v1191, %v1221
        %v1224 = vadd.f32 %v1192, %v1222
        %v1225 = vld [vmem:[#allocation4 + $0x5] sm:$0xff]
        %v1226 = vld [vmem:[#allocation4 + $0xd] sm:$0xff]
        %s1227 = sld [smem:[#allocation12 + $0x23]]
        %v1228 = vstv %s1227
        %v1229 = vmul.f32 %v1225, %v1228
        %v1230 = vmul.f32 %v1226, %v1228
        %v1231 = vadd.f32 %v1199, %v1229
        %v1232 = vadd.f32 %v1200, %v1230
        %v1233 = vld [vmem:[#allocation5 + $0x5] sm:$0xff]
        %v1234 = vld [vmem:[#allocation5 + $0xd] sm:$0xff]
        %s1235 = sld [smem:[#allocation13 + $0x23]]
        %v1236 = vstv %s1235
        %v1237 = vmul.f32 %v1233, %v1236
        %v1238 = vmul.f32 %v1234, %v1236
        %v1239 = vadd.f32 %v1207, %v1237
        %v1240 = vadd.f32 %v1208, %v1238
        %v1241 = vld [vmem:[%s452 + $0x5] sm:$0xff]
        %v1242 = vld [vmem:[%s452 + $0xd] sm:$0xff]
        %s1243 = sld [smem:[#allocation12 + $0x24]]
        %v1244 = vstv %s1243
        %v1245 = vmul.f32 %v1241, %v1244
        %v1246 = vmul.f32 %v1242, %v1244
        %v1247 = vadd.f32 %v1215, %v1245
        %v1248 = vadd.f32 %v1216, %v1246
        %v1249 = vld [vmem:[%s471 + $0x5] sm:$0xff]
        %v1250 = vld [vmem:[%s471 + $0xd] sm:$0xff]
        %s1251 = sld [smem:[#allocation13 + $0x24]]
        %v1252 = vstv %s1251
        %v1253 = vmul.f32 %v1249, %v1252
        %v1254 = vmul.f32 %v1250, %v1252
        %v1255 = vadd.f32 %v1223, %v1253
        %v1256 = vadd.f32 %v1224, %v1254
        %v1257 = vld [vmem:[%s490 + $0x5] sm:$0xff]
        %v1258 = vld [vmem:[%s490 + $0xd] sm:$0xff]
        %s1259 = sld [smem:[#allocation12 + $0x25]]
        %v1260 = vstv %s1259
        %v1261 = vmul.f32 %v1257, %v1260
        %v1262 = vmul.f32 %v1258, %v1260
        %v1263 = vadd.f32 %v1231, %v1261
        %v1264 = vadd.f32 %v1232, %v1262
        %v1265 = vld [vmem:[%s509 + $0x5] sm:$0xff]
        %v1266 = vld [vmem:[%s509 + $0xd] sm:$0xff]
        %s1267 = sld [smem:[#allocation13 + $0x25]]
        %v1268 = vstv %s1267
        %v1269 = vmul.f32 %v1265, %v1268
        %v1270 = vmul.f32 %v1266, %v1268
        %v1271 = vadd.f32 %v1239, %v1269
        %v1272 = vadd.f32 %v1240, %v1270
        %v1273 = vld [vmem:[%s528 + $0x5] sm:$0xff]
        %v1274 = vld [vmem:[%s528 + $0xd] sm:$0xff]
        %s1275 = sld [smem:[#allocation12 + $0x26]]
        %v1276 = vstv %s1275
        %v1277 = vmul.f32 %v1273, %v1276
        %v1278 = vmul.f32 %v1274, %v1276
        %v1279 = vadd.f32 %v1247, %v1277
        %v1280 = vadd.f32 %v1248, %v1278
        %v1281 = vld [vmem:[%s547 + $0x5] sm:$0xff]
        %v1282 = vld [vmem:[%s547 + $0xd] sm:$0xff]
        %s1283 = sld [smem:[#allocation13 + $0x26]]
        %v1284 = vstv %s1283
        %v1285 = vmul.f32 %v1281, %v1284
        %v1286 = vmul.f32 %v1282, %v1284
        %v1287 = vadd.f32 %v1255, %v1285
        %v1288 = vadd.f32 %v1256, %v1286
        %v1289 = vld [vmem:[%s566 + $0x5] sm:$0xff]
        %v1290 = vld [vmem:[%s566 + $0xd] sm:$0xff]
        %s1291 = sld [smem:[#allocation12 + $0x27]]
        %v1292 = vstv %s1291
        %v1293 = vmul.f32 %v1289, %v1292
        %v1294 = vmul.f32 %v1290, %v1292
        %v1295 = vadd.f32 %v1263, %v1293
        %v1296 = vadd.f32 %v1264, %v1294
        %v1297 = vld [vmem:[%s585 + $0x5] sm:$0xff]
        %v1298 = vld [vmem:[%s585 + $0xd] sm:$0xff]
        %s1299 = sld [smem:[#allocation13 + $0x27]]
        %v1300 = vstv %s1299
        %v1301 = vmul.f32 %v1297, %v1300
        %v1302 = vmul.f32 %v1298, %v1300
        %v1303 = vadd.f32 %v1271, %v1301
        %v1304 = vadd.f32 %v1272, %v1302
        %v1305 = vld [vmem:[%s604 + $0x5] sm:$0xff]
        %v1306 = vld [vmem:[%s604 + $0xd] sm:$0xff]
        %s1307 = sld [smem:[#allocation12 + $0x28]]
        %v1308 = vstv %s1307
        %v1309 = vmul.f32 %v1305, %v1308
        %v1310 = vmul.f32 %v1306, %v1308
        %v1311 = vadd.f32 %v1279, %v1309
        %v1312 = vadd.f32 %v1280, %v1310
        %v1313 = vld [vmem:[%s623 + $0x5] sm:$0xff]
        %v1314 = vld [vmem:[%s623 + $0xd] sm:$0xff]
        %s1315 = sld [smem:[#allocation13 + $0x28]]
        %v1316 = vstv %s1315
        %v1317 = vmul.f32 %v1313, %v1316
        %v1318 = vmul.f32 %v1314, %v1316
        %v1319 = vadd.f32 %v1287, %v1317
        %v1320 = vadd.f32 %v1288, %v1318
        %v1321 = vld [vmem:[%s642 + $0x5] sm:$0xff]
        %v1322 = vld [vmem:[%s642 + $0xd] sm:$0xff]
        %s1323 = sld [smem:[#allocation12 + $0x29]]
        %v1324 = vstv %s1323
        %v1325 = vmul.f32 %v1321, %v1324
        %v1326 = vmul.f32 %v1322, %v1324
        %v1327 = vadd.f32 %v1295, %v1325
        %v1328 = vadd.f32 %v1296, %v1326
        %v1329 = vld [vmem:[%s661 + $0x5] sm:$0xff]
        %v1330 = vld [vmem:[%s661 + $0xd] sm:$0xff]
        %s1331 = sld [smem:[#allocation13 + $0x29]]
        %v1332 = vstv %s1331
        %v1333 = vmul.f32 %v1329, %v1332
        %v1334 = vmul.f32 %v1330, %v1332
        %v1335 = vadd.f32 %v1303, %v1333
        %v1336 = vadd.f32 %v1304, %v1334
        %v1337 = vld [vmem:[#allocation4 + $0x6] sm:$0xff]
        %v1338 = vld [vmem:[#allocation4 + $0xe] sm:$0xff]
        %s1339 = sld [smem:[#allocation12 + $0x2a]]
        %v1340 = vstv %s1339
        %v1341 = vmul.f32 %v1337, %v1340
        %v1342 = vmul.f32 %v1338, %v1340
        %v1343 = vadd.f32 %v1311, %v1341
        %v1344 = vadd.f32 %v1312, %v1342
        %v1345 = vld [vmem:[#allocation5 + $0x6] sm:$0xff]
        %v1346 = vld [vmem:[#allocation5 + $0xe] sm:$0xff]
        %s1347 = sld [smem:[#allocation13 + $0x2a]]
        %v1348 = vstv %s1347
        %v1349 = vmul.f32 %v1345, %v1348
        %v1350 = vmul.f32 %v1346, %v1348
        %v1351 = vadd.f32 %v1319, %v1349
        %v1352 = vadd.f32 %v1320, %v1350
        %v1353 = vld [vmem:[%s452 + $0x6] sm:$0xff]
        %v1354 = vld [vmem:[%s452 + $0xe] sm:$0xff]
        %s1355 = sld [smem:[#allocation12 + $0x2b]]
        %v1356 = vstv %s1355
        %v1357 = vmul.f32 %v1353, %v1356
        %v1358 = vmul.f32 %v1354, %v1356
        %v1359 = vadd.f32 %v1327, %v1357
        %v1360 = vadd.f32 %v1328, %v1358
        %v1361 = vld [vmem:[%s471 + $0x6] sm:$0xff]
        %v1362 = vld [vmem:[%s471 + $0xe] sm:$0xff]
        %s1363 = sld [smem:[#allocation13 + $0x2b]]
        %v1364 = vstv %s1363
        %v1365 = vmul.f32 %v1361, %v1364
        %v1366 = vmul.f32 %v1362, %v1364
        %v1367 = vadd.f32 %v1335, %v1365
        %v1368 = vadd.f32 %v1336, %v1366
        %v1369 = vld [vmem:[%s490 + $0x6] sm:$0xff]
        %v1370 = vld [vmem:[%s490 + $0xe] sm:$0xff]
        %s1371 = sld [smem:[#allocation12 + $0x2c]]
        %v1372 = vstv %s1371
        %v1373 = vmul.f32 %v1369, %v1372
        %v1374 = vmul.f32 %v1370, %v1372
        %v1375 = vadd.f32 %v1343, %v1373
        %v1376 = vadd.f32 %v1344, %v1374
        %v1377 = vld [vmem:[%s509 + $0x6] sm:$0xff]
        %v1378 = vld [vmem:[%s509 + $0xe] sm:$0xff]
        %s1379 = sld [smem:[#allocation13 + $0x2c]]
        %v1380 = vstv %s1379
        %v1381 = vmul.f32 %v1377, %v1380
        %v1382 = vmul.f32 %v1378, %v1380
        %v1383 = vadd.f32 %v1351, %v1381
        %v1384 = vadd.f32 %v1352, %v1382
        %v1385 = vld [vmem:[%s528 + $0x6] sm:$0xff]
        %v1386 = vld [vmem:[%s528 + $0xe] sm:$0xff]
        %s1387 = sld [smem:[#allocation12 + $0x2d]]
        %v1388 = vstv %s1387
        %v1389 = vmul.f32 %v1385, %v1388
        %v1390 = vmul.f32 %v1386, %v1388
        %v1391 = vadd.f32 %v1359, %v1389
        %v1392 = vadd.f32 %v1360, %v1390
        %v1393 = vld [vmem:[%s547 + $0x6] sm:$0xff]
        %v1394 = vld [vmem:[%s547 + $0xe] sm:$0xff]
        %s1395 = sld [smem:[#allocation13 + $0x2d]]
        %v1396 = vstv %s1395
        %v1397 = vmul.f32 %v1393, %v1396
        %v1398 = vmul.f32 %v1394, %v1396
        %v1399 = vadd.f32 %v1367, %v1397
        %v1400 = vadd.f32 %v1368, %v1398
        %v1401 = vld [vmem:[%s566 + $0x6] sm:$0xff]
        %v1402 = vld [vmem:[%s566 + $0xe] sm:$0xff]
        %s1403 = sld [smem:[#allocation12 + $0x2e]]
        %v1404 = vstv %s1403
        %v1405 = vmul.f32 %v1401, %v1404
        %v1406 = vmul.f32 %v1402, %v1404
        %v1407 = vadd.f32 %v1375, %v1405
        %v1408 = vadd.f32 %v1376, %v1406
        %v1409 = vld [vmem:[%s585 + $0x6] sm:$0xff]
        %v1410 = vld [vmem:[%s585 + $0xe] sm:$0xff]
        %s1411 = sld [smem:[#allocation13 + $0x2e]]
        %v1412 = vstv %s1411
        %v1413 = vmul.f32 %v1409, %v1412
        %v1414 = vmul.f32 %v1410, %v1412
        %v1415 = vadd.f32 %v1383, %v1413
        %v1416 = vadd.f32 %v1384, %v1414
        %v1417 = vld [vmem:[%s604 + $0x6] sm:$0xff]
        %v1418 = vld [vmem:[%s604 + $0xe] sm:$0xff]
        %s1419 = sld [smem:[#allocation12 + $0x2f]]
        %v1420 = vstv %s1419
        %v1421 = vmul.f32 %v1417, %v1420
        %v1422 = vmul.f32 %v1418, %v1420
        %v1423 = vadd.f32 %v1391, %v1421
        %v1424 = vadd.f32 %v1392, %v1422
        %v1425 = vld [vmem:[%s623 + $0x6] sm:$0xff]
        %v1426 = vld [vmem:[%s623 + $0xe] sm:$0xff]
        %s1427 = sld [smem:[#allocation13 + $0x2f]]
        %v1428 = vstv %s1427
        %v1429 = vmul.f32 %v1425, %v1428
        %v1430 = vmul.f32 %v1426, %v1428
        %v1431 = vadd.f32 %v1399, %v1429
        %v1432 = vadd.f32 %v1400, %v1430
        %v1433 = vld [vmem:[%s642 + $0x6] sm:$0xff]
        %v1434 = vld [vmem:[%s642 + $0xe] sm:$0xff]
        %s1435 = sld [smem:[#allocation12 + $0x30]]
        %v1436 = vstv %s1435
        %v1437 = vmul.f32 %v1433, %v1436
        %v1438 = vmul.f32 %v1434, %v1436
        %v1439 = vadd.f32 %v1407, %v1437
        %v1440 = vadd.f32 %v1408, %v1438
        %v1441 = vld [vmem:[%s661 + $0x6] sm:$0xff]
        %v1442 = vld [vmem:[%s661 + $0xe] sm:$0xff]
        %s1443 = sld [smem:[#allocation13 + $0x30]]
        %v1444 = vstv %s1443
        %v1445 = vmul.f32 %v1441, %v1444
        %v1446 = vmul.f32 %v1442, %v1444
        %v1447 = vadd.f32 %v1415, %v1445
        %v1448 = vadd.f32 %v1416, %v1446
        %v1449 = vadd.f32 %v1439, %v1447
        %v1450 = vadd.f32 %v1440, %v1448
        %v1451 = vadd.f32 %v1423, %v1431
        %v1452 = vadd.f32 %v1424, %v1432
        %v1453 = vadd.f32 %v1449, %v1451
        %v1454 = vadd.f32 %v1450, %v1452
        %s1455 = sld [smem:[#allocation7]]
        %v1456 = vstv %s1455
        %v1457 = vadd.f32 %v1453, %v1456
        %v1458 = vadd.f32 %v1454, %v1456
        %v1459 = vxor.u32 %v1457, 2147483648
        %v1460 = vxor.u32 %v1458, 2147483648
        %v1461 = vmul.f32 %v1459, 1.442695
        %v1462 = vpow.pop %v1461
        %v1463 = vmul.f32 %v1460, 1.442695
        %v1464 = vpow.pop %v1463
        %v1465 = vadd.f32 %v1462, 1.0
        %v1466 = vadd.f32 %v1464, 1.0
        %v1467 = vrcp.pop %v1465
        %v1468 = vmul.f32 1.0, %v1467
        %v1469 = vrcp.pop %v1466
        %v1470 = vmul.f32 1.0, %v1469
        %v1471 = vlaneseq
        %vm1472 = vcmp.ge.s32.totalorder %v1471, 0
        %vm1473 = vcmp.lt.s32.totalorder %v1471, 16
        %vm1474 = vmand %vm1472, %vm1473
        %1475 = vst.msk [vmem:[#allocation6] sm:$0x1] %vm1474, %v1468
        %v1478 = vunpack.c.l.s4 1966171168
        %v1479 = vunpack.c.0.s8 %v1478
        %v1480 = vlaneseq
        %v1481 = vshrl.u32 %v1480, 7
        %v1482 = vsub.s32 %v1479, %v1481
        %v1483 = vrot.slane %v1468, %v1482
        %v1484 = vcombine.high %v1483, %v1483
        %v1486 = vunpack.c.l.s4 1966171168
        %v1487 = vunpack.c.0.s8 %v1486
        %v1488 = vlaneseq
        %v1489 = vshrl.u32 %v1488, 7
        %v1490 = vsub.s32 %v1487, %v1489
        %v1491 = vrot.slane %v1483, %v1490
        %v1493 = vunpack.c.l.s4 1966171168
        %v1494 = vunpack.c.0.s8 %v1493
        %v1495 = vlaneseq
        %v1496 = vshrl.u32 %v1495, 7
        %v1497 = vsub.s32 %v1494, %v1496
        %v1498 = vrot.slane %v1484, %v1497
        %1499 = vrot.lane.b32.xlu0 %v1498, 16
        %v1500 = vpop.permute.xlu0 %1499
        %vm1502 = vcmp.ge.s32.totalorder %v1471, 16
        %vm1503 = vcmp.lt.s32.totalorder %v1471, 32
        %vm1504 = vmand %vm1502, %vm1503
        %1505 = vst.msk [vmem:[#allocation6] sm:$0x1] %vm1504, %v1500
        %v1506 = vcombine.high %v1491, %v1491
        %1507 = vrot.lane.b32.xlu0 %v1506, 32
        %v1508 = vpop.permute.xlu0 %1507
        %vm1510 = vcmp.ge.s32.totalorder %v1471, 32
        %vm1511 = vcmp.lt.s32.totalorder %v1471, 48
        %vm1512 = vmand %vm1510, %vm1511
        %1513 = vst.msk [vmem:[#allocation6] sm:$0x1] %vm1512, %v1508
        %v1514 = vcombine.high %v1498, %v1498
        %1515 = vrot.lane.b32.xlu0 %v1514, 48
        %v1516 = vpop.permute.xlu0 %1515
        %vm1518 = vcmp.ge.s32.totalorder %v1471, 48
        %vm1519 = vcmp.lt.s32.totalorder %v1471, 64
        %vm1520 = vmand %vm1518, %vm1519
        %1521 = vst.msk [vmem:[#allocation6] sm:$0x1] %vm1520, %v1516
        %v1522 = vcombine.high %v1468, %v1468
        %v1524 = vunpack.c.l.s4 1966171168
        %v1525 = vunpack.c.0.s8 %v1524
        %v1526 = vlaneseq
        %v1527 = vshrl.u32 %v1526, 7
        %v1528 = vsub.s32 %v1525, %v1527
        %v1529 = vrot.slane %v1522, %v1528
        %v1531 = vunpack.c.l.s4 1966171168
        %v1532 = vunpack.c.0.s8 %v1531
        %v1533 = vlaneseq
        %v1534 = vshrl.u32 %v1533, 7
        %v1535 = vsub.s32 %v1532, %v1534
        %v1536 = vrot.slane %v1529, %v1535
        %1537 = vrot.lane.b32.xlu0 %v1536, 64
        %v1538 = vpop.permute.xlu0 %1537
        %vm1540 = vcmp.ge.s32.totalorder %v1471, 64
        %vm1541 = vcmp.lt.s32.totalorder %v1471, 80
        %vm1542 = vmand %vm1540, %vm1541
        %1543 = vst.msk [vmem:[#allocation6] sm:$0x1] %vm1542, %v1538
        %v1544 = vcombine.high %v1529, %v1529
        %v1546 = vunpack.c.l.s4 1966171168
        %v1547 = vunpack.c.0.s8 %v1546
        %v1548 = vlaneseq
        %v1549 = vshrl.u32 %v1548, 7
        %v1550 = vsub.s32 %v1547, %v1549
        %v1551 = vrot.slane %v1544, %v1550
        %1552 = vrot.lane.b32.xlu0 %v1551, 80
        %v1553 = vpop.permute.xlu0 %1552
        %vm1555 = vcmp.ge.s32.totalorder %v1471, 80
        %vm1556 = vcmp.lt.s32.totalorder %v1471, 96
        %vm1557 = vmand %vm1555, %vm1556
        %1558 = vst.msk [vmem:[#allocation6] sm:$0x1] %vm1557, %v1553
        %v1559 = vcombine.high %v1536, %v1536
        %1560 = vrot.lane.b32.xlu0 %v1559, 96
        %v1561 = vpop.permute.xlu0 %1560
        %vm1563 = vcmp.ge.s32.totalorder %v1471, 96
        %vm1564 = vcmp.lt.s32.totalorder %v1471, 112
        %vm1565 = vmand %vm1563, %vm1564
        %1566 = vst.msk [vmem:[#allocation6] sm:$0x1] %vm1565, %v1561
        %v1567 = vcombine.high %v1551, %v1551
        %1568 = vrot.lane.b32.xlu0 %v1567, 112
        %v1569 = vpop.permute.xlu0 %1568
        %vm1571 = vcmp.ge.s32.totalorder %v1471, 112
        %vm1572 = vcmp.lt.s32.totalorder %v1471, 128
        %vm1573 = vmand %vm1571, %vm1572
        %1574 = vst.msk [vmem:[#allocation6] sm:$0x1] %vm1573, %v1569
        %1575 = vst.msk [vmem:[#allocation6 + $0x1] sm:$0x1] %vm1474, %v1470
        %v1578 = vunpack.c.l.s4 1966171168
        %v1579 = vunpack.c.0.s8 %v1578
        %v1580 = vlaneseq
        %v1581 = vshrl.u32 %v1580, 7
        %v1582 = vsub.s32 %v1579, %v1581
        %v1583 = vrot.slane %v1470, %v1582
        %v1584 = vcombine.high %v1583, %v1583
        %v1586 = vunpack.c.l.s4 1966171168
        %v1587 = vunpack.c.0.s8 %v1586
        %v1588 = vlaneseq
        %v1589 = vshrl.u32 %v1588, 7
        %v1590 = vsub.s32 %v1587, %v1589
        %v1591 = vrot.slane %v1583, %v1590
        %v1593 = vunpack.c.l.s4 1966171168
        %v1594 = vunpack.c.0.s8 %v1593
        %v1595 = vlaneseq
        %v1596 = vshrl.u32 %v1595, 7
        %v1597 = vsub.s32 %v1594, %v1596
        %v1598 = vrot.slane %v1584, %v1597
        %1599 = vrot.lane.b32.xlu0 %v1598, 16
        %v1600 = vpop.permute.xlu0 %1599
        %1602 = vst.msk [vmem:[#allocation6 + $0x1] sm:$0x1] %vm1504, %v1600
        %v1603 = vcombine.high %v1591, %v1591
        %1604 = vrot.lane.b32.xlu0 %v1603, 32
        %v1605 = vpop.permute.xlu0 %1604
        %1607 = vst.msk [vmem:[#allocation6 + $0x1] sm:$0x1] %vm1512, %v1605
        %v1608 = vcombine.high %v1598, %v1598
        %1609 = vrot.lane.b32.xlu0 %v1608, 48
        %v1610 = vpop.permute.xlu0 %1609
        %1612 = vst.msk [vmem:[#allocation6 + $0x1] sm:$0x1] %vm1520, %v1610
        %v1613 = vcombine.high %v1470, %v1470
        %v1615 = vunpack.c.l.s4 1966171168
        %v1616 = vunpack.c.0.s8 %v1615
        %v1617 = vlaneseq
        %v1618 = vshrl.u32 %v1617, 7
        %v1619 = vsub.s32 %v1616, %v1618
        %v1620 = vrot.slane %v1613, %v1619
        %v1622 = vunpack.c.l.s4 1966171168
        %v1623 = vunpack.c.0.s8 %v1622
        %v1624 = vlaneseq
        %v1625 = vshrl.u32 %v1624, 7
        %v1626 = vsub.s32 %v1623, %v1625
        %v1627 = vrot.slane %v1620, %v1626
        %1628 = vrot.lane.b32.xlu0 %v1627, 64
        %v1629 = vpop.permute.xlu0 %1628
        %1631 = vst.msk [vmem:[#allocation6 + $0x1] sm:$0x1] %vm1542, %v1629
        %v1632 = vcombine.high %v1620, %v1620
        %v1634 = vunpack.c.l.s4 1966171168
        %v1635 = vunpack.c.0.s8 %v1634
        %v1636 = vlaneseq
        %v1637 = vshrl.u32 %v1636, 7
        %v1638 = vsub.s32 %v1635, %v1637
        %v1639 = vrot.slane %v1632, %v1638
        %1640 = vrot.lane.b32.xlu0 %v1639, 80
        %v1641 = vpop.permute.xlu0 %1640
        %1643 = vst.msk [vmem:[#allocation6 + $0x1] sm:$0x1] %vm1557, %v1641
        %v1644 = vcombine.high %v1627, %v1627
        %1645 = vrot.lane.b32.xlu0 %v1644, 96
        %v1646 = vpop.permute.xlu0 %1645
        %1648 = vst.msk [vmem:[#allocation6 + $0x1] sm:$0x1] %vm1565, %v1646
        %v1649 = vcombine.high %v1639, %v1639
        %1650 = vrot.lane.b32.xlu0 %v1649, 112
        %v1651 = vpop.permute.xlu0 %1650
        %1653 = vst.msk [vmem:[#allocation6 + $0x1] sm:$0x1] %vm1573, %v1651
        %v1654 = vld [vmem:[#allocation6] sm:$0x3]
        %v1655 = vld [vmem:[%s208] sm:$0xff]
        %v1657 = vlaneseq
        %v1658 = vshrl.u32 %v1657, 7
        %v1659 = vsub.s32 0, %v1658
        %v1660 = vrot.slane %v1654, %v1659
        %v1661 = vlaneseq
        %v1662 = vshrl.u32 %v1661, 7
        %v1663 = vsub.s32 1, %v1662
        %v1664 = vrot.slane %v1654, %v1663
        %v1665 = vcombine.low %v1660, %v1664
        %v1667 = vmul.f32 %v1655, %v1665
        %1668 = vst [vmem:[%s241] sm:$0xff] %v1667
        %s1669 = sand.u32 %s121, 1
        %s1670 = scalar_lea.sflag [#allocation10], %s1669
        %s1671 = sand.u32 %s121, 1
        %s1672 = smul.addr %s1671, 8
        %s1673 = scalar_lea.vmem [#allocation15], %s1672
        // Predicated region
        $region49: #{tpu_custom_call.1} parent=35 // pred_check
          %p1674 = pneg %p131
        $region50: #{tpu_custom_call.1} parent=35 // pred_check_branch
          %1676 = sbr.rel (%p1674) target = $region52
        $region51: #{tpu_custom_call.1} parent=35 // pred_region
          %s1678 = ssub.s32 128, 128
          %1679 = vsyncadd %s1670, %s1678
          %s1680 = smul.addr %s24, 2
          %s1681 = smul.addr %s1680, 64
          %s1682 = scalar_lea.hbm %s4, %s1681
          %s1684 = sshll.u32 %s1673, 4
          %s1685 = int_to_ptr.vmem [resolvable:$true] %s1684
          %1687 = dma.vmem_to_hbm [thread:$0]  %s1685, 128, %s1682, %s1670
        $region52: #{tpu_custom_call.1} parent=35 // pred_fallthru
          _
      $region36: #{tpu_custom_call.1} parent=5 // pred_fallthru
        _
      %p1688 = scmp.le.s32.totalorder 2, %s19
      // Predicated region
      $region53: #{tpu_custom_call.1} parent=5 // pred_check
        %p1689 = pneg %p1688
      $region54: #{tpu_custom_call.1} parent=5 // pred_check_branch
        %1691 = sbr.rel (%p1689) target = $region56
      $region55: #{tpu_custom_call.1} parent=5 // pred_region
        %s1692 = ssub.s32 %s19, 2
        // Predicated region
        $region57: #{tpu_custom_call.1} parent=55 // pred_check
          %p1693 = pneg %p137
        $region58: #{tpu_custom_call.1} parent=55 // pred_check_branch
          %1695 = sbr.rel (%p1693) target = $region60
        $region59: #{tpu_custom_call.1} parent=55 // pred_region
          %s1696 = sand.u32 %s122, 1
          %s1697 = scalar_lea.sflag [#allocation10], %s1696
          %s1698 = sand.u32 %s122, 1
          %s1699 = smul.addr %s1698, 8
          %s1700 = scalar_lea.vmem [#allocation15], %s1699
          %1701 = dma.done %s1697, 128
        $region60: #{tpu_custom_call.1} parent=55 // pred_fallthru
          _
      $region56: #{tpu_custom_call.1} parent=5 // pred_fallthru
        _
    $region6: #{tpu_custom_call.1} parent=1 // loop_footer
      %s23 = sadd.s32 1, %s19
    $region7: #{tpu_custom_call.1} parent=1 // loop_footer_branch
      %18 = sbr.rel target = $region3
    $region8: #{tpu_custom_call.1} parent=1 // loop_exit
      _
    %1702 = vsyncpa [#allocation9], 1
    %s1703 = scalar_lea.sflag [#allocation9], 1
    %1704 = vsyncpa %s1703, 1
    %1705 = vsyncpa [#allocation10], 1
    %s1706 = scalar_lea.sflag [#allocation10], 1
    %1707 = vsyncpa %s1706, 1
    %1708 = vsyncpa [#allocation11], 1
    %s1709 = scalar_lea.sflag [#allocation11], 1
    %1710 = vsyncpa %s1709, 1
    %1711 = vsyncpa [#allocation14], 1

</llo_original>
